<compile_context>
chip_gen: v6e
topology: v6e:2x2x1
jax: 0.10.0
libtpu: 0.0.40
codegen_flags: <defaults>
</compile_context>

<pallas_src>
import functools

import jax
import jax.numpy as jnp
from jax.experimental import pallas as pl
from jax.experimental.pallas import tpu as pltpu


# ----------------------------------------------------------------------------
# Config (mirrors the shapes the PyTorch module's __init__/forward imply)
# ----------------------------------------------------------------------------
BATCH = 2
SEQ = 8
N_NUM = 4                              # numeric features
EMB_NUM_EMBEDDINGS = (7, 11, 5)        # 3 categorical features
EMB_DIM = (4, 4, 4)
D0 = N_NUM + sum(EMB_DIM)              # 16  = rnn input size
HIDDEN = 32                            # LSTM hidden size
N_RNN_LAYERS = 2
# after layer1: 32 + 16 = 48 ; after layer2: 32 + 48 = 80
FC_INPUT_SIZE = HIDDEN + (HIDDEN + D0)
FC_HIDDEN = 512
OUTPUT_DIM = 1
OUT_LANES = 128                        # lane-padded fc2 output width

# TODO(synk): LinBnReLu's definition is not shown.  With is_bn=False, dropout=0 the
# hidden FC layer is modeled as Linear->ReLU; the final regression layer is modeled
# WITHOUT an activation (a ReLU-clamped regression head is almost certainly unintended
# -- flip FINAL_RELU if the reference LinBnReLu applies ReLU unconditionally).
FINAL_RELU = False


# ----------------------------------------------------------------------------
# Fused Pallas kernel
# ----------------------------------------------------------------------------
def make_fused_kernel(n_layers, T, BP, H, final_relu):
    """Builds the fused forward kernel.

    Row layout inside the kernel: r = t * BP + b  (time-major, batch padded to BP=8).
    Rows with b >= real batch are zero-padded garbage and are sliced away outside.
    """

    def kernel(*refs):
        x_ref = refs[0]                                     # (T*BP, D0)  f32
        layer_refs = refs[1:1 + 3 * n_layers]               # per layer: wih, whh, bias
        fc1w_ref, fc1b_ref, fc2w_ref, fc2b_ref = refs[1 + 3 * n_layers:5 + 3 * n_layers]
        out_ref = refs[5 + 3 * n_layers]                    # (T*BP, OUT_LANES) f32
        hseq_sc = refs[6 + 3 * n_layers]                    # (T*BP, H) f32 VMEM scratch

        x = x_ref[...].astype(jnp.float32)                  # (T*BP, D)

        for l in range(n_layers):
            wih = layer_refs[3 * l][...].astype(jnp.float32)       # (D, 4H)  (bf16 stored)
            whh = layer_refs[3 * l + 1][...].astype(jnp.float32)   # (H, 4H)
            bias = layer_refs[3 * l + 2][...]                      # (1, 4H)  f32

            # Hoisted input projection: one MXU pass over all time steps.
            gx = jnp.dot(x, wih, preferred_element_type=jnp.float32) + bias  # (T*BP, 4H)

            h = jnp.zeros((BP, H), jnp.float32)
            c = jnp.zeros((BP, H), jnp.float32)
            # Recurrence fully unrolled (T static); h/c live in vregs.
            for t in range(T):
                g = gx[t * BP:(t + 1) * BP, :] + jnp.dot(
                    h, whh, preferred_element_type=jnp.float32)              # (BP, 4H)
                # Gate columns pre-ordered [i, f, o, g]:
                #   one sigmoid over 3H contiguous lanes, one tanh over the last H lanes.
                sig = jax.nn.sigmoid(g[:, :3 * H])
                g_in = jnp.tanh(g[:, 3 * H:])
                i_g = sig[:, :H]
                f_g = sig[:, H:2 * H]
                o_g = sig[:, 2 * H:3 * H]
                c = f_g * c + i_g * g_in
                h = o_g * jnp.tanh(c)
                hseq_sc[t * BP:(t + 1) * BP, :] = h          # sublane-aligned (BP = 8) store

            # Residual concat + ReLU, fused (stays in VMEM / vregs).
            x = jnp.maximum(jnp.concatenate([hseq_sc[...], x], axis=-1), 0.0)

        # fc1: Linear + ReLU
        h1 = jnp.dot(x, fc1w_ref[...].astype(jnp.float32),
                     preferred_element_type=jnp.float32) + fc1b_ref[...]
        h1 = jnp.maximum(h1, 0.0)                            # (T*BP, FC_HIDDEN)

        # fc2 (Dout=1): broadcast-multiply + lane reduction (XLU) instead of a 1-lane
        # matmul; write a lane-padded output so stores are unmasked full-lane vst.
        w2 = fc2w_ref[...].astype(jnp.float32)               # (1, FC_HIDDEN)
        y = jnp.sum(h1 * w2, axis=-1, keepdims=True) + fc2b_ref[...]   # (T*BP, 1)
        if final_relu:
            y = jnp.maximum(y, 0.0)
        out_ref[...] = jnp.broadcast_to(y, out_ref.shape).astype(out_ref.dtype)

    return kernel


# ----------------------------------------------------------------------------
# Wrappers
# ----------------------------------------------------------------------------
def _prep_lstm_weights(w_ih, w_hh, b_ih, b_hh):
    """PyTorch layout -> kernel layout.

    - reorder gate blocks [i, f, g, o] -> [i, f, o, g]
    - transpose to (in, 4H)
    - store matmul weights in bf16 (f32 accumulation in the kernel), biases in f32
    """
    H = w_hh.shape[1]

    def reorder(m):                                  # m: (4H, X), gate blocks of H rows
        i, f, g, o = jnp.split(m, 4, axis=0)
        return jnp.concatenate([i, f, o, g], axis=0)

    wih_t = jnp.transpose(reorder(w_ih)).astype(jnp.bfloat16)   # (D, 4H)
    whh_t = jnp.transpose(reorder(w_hh)).astype(jnp.bfloat16)   # (H, 4H)
    bias = reorder((b_ih + b_hh).reshape(4, H)).reshape(1, 4 * H).astype(jnp.float32)
    return wih_t, whh_t, bias


def fused_forward(params, x_flat, T, BP):
    """x_flat: (T*BP, D0) time-major, batch padded to BP.  Returns (T*BP, OUT_LANES)."""
    n_layers = len(params["rnn"])
    kernel = make_fused_kernel(n_layers, T, BP, HIDDEN, FINAL_RELU)

    args = [x_flat.astype(jnp.float32)]
    for (w_ih, w_hh, b_ih, b_hh) in params["rnn"]:
        wih_t, whh_t, bias = _prep_lstm_weights(w_ih, w_hh, b_ih, b_hh)
        args.extend([wih_t, whh_t, bias])

    fc1_w = params["fc1_w"].astype(jnp.bfloat16)                       # (80, 512)
    fc1_b = params["fc1_b"].reshape(1, FC_HIDDEN).astype(jnp.float32)  # (1, 512)
    fc2_w = jnp.transpose(params["fc2_w"]).astype(jnp.bfloat16)        # (1, 512)
    fc2_b = params["fc2_b"].reshape(1, OUTPUT_DIM).astype(jnp.float32) # (1, 1)
    args.extend([fc1_w, fc1_b, fc2_w, fc2_b])

    in_specs = [pl.BlockSpec(a.shape, lambda i: (0, 0)) for a in args]

    return pl.pallas_call(
        kernel,
        out_shape=jax.ShapeDtypeStruct((T * BP, OUT_LANES), jnp.float32),
        grid_spec=pltpu.PrefetchScalarGridSpec(
            num_scalar_prefetch=0,
            grid=(1,),
            in_specs=in_specs,
            out_specs=pl.BlockSpec((T * BP, OUT_LANES), lambda i: (0, 0)),
            scratch_shapes=[pltpu.VMEM((T * BP, HIDDEN), jnp.float32)],
        ),
        compiler_params=pltpu.CompilerParams(
            dimension_semantics=("arbitrary",)),
    )(*args)


def init_params(key):
    params = {}
    keys = jax.random.split(key, 32)
    kiter = iter(keys)

    # Embedding tables (PyTorch nn.Embedding default: N(0, 1))
    params["emb"] = [
        jax.random.normal(next(kiter), (n, d), dtype=jnp.float32)
        for n, d in zip(EMB_NUM_EMBEDDINGS, EMB_DIM)
    ]

    # LSTM layers, PyTorch param shapes: w_ih (4H, D), w_hh (4H, H), b_ih/b_hh (4H,)
    params["rnn"] = []
    in_dim = D0
    for _ in range(N_RNN_LAYERS):
        bound = 1.0 / jnp.sqrt(HIDDEN)
        w_ih = jax.random.uniform(next(kiter), (4 * HIDDEN, in_dim),
                                  minval=-bound, maxval=bound, dtype=jnp.float32)
        w_hh = jax.random.uniform(next(kiter), (4 * HIDDEN, HIDDEN),
                                  minval=-bound, maxval=bound, dtype=jnp.float32)
        b_ih = jax.random.uniform(next(kiter), (4 * HIDDEN,),
                                  minval=-bound, maxval=bound, dtype=jnp.float32)
        b_hh = jax.random.uniform(next(kiter), (4 * HIDDEN,),
                                  minval=-bound, maxval=bound, dtype=jnp.float32)
        params["rnn"].append((w_ih, w_hh, b_ih, b_hh))
        in_dim = HIDDEN + in_dim          # residual concat widens the input

    # FC head: LinBnReLu(FC_INPUT_SIZE, 512, is_bn=False, dropout=0) -> LinBnReLu(512, OUTPUT_DIM)
    params["fc1_w"] = jax.random.uniform(next(kiter), (FC_INPUT_SIZE, FC_HIDDEN),
                                         minval=-0.05, maxval=0.05, dtype=jnp.float32)
    params["fc1_b"] = jnp.zeros((FC_HIDDEN,), jnp.float32)
    params["fc2_w"] = jax.random.uniform(next(kiter), (FC_HIDDEN, OUTPUT_DIM),
                                         minval=-0.05, maxval=0.05, dtype=jnp.float32)
    params["fc2_b"] = jnp.zeros((OUTPUT_DIM,), jnp.float32)
    return params


@jax.jit
def lstm_model_regression_v2(params, x_cat, x_num):
    """x_cat: (B, T, n_cat) int32, x_num: (B, T, n_num) float32 -> (B, T, OUTPUT_DIM)."""
    B, T, _ = x_num.shape
    BP = max(8, ((B + 7) // 8) * 8)          # pad batch to >= 8 sublane rows

    # Embedding lookup (glue, gather stays in plain JAX)
    embs = [params["emb"][i][x_cat[:, :, i]] for i in range(len(params["emb"]))]
    x = jnp.concatenate([x_num] + embs, axis=-1)                  # (B, T, D0)

    # Time-major, batch-padded flat rows (r = t*BP + b) for the fused kernel.
    x_t = jnp.transpose(x, (1, 0, 2))                             # (T, B, D0)
    x_t = jnp.pad(x_t, ((0, 0), (0, BP - B), (0, 0)))             # (T, BP, D0)
    x_flat = x_t.reshape(T * BP, D0)

    out2d = fused_forward(params, x_flat, T, BP)                  # (T*BP, OUT_LANES)
    y = out2d.reshape(T, BP, OUT_LANES)[:, :B, :OUTPUT_DIM]       # (T, B, OUTPUT_DIM)
    return jnp.transpose(y, (1, 0, 2))                            # (B, T, OUTPUT_DIM)


if __name__ == "__main__":
    key = jax.random.PRNGKey(0)
    k_params, k_cat, k_num = jax.random.split(key, 3)

    params = init_params(k_params)

    cat_keys = jax.random.split(k_cat, len(EMB_NUM_EMBEDDINGS))
    x_cat = jnp.stack(
        [jax.random.randint(cat_keys[i], (BATCH, SEQ), 0, EMB_NUM_EMBEDDINGS[i])
         for i in range(len(EMB_NUM_EMBEDDINGS))],
        axis=-1).astype(jnp.int32)                                # (B, T, 3)
    x_num = jax.random.normal(k_num, (BATCH, SEQ, N_NUM), dtype=jnp.float32)

    out = lstm_model_regression_v2(params, x_cat, x_num)
    out = jax.block_until_ready(out)
    assert out.shape == (BATCH, SEQ, OUTPUT_DIM), out.shape
    print("KERNEL_OK")
</pallas_src>

<mosaic_0001>
module attributes {stable_mosaic.version = 11 : i64} {
  func.func @kernel(%arg0: i32, %arg1: memref<64x16xf32, #tpu.memory_space<vmem>>, %arg2: memref<16x128xbf16, #tpu.memory_space<vmem>>, %arg3: memref<32x128xbf16, #tpu.memory_space<vmem>>, %arg4: memref<1x128xf32, #tpu.memory_space<vmem>>, %arg5: memref<48x128xbf16, #tpu.memory_space<vmem>>, %arg6: memref<32x128xbf16, #tpu.memory_space<vmem>>, %arg7: memref<1x128xf32, #tpu.memory_space<vmem>>, %arg8: memref<80x512xbf16, #tpu.memory_space<vmem>>, %arg9: memref<1x512xf32, #tpu.memory_space<vmem>>, %arg10: memref<1x512xbf16, #tpu.memory_space<vmem>>, %arg11: memref<1x1xf32, #tpu.memory_space<vmem>>, %arg12: memref<64x128xf32, #tpu.memory_space<vmem>>, %arg13: memref<64x32xf32, #tpu.memory_space<vmem>>) attributes {dimension_semantics = [#tpu.dimension_semantics<arbitrary>], iteration_bounds = array<i64: 1>, scalar_prefetch = 0 : i64, scratch_operands = 1 : i64, tpu.core_type = #tpu.core_type<tc>, window_params = [{pipeline_mode = #tpu.pipeline_mode<synchronous>, transform_indices = @transform_0, window_bounds = array<i64: 64, 16>}, {pipeline_mode = #tpu.pipeline_mode<synchronous>, transform_indices = @transform_1, window_bounds = array<i64: 16, 128>}, {pipeline_mode = #tpu.pipeline_mode<synchronous>, transform_indices = @transform_2, window_bounds = array<i64: 32, 128>}, {pipeline_mode = #tpu.pipeline_mode<synchronous>, transform_indices = @transform_3, window_bounds = array<i64: 1, 128>}, {pipeline_mode = #tpu.pipeline_mode<synchronous>, transform_indices = @transform_4, window_bounds = array<i64: 48, 128>}, {pipeline_mode = #tpu.pipeline_mode<synchronous>, transform_indices = @transform_5, window_bounds = array<i64: 32, 128>}, {pipeline_mode = #tpu.pipeline_mode<synchronous>, transform_indices = @transform_6, window_bounds = array<i64: 1, 128>}, {pipeline_mode = #tpu.pipeline_mode<synchronous>, transform_indices = @transform_7, window_bounds = array<i64: 80, 512>}, {pipeline_mode = #tpu.pipeline_mode<synchronous>, transform_indices = @transform_8, window_bounds = array<i64: 1, 512>}, {pipeline_mode = #tpu.pipeline_mode<synchronous>, transform_indices = @transform_9, window_bounds = array<i64: 1, 512>}, {pipeline_mode = #tpu.pipeline_mode<synchronous>, transform_indices = @transform_10, window_bounds = array<i64: 1, 1>}, {pipeline_mode = #tpu.pipeline_mode<synchronous>, transform_indices = @transform_11, window_bounds = array<i64: 64, 128>}]} {
    %c0 = arith.constant 0 : index
    %c0_0 = arith.constant 0 : index
    %0 = vector.load %arg1[%c0, %c0_0] : memref<64x16xf32, #tpu.memory_space<vmem>>, vector<64x16xf32>
    %c0_1 = arith.constant 0 : index
    %c0_2 = arith.constant 0 : index
    %1 = vector.load %arg2[%c0_1, %c0_2] : memref<16x128xbf16, #tpu.memory_space<vmem>>, vector<16x128xbf16>
    %2 = arith.extf %1 : vector<16x128xbf16> to vector<16x128xf32>
    %c0_3 = arith.constant 0 : index
    %c0_4 = arith.constant 0 : index
    %3 = vector.load %arg3[%c0_3, %c0_4] : memref<32x128xbf16, #tpu.memory_space<vmem>>, vector<32x128xbf16>
    %4 = arith.extf %3 : vector<32x128xbf16> to vector<32x128xf32>
    %c0_5 = arith.constant 0 : index
    %c0_6 = arith.constant 0 : index
    %5 = vector.load %arg4[%c0_5, %c0_6] : memref<1x128xf32, #tpu.memory_space<vmem>>, vector<1x128xf32>
    %cst = arith.constant dense<0.000000e+00> : vector<64x128xf32>
    %6 = tpu.matmul %0, %2, %cst {dimension_numbers = #tpu.dot_dimension_numbers<[1], [0], [0], [1], [0, 0, 1, 1], [], []>} : vector<64x16xf32>, vector<16x128xf32>, vector<64x128xf32> -> vector<64x128xf32>
    %7 = vector.broadcast %5 : vector<1x128xf32> to vector<64x128xf32>
    %8 = arith.addf %6, %7 : vector<64x128xf32>
    %cst_7 = arith.constant 0.000000e+00 : f32
    %9 = vector.broadcast %cst_7 : f32 to vector<8x32xf32>
    %cst_8 = arith.constant 0.000000e+00 : f32
    %10 = vector.broadcast %cst_8 : f32 to vector<8x32xf32>
    %11 = vector.extract_strided_slice %8 {offsets = [0, 0], sizes = [8, 128], strides = [1, 1]} : vector<64x128xf32> to vector<8x128xf32>
    %cst_9 = arith.constant dense<0.000000e+00> : vector<8x128xf32>
    %12 = tpu.matmul %9, %4, %cst_9 {dimension_numbers = #tpu.dot_dimension_numbers<[1], [0], [0], [1], [0, 0, 1, 1], [], []>} : vector<8x32xf32>, vector<32x128xf32>, vector<8x128xf32> -> vector<8x128xf32>
    %13 = arith.addf %11, %12 : vector<8x128xf32>
    %14 = vector.extract_strided_slice %13 {offsets = [0, 0], sizes = [8, 96], strides = [1, 1]} : vector<8x128xf32> to vector<8x96xf32>
    %15 = arith.negf %14 : vector<8x96xf32>
    %16 = math.exp %15 : vector<8x96xf32>
    %cst_10 = arith.constant 1.000000e+00 : f32
    %17 = vector.broadcast %cst_10 : f32 to vector<8x96xf32>
    %18 = arith.addf %17, %16 : vector<8x96xf32>
    %19 = arith.divf %17, %18 : vector<8x96xf32>
    %20 = vector.extract_strided_slice %13 {offsets = [0, 96], sizes = [8, 32], strides = [1, 1]} : vector<8x128xf32> to vector<8x32xf32>
    %21 = math.tanh %20 : vector<8x32xf32>
    %22 = vector.extract_strided_slice %19 {offsets = [0, 0], sizes = [8, 32], strides = [1, 1]} : vector<8x96xf32> to vector<8x32xf32>
    %23 = vector.extract_strided_slice %19 {offsets = [0, 32], sizes = [8, 32], strides = [1, 1]} : vector<8x96xf32> to vector<8x32xf32>
    %24 = vector.extract_strided_slice %19 {offsets = [0, 64], sizes = [8, 32], strides = [1, 1]} : vector<8x96xf32> to vector<8x32xf32>
    %25 = arith.mulf %23, %10 : vector<8x32xf32>
    %26 = arith.mulf %22, %21 : vector<8x32xf32>
    %27 = arith.addf %25, %26 : vector<8x32xf32>
    %28 = math.tanh %27 : vector<8x32xf32>
    %29 = arith.mulf %24, %28 : vector<8x32xf32>
    %c0_11 = arith.constant 0 : index
    %c0_12 = arith.constant 0 : index
    %30 = vector.load %arg13[%c0_11, %c0_12] : memref<64x32xf32, #tpu.memory_space<vmem>>, vector<8x32xf32>
    tpu.vector_store %arg13[%c0_11, %c0_12], %29 {strides = array<i32>} : memref<64x32xf32, #tpu.memory_space<vmem>>, vector<8x32xf32>,
    %31 = vector.extract_strided_slice %8 {offsets = [8, 0], sizes = [8, 128], strides = [1, 1]} : vector<64x128xf32> to vector<8x128xf32>
    %cst_13 = arith.constant dense<0.000000e+00> : vector<8x128xf32>
    %32 = tpu.matmul %29, %4, %cst_13 {dimension_numbers = #tpu.dot_dimension_numbers<[1], [0], [0], [1], [0, 0, 1, 1], [], []>} : vector<8x32xf32>, vector<32x128xf32>, vector<8x128xf32> -> vector<8x128xf32>
    %33 = arith.addf %31, %32 : vector<8x128xf32>
    %34 = vector.extract_strided_slice %33 {offsets = [0, 0], sizes = [8, 96], strides = [1, 1]} : vector<8x128xf32> to vector<8x96xf32>
    %35 = arith.negf %34 : vector<8x96xf32>
    %36 = math.exp %35 : vector<8x96xf32>
    %cst_14 = arith.constant 1.000000e+00 : f32
    %37 = vector.broadcast %cst_14 : f32 to vector<8x96xf32>
    %38 = arith.addf %37, %36 : vector<8x96xf32>
    %39 = arith.divf %37, %38 : vector<8x96xf32>
    %40 = vector.extract_strided_slice %33 {offsets = [0, 96], sizes = [8, 32], strides = [1, 1]} : vector<8x128xf32> to vector<8x32xf32>
    %41 = math.tanh %40 : vector<8x32xf32>
    %42 = vector.extract_strided_slice %39 {offsets = [0, 0], sizes = [8, 32], strides = [1, 1]} : vector<8x96xf32> to vector<8x32xf32>
    %43 = vector.extract_strided_slice %39 {offsets = [0, 32], sizes = [8, 32], strides = [1, 1]} : vector<8x96xf32> to vector<8x32xf32>
    %44 = vector.extract_strided_slice %39 {offsets = [0, 64], sizes = [8, 32], strides = [1, 1]} : vector<8x96xf32> to vector<8x32xf32>
    %45 = arith.mulf %43, %27 : vector<8x32xf32>
    %46 = arith.mulf %42, %41 : vector<8x32xf32>
    %47 = arith.addf %45, %46 : vector<8x32xf32>
    %48 = math.tanh %47 : vector<8x32xf32>
    %49 = arith.mulf %44, %48 : vector<8x32xf32>
    %c8 = arith.constant 8 : index
    %c0_15 = arith.constant 0 : index
    %50 = vector.load %arg13[%c8, %c0_15] : memref<64x32xf32, #tpu.memory_space<vmem>>, vector<8x32xf32>
    tpu.vector_store %arg13[%c8, %c0_15], %49 {strides = array<i32>} : memref<64x32xf32, #tpu.memory_space<vmem>>, vector<8x32xf32>,
    %51 = vector.extract_strided_slice %8 {offsets = [16, 0], sizes = [8, 128], strides = [1, 1]} : vector<64x128xf32> to vector<8x128xf32>
    %cst_16 = arith.constant dense<0.000000e+00> : vector<8x128xf32>
    %52 = tpu.matmul %49, %4, %cst_16 {dimension_numbers = #tpu.dot_dimension_numbers<[1], [0], [0], [1], [0, 0, 1, 1], [], []>} : vector<8x32xf32>, vector<32x128xf32>, vector<8x128xf32> -> vector<8x128xf32>
    %53 = arith.addf %51, %52 : vector<8x128xf32>
    %54 = vector.extract_strided_slice %53 {offsets = [0, 0], sizes = [8, 96], strides = [1, 1]} : vector<8x128xf32> to vector<8x96xf32>
    %55 = arith.negf %54 : vector<8x96xf32>
    %56 = math.exp %55 : vector<8x96xf32>
    %cst_17 = arith.constant 1.000000e+00 : f32
    %57 = vector.broadcast %cst_17 : f32 to vector<8x96xf32>
    %58 = arith.addf %57, %56 : vector<8x96xf32>
    %59 = arith.divf %57, %58 : vector<8x96xf32>
    %60 = vector.extract_strided_slice %53 {offsets = [0, 96], sizes = [8, 32], strides = [1, 1]} : vector<8x128xf32> to vector<8x32xf32>
    %61 = math.tanh %60 : vector<8x32xf32>
    %62 = vector.extract_strided_slice %59 {offsets = [0, 0], sizes = [8, 32], strides = [1, 1]} : vector<8x96xf32> to vector<8x32xf32>
    %63 = vector.extract_strided_slice %59 {offsets = [0, 32], sizes = [8, 32], strides = [1, 1]} : vector<8x96xf32> to vector<8x32xf32>
    %64 = vector.extract_strided_slice %59 {offsets = [0, 64], sizes = [8, 32], strides = [1, 1]} : vector<8x96xf32> to vector<8x32xf32>
    %65 = arith.mulf %63, %47 : vector<8x32xf32>
    %66 = arith.mulf %62, %61 : vector<8x32xf32>
    %67 = arith.addf %65, %66 : vector<8x32xf32>
    %68 = math.tanh %67 : vector<8x32xf32>
    %69 = arith.mulf %64, %68 : vector<8x32xf32>
    %c16 = arith.constant 16 : index
    %c0_18 = arith.constant 0 : index
    %70 = vector.load %arg13[%c16, %c0_18] : memref<64x32xf32, #tpu.memory_space<vmem>>, vector<8x32xf32>
    tpu.vector_store %arg13[%c16, %c0_18], %69 {strides = array<i32>} : memref<64x32xf32, #tpu.memory_space<vmem>>, vector<8x32xf32>,
    %71 = vector.extract_strided_slice %8 {offsets = [24, 0], sizes = [8, 128], strides = [1, 1]} : vector<64x128xf32> to vector<8x128xf32>
    %cst_19 = arith.constant dense<0.000000e+00> : vector<8x128xf32>
    %72 = tpu.matmul %69, %4, %cst_19 {dimension_numbers = #tpu.dot_dimension_numbers<[1], [0], [0], [1], [0, 0, 1, 1], [], []>} : vector<8x32xf32>, vector<32x128xf32>, vector<8x128xf32> -> vector<8x128xf32>
    %73 = arith.addf %71, %72 : vector<8x128xf32>
    %74 = vector.extract_strided_slice %73 {offsets = [0, 0], sizes = [8, 96], strides = [1, 1]} : vector<8x128xf32> to vector<8x96xf32>
    %75 = arith.negf %74 : vector<8x96xf32>
    %76 = math.exp %75 : vector<8x96xf32>
    %cst_20 = arith.constant 1.000000e+00 : f32
    %77 = vector.broadcast %cst_20 : f32 to vector<8x96xf32>
    %78 = arith.addf %77, %76 : vector<8x96xf32>
    %79 = arith.divf %77, %78 : vector<8x96xf32>
    %80 = vector.extract_strided_slice %73 {offsets = [0, 96], sizes = [8, 32], strides = [1, 1]} : vector<8x128xf32> to vector<8x32xf32>
    %81 = math.tanh %80 : vector<8x32xf32>
    %82 = vector.extract_strided_slice %79 {offsets = [0, 0], sizes = [8, 32], strides = [1, 1]} : vector<8x96xf32> to vector<8x32xf32>
    %83 = vector.extract_strided_slice %79 {offsets = [0, 32], sizes = [8, 32], strides = [1, 1]} : vector<8x96xf32> to vector<8x32xf32>
    %84 = vector.extract_strided_slice %79 {offsets = [0, 64], sizes = [8, 32], strides = [1, 1]} : vector<8x96xf32> to vector<8x32xf32>
    %85 = arith.mulf %83, %67 : vector<8x32xf32>
    %86 = arith.mulf %82, %81 : vector<8x32xf32>
    %87 = arith.addf %85, %86 : vector<8x32xf32>
    %88 = math.tanh %87 : vector<8x32xf32>
    %89 = arith.mulf %84, %88 : vector<8x32xf32>
    %c24 = arith.constant 24 : index
    %c0_21 = arith.constant 0 : index
    %90 = vector.load %arg13[%c24, %c0_21] : memref<64x32xf32, #tpu.memory_space<vmem>>, vector<8x32xf32>
    tpu.vector_store %arg13[%c24, %c0_21], %89 {strides = array<i32>} : memref<64x32xf32, #tpu.memory_space<vmem>>, vector<8x32xf32>,
    %91 = vector.extract_strided_slice %8 {offsets = [32, 0], sizes = [8, 128], strides = [1, 1]} : vector<64x128xf32> to vector<8x128xf32>
    %cst_22 = arith.constant dense<0.000000e+00> : vector<8x128xf32>
    %92 = tpu.matmul %89, %4, %cst_22 {dimension_numbers = #tpu.dot_dimension_numbers<[1], [0], [0], [1], [0, 0, 1, 1], [], []>} : vector<8x32xf32>, vector<32x128xf32>, vector<8x128xf32> -> vector<8x128xf32>
    %93 = arith.addf %91, %92 : vector<8x128xf32>
    %94 = vector.extract_strided_slice %93 {offsets = [0, 0], sizes = [8, 96], strides = [1, 1]} : vector<8x128xf32> to vector<8x96xf32>
    %95 = arith.negf %94 : vector<8x96xf32>
    %96 = math.exp %95 : vector<8x96xf32>
    %cst_23 = arith.constant 1.000000e+00 : f32
    %97 = vector.broadcast %cst_23 : f32 to vector<8x96xf32>
    %98 = arith.addf %97, %96 : vector<8x96xf32>
    %99 = arith.divf %97, %98 : vector<8x96xf32>
    %100 = vector.extract_strided_slice %93 {offsets = [0, 96], sizes = [8, 32], strides = [1, 1]} : vector<8x128xf32> to vector<8x32xf32>
    %101 = math.tanh %100 : vector<8x32xf32>
    %102 = vector.extract_strided_slice %99 {offsets = [0, 0], sizes = [8, 32], strides = [1, 1]} : vector<8x96xf32> to vector<8x32xf32>
    %103 = vector.extract_strided_slice %99 {offsets = [0, 32], sizes = [8, 32], strides = [1, 1]} : vector<8x96xf32> to vector<8x32xf32>
    %104 = vector.extract_strided_slice %99 {offsets = [0, 64], sizes = [8, 32], strides = [1, 1]} : vector<8x96xf32> to vector<8x32xf32>
    %105 = arith.mulf %103, %87 : vector<8x32xf32>
    %106 = arith.mulf %102, %101 : vector<8x32xf32>
    %107 = arith.addf %105, %106 : vector<8x32xf32>
    %108 = math.tanh %107 : vector<8x32xf32>
    %109 = arith.mulf %104, %108 : vector<8x32xf32>
    %c32 = arith.constant 32 : index
    %c0_24 = arith.constant 0 : index
    %110 = vector.load %arg13[%c32, %c0_24] : memref<64x32xf32, #tpu.memory_space<vmem>>, vector<8x32xf32>
    tpu.vector_store %arg13[%c32, %c0_24], %109 {strides = array<i32>} : memref<64x32xf32, #tpu.memory_space<vmem>>, vector<8x32xf32>,
    %111 = vector.extract_strided_slice %8 {offsets = [40, 0], sizes = [8, 128], strides = [1, 1]} : vector<64x128xf32> to vector<8x128xf32>
    %cst_25 = arith.constant dense<0.000000e+00> : vector<8x128xf32>
    %112 = tpu.matmul %109, %4, %cst_25 {dimension_numbers = #tpu.dot_dimension_numbers<[1], [0], [0], [1], [0, 0, 1, 1], [], []>} : vector<8x32xf32>, vector<32x128xf32>, vector<8x128xf32> -> vector<8x128xf32>
    %113 = arith.addf %111, %112 : vector<8x128xf32>
    %114 = vector.extract_strided_slice %113 {offsets = [0, 0], sizes = [8, 96], strides = [1, 1]} : vector<8x128xf32> to vector<8x96xf32>
    %115 = arith.negf %114 : vector<8x96xf32>
    %116 = math.exp %115 : vector<8x96xf32>
    %cst_26 = arith.constant 1.000000e+00 : f32
    %117 = vector.broadcast %cst_26 : f32 to vector<8x96xf32>
    %118 = arith.addf %117, %116 : vector<8x96xf32>
    %119 = arith.divf %117, %118 : vector<8x96xf32>
    %120 = vector.extract_strided_slice %113 {offsets = [0, 96], sizes = [8, 32], strides = [1, 1]} : vector<8x128xf32> to vector<8x32xf32>
    %121 = math.tanh %120 : vector<8x32xf32>
    %122 = vector.extract_strided_slice %119 {offsets = [0, 0], sizes = [8, 32], strides = [1, 1]} : vector<8x96xf32> to vector<8x32xf32>
    %123 = vector.extract_strided_slice %119 {offsets = [0, 32], sizes = [8, 32], strides = [1, 1]} : vector<8x96xf32> to vector<8x32xf32>
    %124 = vector.extract_strided_slice %119 {offsets = [0, 64], sizes = [8, 32], strides = [1, 1]} : vector<8x96xf32> to vector<8x32xf32>
    %125 = arith.mulf %123, %107 : vector<8x32xf32>
    %126 = arith.mulf %122, %121 : vector<8x32xf32>
    %127 = arith.addf %125, %126 : vector<8x32xf32>
    %128 = math.tanh %127 : vector<8x32xf32>
    %129 = arith.mulf %124, %128 : vector<8x32xf32>
    %c40 = arith.constant 40 : index
    %c0_27 = arith.constant 0 : index
    %130 = vector.load %arg13[%c40, %c0_27] : memref<64x32xf32, #tpu.memory_space<vmem>>, vector<8x32xf32>
    tpu.vector_store %arg13[%c40, %c0_27], %129 {strides = array<i32>} : memref<64x32xf32, #tpu.memory_space<vmem>>, vector<8x32xf32>,
    %131 = vector.extract_strided_slice %8 {offsets = [48, 0], sizes = [8, 128], strides = [1, 1]} : vector<64x128xf32> to vector<8x128xf32>
    %cst_28 = arith.constant dense<0.000000e+00> : vector<8x128xf32>
    %132 = tpu.matmul %129, %4, %cst_28 {dimension_numbers = #tpu.dot_dimension_numbers<[1], [0], [0], [1], [0, 0, 1, 1], [], []>} : vector<8x32xf32>, vector<32x128xf32>, vector<8x128xf32> -> vector<8x128xf32>
    %133 = arith.addf %131, %132 : vector<8x128xf32>
    %134 = vector.extract_strided_slice %133 {offsets = [0, 0], sizes = [8, 96], strides = [1, 1]} : vector<8x128xf32> to vector<8x96xf32>
    %135 = arith.negf %134 : vector<8x96xf32>
    %136 = math.exp %135 : vector<8x96xf32>
    %cst_29 = arith.constant 1.000000e+00 : f32
    %137 = vector.broadcast %cst_29 : f32 to vector<8x96xf32>
    %138 = arith.addf %137, %136 : vector<8x96xf32>
    %139 = arith.divf %137, %138 : vector<8x96xf32>
    %140 = vector.extract_strided_slice %133 {offsets = [0, 96], sizes = [8, 32], strides = [1, 1]} : vector<8x128xf32> to vector<8x32xf32>
    %141 = math.tanh %140 : vector<8x32xf32>
    %142 = vector.extract_strided_slice %139 {offsets = [0, 0], sizes = [8, 32], strides = [1, 1]} : vector<8x96xf32> to vector<8x32xf32>
    %143 = vector.extract_strided_slice %139 {offsets = [0, 32], sizes = [8, 32], strides = [1, 1]} : vector<8x96xf32> to vector<8x32xf32>
    %144 = vector.extract_strided_slice %139 {offsets = [0, 64], sizes = [8, 32], strides = [1, 1]} : vector<8x96xf32> to vector<8x32xf32>
    %145 = arith.mulf %143, %127 : vector<8x32xf32>
    %146 = arith.mulf %142, %141 : vector<8x32xf32>
    %147 = arith.addf %145, %146 : vector<8x32xf32>
    %148 = math.tanh %147 : vector<8x32xf32>
    %149 = arith.mulf %144, %148 : vector<8x32xf32>
    %c48 = arith.constant 48 : index
    %c0_30 = arith.constant 0 : index
    %150 = vector.load %arg13[%c48, %c0_30] : memref<64x32xf32, #tpu.memory_space<vmem>>, vector<8x32xf32>
    tpu.vector_store %arg13[%c48, %c0_30], %149 {strides = array<i32>} : memref<64x32xf32, #tpu.memory_space<vmem>>, vector<8x32xf32>,
    %151 = vector.extract_strided_slice %8 {offsets = [56, 0], sizes = [8, 128], strides = [1, 1]} : vector<64x128xf32> to vector<8x128xf32>
    %cst_31 = arith.constant dense<0.000000e+00> : vector<8x128xf32>
    %152 = tpu.matmul %149, %4, %cst_31 {dimension_numbers = #tpu.dot_dimension_numbers<[1], [0], [0], [1], [0, 0, 1, 1], [], []>} : vector<8x32xf32>, vector<32x128xf32>, vector<8x128xf32> -> vector<8x128xf32>
    %153 = arith.addf %151, %152 : vector<8x128xf32>
    %154 = vector.extract_strided_slice %153 {offsets = [0, 0], sizes = [8, 96], strides = [1, 1]} : vector<8x128xf32> to vector<8x96xf32>
    %155 = arith.negf %154 : vector<8x96xf32>
    %156 = math.exp %155 : vector<8x96xf32>
    %cst_32 = arith.constant 1.000000e+00 : f32
    %157 = vector.broadcast %cst_32 : f32 to vector<8x96xf32>
    %158 = arith.addf %157, %156 : vector<8x96xf32>
    %159 = arith.divf %157, %158 : vector<8x96xf32>
    %160 = vector.extract_strided_slice %153 {offsets = [0, 96], sizes = [8, 32], strides = [1, 1]} : vector<8x128xf32> to vector<8x32xf32>
    %161 = math.tanh %160 : vector<8x32xf32>
    %162 = vector.extract_strided_slice %159 {offsets = [0, 0], sizes = [8, 32], strides = [1, 1]} : vector<8x96xf32> to vector<8x32xf32>
    %163 = vector.extract_strided_slice %159 {offsets = [0, 32], sizes = [8, 32], strides = [1, 1]} : vector<8x96xf32> to vector<8x32xf32>
    %164 = vector.extract_strided_slice %159 {offsets = [0, 64], sizes = [8, 32], strides = [1, 1]} : vector<8x96xf32> to vector<8x32xf32>
    %165 = arith.mulf %163, %147 : vector<8x32xf32>
    %166 = arith.mulf %162, %161 : vector<8x32xf32>
    %167 = arith.addf %165, %166 : vector<8x32xf32>
    %168 = math.tanh %167 : vector<8x32xf32>
    %169 = arith.mulf %164, %168 : vector<8x32xf32>
    %c56 = arith.constant 56 : index
    %c0_33 = arith.constant 0 : index
    %170 = vector.load %arg13[%c56, %c0_33] : memref<64x32xf32, #tpu.memory_space<vmem>>, vector<8x32xf32>
    tpu.vector_store %arg13[%c56, %c0_33], %169 {strides = array<i32>} : memref<64x32xf32, #tpu.memory_space<vmem>>, vector<8x32xf32>,
    %c0_34 = arith.constant 0 : index
    %c0_35 = arith.constant 0 : index
    %171 = vector.load %arg13[%c0_34, %c0_35] : memref<64x32xf32, #tpu.memory_space<vmem>>, vector<64x32xf32>
    %172 = tpu.concatenate %171, %0 in 1 : vector<64x32xf32>, vector<64x16xf32> -> vector<64x48xf32>
    %cst_36 = arith.constant 0.000000e+00 : f32
    %173 = vector.broadcast %cst_36 : f32 to vector<64x48xf32>
    %174 = arith.maximumf %172, %173 : vector<64x48xf32>
    %c0_37 = arith.constant 0 : index
    %c0_38 = arith.constant 0 : index
    %175 = vector.load %arg5[%c0_37, %c0_38] : memref<48x128xbf16, #tpu.memory_space<vmem>>, vector<48x128xbf16>
    %176 = arith.extf %175 : vector<48x128xbf16> to vector<48x128xf32>
    %c0_39 = arith.constant 0 : index
    %c0_40 = arith.constant 0 : index
    %177 = vector.load %arg6[%c0_39, %c0_40] : memref<32x128xbf16, #tpu.memory_space<vmem>>, vector<32x128xbf16>
    %178 = arith.extf %177 : vector<32x128xbf16> to vector<32x128xf32>
    %c0_41 = arith.constant 0 : index
    %c0_42 = arith.constant 0 : index
    %179 = vector.load %arg7[%c0_41, %c0_42] : memref<1x128xf32, #tpu.memory_space<vmem>>, vector<1x128xf32>
    %cst_43 = arith.constant dense<0.000000e+00> : vector<64x128xf32>
    %180 = tpu.matmul %174, %176, %cst_43 {dimension_numbers = #tpu.dot_dimension_numbers<[1], [0], [0], [1], [0, 0, 1, 1], [], []>} : vector<64x48xf32>, vector<48x128xf32>, vector<64x128xf32> -> vector<64x128xf32>
    %181 = vector.broadcast %179 : vector<1x128xf32> to vector<64x128xf32>
    %182 = arith.addf %180, %181 : vector<64x128xf32>
    %cst_44 = arith.constant 0.000000e+00 : f32
    %183 = vector.broadcast %cst_44 : f32 to vector<8x32xf32>
    %cst_45 = arith.constant 0.000000e+00 : f32
    %184 = vector.broadcast %cst_45 : f32 to vector<8x32xf32>
    %185 = vector.extract_strided_slice %182 {offsets = [0, 0], sizes = [8, 128], strides = [1, 1]} : vector<64x128xf32> to vector<8x128xf32>
    %cst_46 = arith.constant dense<0.000000e+00> : vector<8x128xf32>
    %186 = tpu.matmul %183, %178, %cst_46 {dimension_numbers = #tpu.dot_dimension_numbers<[1], [0], [0], [1], [0, 0, 1, 1], [], []>} : vector<8x32xf32>, vector<32x128xf32>, vector<8x128xf32> -> vector<8x128xf32>
    %187 = arith.addf %185, %186 : vector<8x128xf32>
    %188 = vector.extract_strided_slice %187 {offsets = [0, 0], sizes = [8, 96], strides = [1, 1]} : vector<8x128xf32> to vector<8x96xf32>
    %189 = arith.negf %188 : vector<8x96xf32>
    %190 = math.exp %189 : vector<8x96xf32>
    %cst_47 = arith.constant 1.000000e+00 : f32
    %191 = vector.broadcast %cst_47 : f32 to vector<8x96xf32>
    %192 = arith.addf %191, %190 : vector<8x96xf32>
    %193 = arith.divf %191, %192 : vector<8x96xf32>
    %194 = vector.extract_strided_slice %187 {offsets = [0, 96], sizes = [8, 32], strides = [1, 1]} : vector<8x128xf32> to vector<8x32xf32>
    %195 = math.tanh %194 : vector<8x32xf32>
    %196 = vector.extract_strided_slice %193 {offsets = [0, 0], sizes = [8, 32], strides = [1, 1]} : vector<8x96xf32> to vector<8x32xf32>
    %197 = vector.extract_strided_slice %193 {offsets = [0, 32], sizes = [8, 32], strides = [1, 1]} : vector<8x96xf32> to vector<8x32xf32>
    %198 = vector.extract_strided_slice %193 {offsets = [0, 64], sizes = [8, 32], strides = [1, 1]} : vector<8x96xf32> to vector<8x32xf32>
    %199 = arith.mulf %197, %184 : vector<8x32xf32>
    %200 = arith.mulf %196, %195 : vector<8x32xf32>
    %201 = arith.addf %199, %200 : vector<8x32xf32>
    %202 = math.tanh %201 : vector<8x32xf32>
    %203 = arith.mulf %198, %202 : vector<8x32xf32>
    %c0_48 = arith.constant 0 : index
    %c0_49 = arith.constant 0 : index
    %204 = vector.load %arg13[%c0_48, %c0_49] : memref<64x32xf32, #tpu.memory_space<vmem>>, vector<8x32xf32>
    tpu.vector_store %arg13[%c0_48, %c0_49], %203 {strides = array<i32>} : memref<64x32xf32, #tpu.memory_space<vmem>>, vector<8x32xf32>,
    %205 = vector.extract_strided_slice %182 {offsets = [8, 0], sizes = [8, 128], strides = [1, 1]} : vector<64x128xf32> to vector<8x128xf32>
    %cst_50 = arith.constant dense<0.000000e+00> : vector<8x128xf32>
    %206 = tpu.matmul %203, %178, %cst_50 {dimension_numbers = #tpu.dot_dimension_numbers<[1], [0], [0], [1], [0, 0, 1, 1], [], []>} : vector<8x32xf32>, vector<32x128xf32>, vector<8x128xf32> -> vector<8x128xf32>
    %207 = arith.addf %205, %206 : vector<8x128xf32>
    %208 = vector.extract_strided_slice %207 {offsets = [0, 0], sizes = [8, 96], strides = [1, 1]} : vector<8x128xf32> to vector<8x96xf32>
    %209 = arith.negf %208 : vector<8x96xf32>
    %210 = math.exp %209 : vector<8x96xf32>
    %cst_51 = arith.constant 1.000000e+00 : f32
    %211 = vector.broadcast %cst_51 : f32 to vector<8x96xf32>
    %212 = arith.addf %211, %210 : vector<8x96xf32>
    %213 = arith.divf %211, %212 : vector<8x96xf32>
    %214 = vector.extract_strided_slice %207 {offsets = [0, 96], sizes = [8, 32], strides = [1, 1]} : vector<8x128xf32> to vector<8x32xf32>
    %215 = math.tanh %214 : vector<8x32xf32>
    %216 = vector.extract_strided_slice %213 {offsets = [0, 0], sizes = [8, 32], strides = [1, 1]} : vector<8x96xf32> to vector<8x32xf32>
    %217 = vector.extract_strided_slice %213 {offsets = [0, 32], sizes = [8, 32], strides = [1, 1]} : vector<8x96xf32> to vector<8x32xf32>
    %218 = vector.extract_strided_slice %213 {offsets = [0, 64], sizes = [8, 32], strides = [1, 1]} : vector<8x96xf32> to vector<8x32xf32>
    %219 = arith.mulf %217, %201 : vector<8x32xf32>
    %220 = arith.mulf %216, %215 : vector<8x32xf32>
    %221 = arith.addf %219, %220 : vector<8x32xf32>
    %222 = math.tanh %221 : vector<8x32xf32>
    %223 = arith.mulf %218, %222 : vector<8x32xf32>
    %c8_52 = arith.constant 8 : index
    %c0_53 = arith.constant 0 : index
    %224 = vector.load %arg13[%c8_52, %c0_53] : memref<64x32xf32, #tpu.memory_space<vmem>>, vector<8x32xf32>
    tpu.vector_store %arg13[%c8_52, %c0_53], %223 {strides = array<i32>} : memref<64x32xf32, #tpu.memory_space<vmem>>, vector<8x32xf32>,
    %225 = vector.extract_strided_slice %182 {offsets = [16, 0], sizes = [8, 128], strides = [1, 1]} : vector<64x128xf32> to vector<8x128xf32>
    %cst_54 = arith.constant dense<0.000000e+00> : vector<8x128xf32>
    %226 = tpu.matmul %223, %178, %cst_54 {dimension_numbers = #tpu.dot_dimension_numbers<[1], [0], [0], [1], [0, 0, 1, 1], [], []>} : vector<8x32xf32>, vector<32x128xf32>, vector<8x128xf32> -> vector<8x128xf32>
    %227 = arith.addf %225, %226 : vector<8x128xf32>
    %228 = vector.extract_strided_slice %227 {offsets = [0, 0], sizes = [8, 96], strides = [1, 1]} : vector<8x128xf32> to vector<8x96xf32>
    %229 = arith.negf %228 : vector<8x96xf32>
    %230 = math.exp %229 : vector<8x96xf32>
    %cst_55 = arith.constant 1.000000e+00 : f32
    %231 = vector.broadcast %cst_55 : f32 to vector<8x96xf32>
    %232 = arith.addf %231, %230 : vector<8x96xf32>
    %233 = arith.divf %231, %232 : vector<8x96xf32>
    %234 = vector.extract_strided_slice %227 {offsets = [0, 96], sizes = [8, 32], strides = [1, 1]} : vector<8x128xf32> to vector<8x32xf32>
    %235 = math.tanh %234 : vector<8x32xf32>
    %236 = vector.extract_strided_slice %233 {offsets = [0, 0], sizes = [8, 32], strides = [1, 1]} : vector<8x96xf32> to vector<8x32xf32>
    %237 = vector.extract_strided_slice %233 {offsets = [0, 32], sizes = [8, 32], strides = [1, 1]} : vector<8x96xf32> to vector<8x32xf32>
    %238 = vector.extract_strided_slice %233 {offsets = [0, 64], sizes = [8, 32], strides = [1, 1]} : vector<8x96xf32> to vector<8x32xf32>
    %239 = arith.mulf %237, %221 : vector<8x32xf32>
    %240 = arith.mulf %236, %235 : vector<8x32xf32>
    %241 = arith.addf %239, %240 : vector<8x32xf32>
    %242 = math.tanh %241 : vector<8x32xf32>
    %243 = arith.mulf %238, %242 : vector<8x32xf32>
    %c16_56 = arith.constant 16 : index
    %c0_57 = arith.constant 0 : index
    %244 = vector.load %arg13[%c16_56, %c0_57] : memref<64x32xf32, #tpu.memory_space<vmem>>, vector<8x32xf32>
    tpu.vector_store %arg13[%c16_56, %c0_57], %243 {strides = array<i32>} : memref<64x32xf32, #tpu.memory_space<vmem>>, vector<8x32xf32>,
    %245 = vector.extract_strided_slice %182 {offsets = [24, 0], sizes = [8, 128], strides = [1, 1]} : vector<64x128xf32> to vector<8x128xf32>
    %cst_58 = arith.constant dense<0.000000e+00> : vector<8x128xf32>
    %246 = tpu.matmul %243, %178, %cst_58 {dimension_numbers = #tpu.dot_dimension_numbers<[1], [0], [0], [1], [0, 0, 1, 1], [], []>} : vector<8x32xf32>, vector<32x128xf32>, vector<8x128xf32> -> vector<8x128xf32>
    %247 = arith.addf %245, %246 : vector<8x128xf32>
    %248 = vector.extract_strided_slice %247 {offsets = [0, 0], sizes = [8, 96], strides = [1, 1]} : vector<8x128xf32> to vector<8x96xf32>
    %249 = arith.negf %248 : vector<8x96xf32>
    %250 = math.exp %249 : vector<8x96xf32>
    %cst_59 = arith.constant 1.000000e+00 : f32
    %251 = vector.broadcast %cst_59 : f32 to vector<8x96xf32>
    %252 = arith.addf %251, %250 : vector<8x96xf32>
    %253 = arith.divf %251, %252 : vector<8x96xf32>
    %254 = vector.extract_strided_slice %247 {offsets = [0, 96], sizes = [8, 32], strides = [1, 1]} : vector<8x128xf32> to vector<8x32xf32>
    %255 = math.tanh %254 : vector<8x32xf32>
    %256 = vector.extract_strided_slice %253 {offsets = [0, 0], sizes = [8, 32], strides = [1, 1]} : vector<8x96xf32> to vector<8x32xf32>
    %257 = vector.extract_strided_slice %253 {offsets = [0, 32], sizes = [8, 32], strides = [1, 1]} : vector<8x96xf32> to vector<8x32xf32>
    %258 = vector.extract_strided_slice %253 {offsets = [0, 64], sizes = [8, 32], strides = [1, 1]} : vector<8x96xf32> to vector<8x32xf32>
    %259 = arith.mulf %257, %241 : vector<8x32xf32>
    %260 = arith.mulf %256, %255 : vector<8x32xf32>
    %261 = arith.addf %259, %260 : vector<8x32xf32>
    %262 = math.tanh %261 : vector<8x32xf32>
    %263 = arith.mulf %258, %262 : vector<8x32xf32>
    %c24_60 = arith.constant 24 : index
    %c0_61 = arith.constant 0 : index
    %264 = vector.load %arg13[%c24_60, %c0_61] : memref<64x32xf32, #tpu.memory_space<vmem>>, vector<8x32xf32>
    tpu.vector_store %arg13[%c24_60, %c0_61], %263 {strides = array<i32>} : memref<64x32xf32, #tpu.memory_space<vmem>>, vector<8x32xf32>,
    %265 = vector.extract_strided_slice %182 {offsets = [32, 0], sizes = [8, 128], strides = [1, 1]} : vector<64x128xf32> to vector<8x128xf32>
    %cst_62 = arith.constant dense<0.000000e+00> : vector<8x128xf32>
    %266 = tpu.matmul %263, %178, %cst_62 {dimension_numbers = #tpu.dot_dimension_numbers<[1], [0], [0], [1], [0, 0, 1, 1], [], []>} : vector<8x32xf32>, vector<32x128xf32>, vector<8x128xf32> -> vector<8x128xf32>
    %267 = arith.addf %265, %266 : vector<8x128xf32>
    %268 = vector.extract_strided_slice %267 {offsets = [0, 0], sizes = [8, 96], strides = [1, 1]} : vector<8x128xf32> to vector<8x96xf32>
    %269 = arith.negf %268 : vector<8x96xf32>
    %270 = math.exp %269 : vector<8x96xf32>
    %cst_63 = arith.constant 1.000000e+00 : f32
    %271 = vector.broadcast %cst_63 : f32 to vector<8x96xf32>
    %272 = arith.addf %271, %270 : vector<8x96xf32>
    %273 = arith.divf %271, %272 : vector<8x96xf32>
    %274 = vector.extract_strided_slice %267 {offsets = [0, 96], sizes = [8, 32], strides = [1, 1]} : vector<8x128xf32> to vector<8x32xf32>
    %275 = math.tanh %274 : vector<8x32xf32>
    %276 = vector.extract_strided_slice %273 {offsets = [0, 0], sizes = [8, 32], strides = [1, 1]} : vector<8x96xf32> to vector<8x32xf32>
    %277 = vector.extract_strided_slice %273 {offsets = [0, 32], sizes = [8, 32], strides = [1, 1]} : vector<8x96xf32> to vector<8x32xf32>
    %278 = vector.extract_strided_slice %273 {offsets = [0, 64], sizes = [8, 32], strides = [1, 1]} : vector<8x96xf32> to vector<8x32xf32>
    %279 = arith.mulf %277, %261 : vector<8x32xf32>
    %280 = arith.mulf %276, %275 : vector<8x32xf32>
    %281 = arith.addf %279, %280 : vector<8x32xf32>
    %282 = math.tanh %281 : vector<8x32xf32>
    %283 = arith.mulf %278, %282 : vector<8x32xf32>
    %c32_64 = arith.constant 32 : index
    %c0_65 = arith.constant 0 : index
    %284 = vector.load %arg13[%c32_64, %c0_65] : memref<64x32xf32, #tpu.memory_space<vmem>>, vector<8x32xf32>
    tpu.vector_store %arg13[%c32_64, %c0_65], %283 {strides = array<i32>} : memref<64x32xf32, #tpu.memory_space<vmem>>, vector<8x32xf32>,
    %285 = vector.extract_strided_slice %182 {offsets = [40, 0], sizes = [8, 128], strides = [1, 1]} : vector<64x128xf32> to vector<8x128xf32>
    %cst_66 = arith.constant dense<0.000000e+00> : vector<8x128xf32>
    %286 = tpu.matmul %283, %178, %cst_66 {dimension_numbers = #tpu.dot_dimension_numbers<[1], [0], [0], [1], [0, 0, 1, 1], [], []>} : vector<8x32xf32>, vector<32x128xf32>, vector<8x128xf32> -> vector<8x128xf32>
    %287 = arith.addf %285, %286 : vector<8x128xf32>
    %288 = vector.extract_strided_slice %287 {offsets = [0, 0], sizes = [8, 96], strides = [1, 1]} : vector<8x128xf32> to vector<8x96xf32>
    %289 = arith.negf %288 : vector<8x96xf32>
    %290 = math.exp %289 : vector<8x96xf32>
    %cst_67 = arith.constant 1.000000e+00 : f32
    %291 = vector.broadcast %cst_67 : f32 to vector<8x96xf32>
    %292 = arith.addf %291, %290 : vector<8x96xf32>
    %293 = arith.divf %291, %292 : vector<8x96xf32>
    %294 = vector.extract_strided_slice %287 {offsets = [0, 96], sizes = [8, 32], strides = [1, 1]} : vector<8x128xf32> to vector<8x32xf32>
    %295 = math.tanh %294 : vector<8x32xf32>
    %296 = vector.extract_strided_slice %293 {offsets = [0, 0], sizes = [8, 32], strides = [1, 1]} : vector<8x96xf32> to vector<8x32xf32>
    %297 = vector.extract_strided_slice %293 {offsets = [0, 32], sizes = [8, 32], strides = [1, 1]} : vector<8x96xf32> to vector<8x32xf32>
    %298 = vector.extract_strided_slice %293 {offsets = [0, 64], sizes = [8, 32], strides = [1, 1]} : vector<8x96xf32> to vector<8x32xf32>
    %299 = arith.mulf %297, %281 : vector<8x32xf32>
    %300 = arith.mulf %296, %295 : vector<8x32xf32>
    %301 = arith.addf %299, %300 : vector<8x32xf32>
    %302 = math.tanh %301 : vector<8x32xf32>
    %303 = arith.mulf %298, %302 : vector<8x32xf32>
    %c40_68 = arith.constant 40 : index
    %c0_69 = arith.constant 0 : index
    %304 = vector.load %arg13[%c40_68, %c0_69] : memref<64x32xf32, #tpu.memory_space<vmem>>, vector<8x32xf32>
    tpu.vector_store %arg13[%c40_68, %c0_69], %303 {strides = array<i32>} : memref<64x32xf32, #tpu.memory_space<vmem>>, vector<8x32xf32>,
    %305 = vector.extract_strided_slice %182 {offsets = [48, 0], sizes = [8, 128], strides = [1, 1]} : vector<64x128xf32> to vector<8x128xf32>
    %cst_70 = arith.constant dense<0.000000e+00> : vector<8x128xf32>
    %306 = tpu.matmul %303, %178, %cst_70 {dimension_numbers = #tpu.dot_dimension_numbers<[1], [0], [0], [1], [0, 0, 1, 1], [], []>} : vector<8x32xf32>, vector<32x128xf32>, vector<8x128xf32> -> vector<8x128xf32>
    %307 = arith.addf %305, %306 : vector<8x128xf32>
    %308 = vector.extract_strided_slice %307 {offsets = [0, 0], sizes = [8, 96], strides = [1, 1]} : vector<8x128xf32> to vector<8x96xf32>
    %309 = arith.negf %308 : vector<8x96xf32>
    %310 = math.exp %309 : vector<8x96xf32>
    %cst_71 = arith.constant 1.000000e+00 : f32
    %311 = vector.broadcast %cst_71 : f32 to vector<8x96xf32>
    %312 = arith.addf %311, %310 : vector<8x96xf32>
    %313 = arith.divf %311, %312 : vector<8x96xf32>
    %314 = vector.extract_strided_slice %307 {offsets = [0, 96], sizes = [8, 32], strides = [1, 1]} : vector<8x128xf32> to vector<8x32xf32>
    %315 = math.tanh %314 : vector<8x32xf32>
    %316 = vector.extract_strided_slice %313 {offsets = [0, 0], sizes = [8, 32], strides = [1, 1]} : vector<8x96xf32> to vector<8x32xf32>
    %317 = vector.extract_strided_slice %313 {offsets = [0, 32], sizes = [8, 32], strides = [1, 1]} : vector<8x96xf32> to vector<8x32xf32>
    %318 = vector.extract_strided_slice %313 {offsets = [0, 64], sizes = [8, 32], strides = [1, 1]} : vector<8x96xf32> to vector<8x32xf32>
    %319 = arith.mulf %317, %301 : vector<8x32xf32>
    %320 = arith.mulf %316, %315 : vector<8x32xf32>
    %321 = arith.addf %319, %320 : vector<8x32xf32>
    %322 = math.tanh %321 : vector<8x32xf32>
    %323 = arith.mulf %318, %322 : vector<8x32xf32>
    %c48_72 = arith.constant 48 : index
    %c0_73 = arith.constant 0 : index
    %324 = vector.load %arg13[%c48_72, %c0_73] : memref<64x32xf32, #tpu.memory_space<vmem>>, vector<8x32xf32>
    tpu.vector_store %arg13[%c48_72, %c0_73], %323 {strides = array<i32>} : memref<64x32xf32, #tpu.memory_space<vmem>>, vector<8x32xf32>,
    %325 = vector.extract_strided_slice %182 {offsets = [56, 0], sizes = [8, 128], strides = [1, 1]} : vector<64x128xf32> to vector<8x128xf32>
    %cst_74 = arith.constant dense<0.000000e+00> : vector<8x128xf32>
    %326 = tpu.matmul %323, %178, %cst_74 {dimension_numbers = #tpu.dot_dimension_numbers<[1], [0], [0], [1], [0, 0, 1, 1], [], []>} : vector<8x32xf32>, vector<32x128xf32>, vector<8x128xf32> -> vector<8x128xf32>
    %327 = arith.addf %325, %326 : vector<8x128xf32>
    %328 = vector.extract_strided_slice %327 {offsets = [0, 0], sizes = [8, 96], strides = [1, 1]} : vector<8x128xf32> to vector<8x96xf32>
    %329 = arith.negf %328 : vector<8x96xf32>
    %330 = math.exp %329 : vector<8x96xf32>
    %cst_75 = arith.constant 1.000000e+00 : f32
    %331 = vector.broadcast %cst_75 : f32 to vector<8x96xf32>
    %332 = arith.addf %331, %330 : vector<8x96xf32>
    %333 = arith.divf %331, %332 : vector<8x96xf32>
    %334 = vector.extract_strided_slice %327 {offsets = [0, 96], sizes = [8, 32], strides = [1, 1]} : vector<8x128xf32> to vector<8x32xf32>
    %335 = math.tanh %334 : vector<8x32xf32>
    %336 = vector.extract_strided_slice %333 {offsets = [0, 0], sizes = [8, 32], strides = [1, 1]} : vector<8x96xf32> to vector<8x32xf32>
    %337 = vector.extract_strided_slice %333 {offsets = [0, 32], sizes = [8, 32], strides = [1, 1]} : vector<8x96xf32> to vector<8x32xf32>
    %338 = vector.extract_strided_slice %333 {offsets = [0, 64], sizes = [8, 32], strides = [1, 1]} : vector<8x96xf32> to vector<8x32xf32>
    %339 = arith.mulf %337, %321 : vector<8x32xf32>
    %340 = arith.mulf %336, %335 : vector<8x32xf32>
    %341 = arith.addf %339, %340 : vector<8x32xf32>
    %342 = math.tanh %341 : vector<8x32xf32>
    %343 = arith.mulf %338, %342 : vector<8x32xf32>
    %c56_76 = arith.constant 56 : index
    %c0_77 = arith.constant 0 : index
    %344 = vector.load %arg13[%c56_76, %c0_77] : memref<64x32xf32, #tpu.memory_space<vmem>>, vector<8x32xf32>
    tpu.vector_store %arg13[%c56_76, %c0_77], %343 {strides = array<i32>} : memref<64x32xf32, #tpu.memory_space<vmem>>, vector<8x32xf32>,
    %c0_78 = arith.constant 0 : index
    %c0_79 = arith.constant 0 : index
    %345 = vector.load %arg13[%c0_78, %c0_79] : memref<64x32xf32, #tpu.memory_space<vmem>>, vector<64x32xf32>
    %346 = tpu.concatenate %345, %174 in 1 : vector<64x32xf32>, vector<64x48xf32> -> vector<64x80xf32>
    %cst_80 = arith.constant 0.000000e+00 : f32
    %347 = vector.broadcast %cst_80 : f32 to vector<64x80xf32>
    %348 = arith.maximumf %346, %347 : vector<64x80xf32>
    %c0_81 = arith.constant 0 : index
    %c0_82 = arith.constant 0 : index
    %349 = vector.load %arg8[%c0_81, %c0_82] : memref<80x512xbf16, #tpu.memory_space<vmem>>, vector<80x512xbf16>
    %350 = arith.extf %349 : vector<80x512xbf16> to vector<80x512xf32>
    %cst_83 = arith.constant dense<0.000000e+00> : vector<64x512xf32>
    %351 = tpu.matmul %348, %350, %cst_83 {dimension_numbers = #tpu.dot_dimension_numbers<[1], [0], [0], [1], [0, 0, 1, 1], [], []>} : vector<64x80xf32>, vector<80x512xf32>, vector<64x512xf32> -> vector<64x512xf32>
    %c0_84 = arith.constant 0 : index
    %c0_85 = arith.constant 0 : index
    %352 = vector.load %arg9[%c0_84, %c0_85] : memref<1x512xf32, #tpu.memory_space<vmem>>, vector<1x512xf32>
    %353 = vector.broadcast %352 : vector<1x512xf32> to vector<64x512xf32>
    %354 = arith.addf %351, %353 : vector<64x512xf32>
    %cst_86 = arith.constant 0.000000e+00 : f32
    %355 = vector.broadcast %cst_86 : f32 to vector<64x512xf32>
    %356 = arith.maximumf %354, %355 : vector<64x512xf32>
    %c0_87 = arith.constant 0 : index
    %c0_88 = arith.constant 0 : index
    %357 = vector.load %arg10[%c0_87, %c0_88] : memref<1x512xbf16, #tpu.memory_space<vmem>>, vector<1x512xbf16>
    %358 = arith.extf %357 : vector<1x512xbf16> to vector<1x512xf32>
    %359 = vector.broadcast %358 : vector<1x512xf32> to vector<64x512xf32>
    %360 = arith.mulf %356, %359 : vector<64x512xf32>
    %cst_89 = arith.constant dense<0.000000e+00> : vector<64xf32>
    %361 = vector.multi_reduction <add>, %360, %cst_89 [1] : vector<64x512xf32> to vector<64xf32>
    %362 = vector.shape_cast %361 : vector<64xf32> to vector<64x1xf32>
    %c0_90 = arith.constant 0 : index
    %c0_91 = arith.constant 0 : index
    %363 = vector.load %arg11[%c0_90, %c0_91] : memref<1x1xf32, #tpu.memory_space<vmem>>, vector<1x1xf32>
    %364 = vector.broadcast %363 : vector<1x1xf32> to vector<64x1xf32>
    %365 = arith.addf %362, %364 : vector<64x1xf32>
    %366 = vector.shape_cast %365 : vector<64x1xf32> to vector<64x1xf32>
    %367 = vector.broadcast %366 : vector<64x1xf32> to vector<64x128xf32>
    %c0_92 = arith.constant 0 : index
    %c0_93 = arith.constant 0 : index
    %368 = vector.load %arg12[%c0_92, %c0_93] : memref<64x128xf32, #tpu.memory_space<vmem>>, vector<64x128xf32>
    tpu.vector_store %arg12[%c0_92, %c0_93], %367 {strides = array<i32>} : memref<64x128xf32, #tpu.memory_space<vmem>>, vector<64x128xf32>,
    return
  }
  func.func @transform_0(%arg0: i32) -> (i32, i32) {
    %c0_i32 = arith.constant 0 : i32
    %c0_i32_0 = arith.constant 0 : i32
    %c0_i32_1 = arith.constant 0 : i32
    return %c0_i32, %c0_i32_0 : i32, i32
  }
  func.func @transform_1(%arg0: i32) -> (i32, i32) {
    %c0_i32 = arith.constant 0 : i32
    %c0_i32_0 = arith.constant 0 : i32
    %c0_i32_1 = arith.constant 0 : i32
    return %c0_i32, %c0_i32_0 : i32, i32
  }
  func.func @transform_2(%arg0: i32) -> (i32, i32) {
    %c0_i32 = arith.constant 0 : i32
    %c0_i32_0 = arith.constant 0 : i32
    %c0_i32_1 = arith.constant 0 : i32
    return %c0_i32, %c0_i32_0 : i32, i32
  }
  func.func @transform_3(%arg0: i32) -> (i32, i32) {
    %c0_i32 = arith.constant 0 : i32
    %c0_i32_0 = arith.constant 0 : i32
    %c0_i32_1 = arith.constant 0 : i32
    return %c0_i32, %c0_i32_0 : i32, i32
  }
  func.func @transform_4(%arg0: i32) -> (i32, i32) {
    %c0_i32 = arith.constant 0 : i32
    %c0_i32_0 = arith.constant 0 : i32
    %c0_i32_1 = arith.constant 0 : i32
    return %c0_i32, %c0_i32_0 : i32, i32
  }
  func.func @transform_5(%arg0: i32) -> (i32, i32) {
    %c0_i32 = arith.constant 0 : i32
    %c0_i32_0 = arith.constant 0 : i32
    %c0_i32_1 = arith.constant 0 : i32
    return %c0_i32, %c0_i32_0 : i32, i32
  }
  func.func @transform_6(%arg0: i32) -> (i32, i32) {
    %c0_i32 = arith.constant 0 : i32
    %c0_i32_0 = arith.constant 0 : i32
    %c0_i32_1 = arith.constant 0 : i32
    return %c0_i32, %c0_i32_0 : i32, i32
  }
  func.func @transform_7(%arg0: i32) -> (i32, i32) {
    %c0_i32 = arith.constant 0 : i32
    %c0_i32_0 = arith.constant 0 : i32
    %c0_i32_1 = arith.constant 0 : i32
    return %c0_i32, %c0_i32_0 : i32, i32
  }
  func.func @transform_8(%arg0: i32) -> (i32, i32) {
    %c0_i32 = arith.constant 0 : i32
    %c0_i32_0 = arith.constant 0 : i32
    %c0_i32_1 = arith.constant 0 : i32
    return %c0_i32, %c0_i32_0 : i32, i32
  }
  func.func @transform_9(%arg0: i32) -> (i32, i32) {
    %c0_i32 = arith.constant 0 : i32
    %c0_i32_0 = arith.constant 0 : i32
    %c0_i32_1 = arith.constant 0 : i32
    return %c0_i32, %c0_i32_0 : i32, i32
  }
  func.func @transform_10(%arg0: i32) -> (i32, i32) {
    %c0_i32 = arith.constant 0 : i32
    %c0_i32_0 = arith.constant 0 : i32
    %c0_i32_1 = arith.constant 0 : i32
    return %c0_i32, %c0_i32_0 : i32, i32
  }
  func.func @transform_11(%arg0: i32) -> (i32, i32) {
    %c0_i32 = arith.constant 0 : i32
    %c0_i32_0 = arith.constant 0 : i32
    %c0_i32_1 = arith.constant 0 : i32
    return %c0_i32, %c0_i32_0 : i32, i32
  }
}

</mosaic_0001>

<llo_original>
// kernel: lstm_model_regression_v2.1
$region0: #{lstm_model_regression_v2.1}
  #allocation0 [shape = 'u32[]', space=smem, size = 0x4, offset = 0x4, fixed_abs, tag = 'smem constant byte address 0x4 - core index']
  #allocation1 [shape = 'u32[144,128]{1,0:T(1,128)}', space=vmem, size = 0x12000, scoped, tag = 'internal scratch']
  #allocation2 [shape = 'f32[64,32]{1,0:T(8,128)}', space=vmem, size = 0x8000, scoped, tag = 'scratch operand']
  #allocation3 [shape = 'f32[1,1]{1,0:T(1,128)S(1)}', space=vmem, size = 0x200, scoped, tag = 'scoped memory for lstm_model_regression_v2.1']
  %s0 = inlined_call_operand.vmem [shape: f32[64,16], index: 0, kind: input, shape index: {}]
  %s1 = inlined_call_operand.vmem [shape: bf16[16,128], index: 1, kind: input, shape index: {}]
  %s2 = inlined_call_operand.vmem [shape: bf16[32,128], index: 2, kind: input, shape index: {}]
  %s3 = inlined_call_operand.vmem [shape: f32[1,128], index: 3, kind: input, shape index: {}]
  %s4 = inlined_call_operand.vmem [shape: bf16[48,128], index: 4, kind: input, shape index: {}]
  %s5 = inlined_call_operand.vmem [shape: bf16[32,128], index: 5, kind: input, shape index: {}]
  %s6 = inlined_call_operand.vmem [shape: f32[1,128], index: 6, kind: input, shape index: {}]
  %s7 = inlined_call_operand.vmem [shape: bf16[80,512], index: 7, kind: input, shape index: {}]
  %s8 = inlined_call_operand.vmem [shape: f32[1,512], index: 8, kind: input, shape index: {}]
  %s9 = inlined_call_operand.vmem [shape: bf16[1,512], index: 9, kind: input, shape index: {}]
  %s10 = inlined_call_operand.<no memory space> [shape: f32[1,1], index: 10, kind: input, shape index: {}]
  %s11 = inlined_call_operand.vmem [shape: f32[64,128], index: 11, kind: output, shape index: {}]
  %s12 = sld [smem:[#allocation0]]
  $region54: #{lstm_model_regression_v2.1} parent=0
    _
  %s14 = ssub.s32 1, %s12
  %s15 = scalar_select 0, %s14, %s12
  %v16 = vstv %s10
  %17 = vst [vmem:[#allocation3] sm:$0x1] %v16
  // Predicated region
  $region2: #{lstm_model_regression_v2.1} parent=0 // pred_check
    _
  $region3: #{lstm_model_regression_v2.1} parent=0 // pred_check_branch
    %19 = sbr.rel (0) target = $region5
  $region4: #{lstm_model_regression_v2.1} parent=0 // pred_region
    _
  $region5: #{lstm_model_regression_v2.1} parent=0 // pred_fallthru
    _
  // Predicated region
  $region6: #{lstm_model_regression_v2.1} parent=0 // pred_check
    _
  $region7: #{lstm_model_regression_v2.1} parent=0 // pred_check_branch
    %21 = sbr.rel (0) target = $region9
  $region8: #{lstm_model_regression_v2.1} parent=0 // pred_region
    _
  $region9: #{lstm_model_regression_v2.1} parent=0 // pred_fallthru
    _
  // Predicated region
  $region10: #{lstm_model_regression_v2.1} parent=0 // pred_check
    _
  $region11: #{lstm_model_regression_v2.1} parent=0 // pred_check_branch
    %23 = sbr.rel (0) target = $region13
  $region12: #{lstm_model_regression_v2.1} parent=0 // pred_region
    _
  $region13: #{lstm_model_regression_v2.1} parent=0 // pred_fallthru
    _
  // Predicated region
  $region14: #{lstm_model_regression_v2.1} parent=0 // pred_check
    _
  $region15: #{lstm_model_regression_v2.1} parent=0 // pred_check_branch
    %25 = sbr.rel (0) target = $region17
  $region16: #{lstm_model_regression_v2.1} parent=0 // pred_region
    _
  $region17: #{lstm_model_regression_v2.1} parent=0 // pred_fallthru
    _
  // Predicated region
  $region18: #{lstm_model_regression_v2.1} parent=0 // pred_check
    _
  $region19: #{lstm_model_regression_v2.1} parent=0 // pred_check_branch
    %27 = sbr.rel (0) target = $region21
  $region20: #{lstm_model_regression_v2.1} parent=0 // pred_region
    _
  $region21: #{lstm_model_regression_v2.1} parent=0 // pred_fallthru
    _
  // Predicated region
  $region22: #{lstm_model_regression_v2.1} parent=0 // pred_check
    _
  $region23: #{lstm_model_regression_v2.1} parent=0 // pred_check_branch
    %29 = sbr.rel (0) target = $region25
  $region24: #{lstm_model_regression_v2.1} parent=0 // pred_region
    _
  $region25: #{lstm_model_regression_v2.1} parent=0 // pred_fallthru
    _
  // Predicated region
  $region26: #{lstm_model_regression_v2.1} parent=0 // pred_check
    _
  $region27: #{lstm_model_regression_v2.1} parent=0 // pred_check_branch
    %31 = sbr.rel (0) target = $region29
  $region28: #{lstm_model_regression_v2.1} parent=0 // pred_region
    _
  $region29: #{lstm_model_regression_v2.1} parent=0 // pred_fallthru
    _
  // Predicated region
  $region30: #{lstm_model_regression_v2.1} parent=0 // pred_check
    _
  $region31: #{lstm_model_regression_v2.1} parent=0 // pred_check_branch
    %33 = sbr.rel (0) target = $region33
  $region32: #{lstm_model_regression_v2.1} parent=0 // pred_region
    _
  $region33: #{lstm_model_regression_v2.1} parent=0 // pred_fallthru
    _
  // Predicated region
  $region34: #{lstm_model_regression_v2.1} parent=0 // pred_check
    _
  $region35: #{lstm_model_regression_v2.1} parent=0 // pred_check_branch
    %35 = sbr.rel (0) target = $region37
  $region36: #{lstm_model_regression_v2.1} parent=0 // pred_region
    _
  $region37: #{lstm_model_regression_v2.1} parent=0 // pred_fallthru
    _
  // Predicated region
  $region38: #{lstm_model_regression_v2.1} parent=0 // pred_check
    _
  $region39: #{lstm_model_regression_v2.1} parent=0 // pred_check_branch
    %37 = sbr.rel (0) target = $region41
  $region40: #{lstm_model_regression_v2.1} parent=0 // pred_region
    _
  $region41: #{lstm_model_regression_v2.1} parent=0 // pred_fallthru
    _
  // Predicated region
  $region42: #{lstm_model_regression_v2.1} parent=0 // pred_check
    _
  $region43: #{lstm_model_regression_v2.1} parent=0 // pred_check_branch
    %39 = sbr.rel (0) target = $region45
  $region44: #{lstm_model_regression_v2.1} parent=0 // pred_region
    _
  $region45: #{lstm_model_regression_v2.1} parent=0 // pred_fallthru
    _
  %v40 = vld [vmem:[%s0] sm:$0xff]
  %v41 = vld [vmem:[%s0 + $0x8] sm:$0xff]
  %v42 = vld [vmem:[%s0 + $0x10] sm:$0xff]
  %v43 = vld [vmem:[%s0 + $0x18] sm:$0xff]
  %v44 = vld [vmem:[%s0 + $0x20] sm:$0xff]
  %v45 = vld [vmem:[%s0 + $0x28] sm:$0xff]
  %v46 = vld [vmem:[%s0 + $0x30] sm:$0xff]
  %v47 = vld [vmem:[%s0 + $0x38] sm:$0xff]
  %v48 = vld [vmem:[%s1] sm:$0xf]
  %v49 = vld [vmem:[%s1 + $0x4] sm:$0xf]
  %v50 = vunpack.c.l.bf16 %v48
  %v51 = vunpack.c.l.bf16 %v49
  %v52 = vld [vmem:[%s2] sm:$0xf]
  %v53 = vld [vmem:[%s2 + $0x4] sm:$0xf]
  %v54 = vld [vmem:[%s2 + $0x8] sm:$0xf]
  %v55 = vld [vmem:[%s2 + $0xc] sm:$0xf]
  %v56 = vunpack.c.l.bf16 %v52
  %v57 = vunpack.c.l.bf16 %v53
  %v58 = vunpack.c.l.bf16 %v54
  %v59 = vunpack.c.l.bf16 %v55
  %v60 = vld [vmem:[%s3] sm:$0x1]
  %v62 = vlaneseq
  %v63 = vshrl.u32 %v62, 7
  %v64 = vsub.s32 0, %v63
  %v65 = vrot.slane %v60, %v64
  %vm67 = vcmask 130048
  %v69 = vsel %vm67, %v40, 0
  %v72 = vsel %vm67, %v41, 0
  %v75 = vsel %vm67, %v42, 0
  %v78 = vsel %vm67, %v43, 0
  %v81 = vsel %vm67, %v44, 0
  %v84 = vsel %vm67, %v45, 0
  %v87 = vsel %vm67, %v46, 0
  %v90 = vsel %vm67, %v47, 0
  %92 = vmatprep.subr.mxu0 0.0
  %93 = vmatpush1.msra.mxu0 0.0
  %94 = vmatprep.subr.mxu0 0.0
  %95 = vmatpush1.msra.mxu0 0.0
  %96 = vmatprep.subr.mxu0 0.0
  %97 = vmatpush1.msra.mxu0 0.0
  %98 = vmatprep.subr.mxu0 0.0
  %99 = vmatpush1.msra.mxu0 0.0
  %100 = vmatprep.subr.mxu0 0.0
  %101 = vmatpush1.msra.mxu0 0.0
  %102 = vmatprep.subr.mxu0 0.0
  %103 = vmatpush1.msra.mxu0 0.0
  %104 = vmatprep.subr.mxu0 0.0
  %105 = vmatpush1.msra.mxu0 0.0
  %106 = vmatprep.subr.mxu0 0.0
  %107 = vmatpush1.msra.mxu0 0.0
  %108 = vmatprep.subr.mxu0 0.0
  %109 = vmatpush1.msra.mxu0 0.0
  %110 = vmatprep.subr.mxu0 0.0
  %111 = vmatpush1.msra.mxu0 0.0
  %112 = vmatprep.subr.mxu0 0.0
  %113 = vmatpush1.msra.mxu0 0.0
  %114 = vmatprep.subr.mxu0 0.0
  %115 = vmatpush1.msra.mxu0 0.0
  %116 = vmatprep.subr.mxu0 0.0
  %117 = vmatpush1.msra.mxu0 0.0
  %118 = vmatprep.subr.mxu0 0.0
  %119 = vmatpush1.msra.mxu0 0.0
  %120 = vmatprep.subr.mxu0 0.0
  %121 = vmatpush1.msra.mxu0 %v51
  %122 = vmatprep.subr.mxu0 0.0
  %123 = vmatpush1.msra.mxu0 %v50
  %124 = vmatprep.subr.mxu0 0.0
  %125 = vmatpush2.msra.mxu0 0.0
  %126 = vmatprep.subr.mxu0 0.0
  %127 = vmatpush2.msra.mxu0 0.0
  %128 = vmatprep.subr.mxu0 0.0
  %129 = vmatpush2.msra.mxu0 0.0
  %130 = vmatprep.subr.mxu0 0.0
  %131 = vmatpush2.msra.mxu0 0.0
  %132 = vmatprep.subr.mxu0 0.0
  %133 = vmatpush2.msra.mxu0 0.0
  %134 = vmatprep.subr.mxu0 0.0
  %135 = vmatpush2.msra.mxu0 0.0
  %136 = vmatprep.subr.mxu0 0.0
  %137 = vmatpush2.msra.mxu0 0.0
  %138 = vmatprep.subr.mxu0 0.0
  %139 = vmatpush2.msra.mxu0 0.0
  %140 = vmatprep.subr.mxu0 0.0
  %141 = vmatpush2.msra.mxu0 0.0
  %142 = vmatprep.subr.mxu0 0.0
  %143 = vmatpush2.msra.mxu0 0.0
  %144 = vmatprep.subr.mxu0 0.0
  %145 = vmatpush2.msra.mxu0 0.0
  %146 = vmatprep.subr.mxu0 0.0
  %147 = vmatpush2.msra.mxu0 0.0
  %148 = vmatprep.subr.mxu0 0.0
  %149 = vmatpush2.msra.mxu0 0.0
  %150 = vmatprep.subr.mxu0 0.0
  %151 = vmatpush2.msra.mxu0 0.0
  %152 = vmatprep.subr.mxu0 0.0
  %153 = vmatpush2.msra.mxu0 0.0
  %154 = vmatprep.subr.mxu0 0.0
  %155 = vmatpush2.msra.mxu0 0.0
  %156 = vmatprep.mubr.f32.mxu0 0.0
  %157 = vmatmul.mubr.f32.gmra.mxu0 %v69
  %v158 = vpop.f32.mrf.mxu0
  %v159 = vadd.f32 %v65, %v158
  %v160 = vpop.f32.mrf.mxu0
  %161 = vmatprep.mubr.f32.mxu0 0.0
  %162 = vmatmul.mubr.f32.gmra.mxu0 %v72
  %v163 = vpop.f32.mrf.mxu0
  %v164 = vadd.f32 %v65, %v163
  %v165 = vpop.f32.mrf.mxu0
  %166 = vmatprep.mubr.f32.mxu0 0.0
  %167 = vmatmul.mubr.f32.gmra.mxu0 %v75
  %v168 = vpop.f32.mrf.mxu0
  %v169 = vadd.f32 %v65, %v168
  %v170 = vpop.f32.mrf.mxu0
  %171 = vmatprep.mubr.f32.mxu0 0.0
  %172 = vmatmul.mubr.f32.gmra.mxu0 %v78
  %v173 = vpop.f32.mrf.mxu0
  %v174 = vadd.f32 %v65, %v173
  %v175 = vpop.f32.mrf.mxu0
  %176 = vmatprep.mubr.f32.mxu0 0.0
  %177 = vmatmul.mubr.f32.gmra.mxu0 %v81
  %v178 = vpop.f32.mrf.mxu0
  %v179 = vadd.f32 %v65, %v178
  %v180 = vpop.f32.mrf.mxu0
  %181 = vmatprep.mubr.f32.mxu0 0.0
  %182 = vmatmul.mubr.f32.gmra.mxu0 %v84
  %v183 = vpop.f32.mrf.mxu0
  %v184 = vadd.f32 %v65, %v183
  %v185 = vpop.f32.mrf.mxu0
  %186 = vmatprep.mubr.f32.mxu0 0.0
  %187 = vmatmul.mubr.f32.gmra.mxu0 %v87
  %v188 = vpop.f32.mrf.mxu0
  %v189 = vadd.f32 %v65, %v188
  %v190 = vpop.f32.mrf.mxu0
  %191 = vmatprep.mubr.f32.mxu0 0.0
  %192 = vmatmul.mubr.f32.gmra.mxu0 %v90
  %v193 = vpop.f32.mrf.mxu0
  %v194 = vadd.f32 %v65, %v193
  %v195 = vpop.f32.mrf.mxu0
  %196 = vdwg.mxu0
  %vm197 = vcmask 261120
  %v199 = vsel %vm197, 0.0, 0
  %201 = vmatprep.subr.mxu0 0.0
  %202 = vmatpush1.msra.mxu0 0.0
  %203 = vmatprep.subr.mxu0 0.0
  %204 = vmatpush1.msra.mxu0 0.0
  %205 = vmatprep.subr.mxu0 0.0
  %206 = vmatpush1.msra.mxu0 0.0
  %207 = vmatprep.subr.mxu0 0.0
  %208 = vmatpush1.msra.mxu0 0.0
  %209 = vmatprep.subr.mxu0 0.0
  %210 = vmatpush1.msra.mxu0 0.0
  %211 = vmatprep.subr.mxu0 0.0
  %212 = vmatpush1.msra.mxu0 0.0
  %213 = vmatprep.subr.mxu0 0.0
  %214 = vmatpush1.msra.mxu0 0.0
  %215 = vmatprep.subr.mxu0 0.0
  %216 = vmatpush1.msra.mxu0 0.0
  %217 = vmatprep.subr.mxu0 0.0
  %218 = vmatpush1.msra.mxu0 0.0
  %219 = vmatprep.subr.mxu0 0.0
  %220 = vmatpush1.msra.mxu0 0.0
  %221 = vmatprep.subr.mxu0 0.0
  %222 = vmatpush1.msra.mxu0 0.0
  %223 = vmatprep.subr.mxu0 0.0
  %224 = vmatpush1.msra.mxu0 0.0
  %225 = vmatprep.subr.mxu0 0.0
  %226 = vmatpush1.msra.mxu0 %v59
  %227 = vmatprep.subr.mxu0 0.0
  %228 = vmatpush1.msra.mxu0 %v58
  %229 = vmatprep.subr.mxu0 0.0
  %230 = vmatpush1.msra.mxu0 %v57
  %231 = vmatprep.subr.mxu0 0.0
  %232 = vmatpush1.msra.mxu0 %v56
  %233 = vmatprep.subr.mxu0 0.0
  %234 = vmatpush2.msra.mxu0 0.0
  %235 = vmatprep.subr.mxu0 0.0
  %236 = vmatpush2.msra.mxu0 0.0
  %237 = vmatprep.subr.mxu0 0.0
  %238 = vmatpush2.msra.mxu0 0.0
  %239 = vmatprep.subr.mxu0 0.0
  %240 = vmatpush2.msra.mxu0 0.0
  %241 = vmatprep.subr.mxu0 0.0
  %242 = vmatpush2.msra.mxu0 0.0
  %243 = vmatprep.subr.mxu0 0.0
  %244 = vmatpush2.msra.mxu0 0.0
  %245 = vmatprep.subr.mxu0 0.0
  %246 = vmatpush2.msra.mxu0 0.0
  %247 = vmatprep.subr.mxu0 0.0
  %248 = vmatpush2.msra.mxu0 0.0
  %249 = vmatprep.subr.mxu0 0.0
  %250 = vmatpush2.msra.mxu0 0.0
  %251 = vmatprep.subr.mxu0 0.0
  %252 = vmatpush2.msra.mxu0 0.0
  %253 = vmatprep.subr.mxu0 0.0
  %254 = vmatpush2.msra.mxu0 0.0
  %255 = vmatprep.subr.mxu0 0.0
  %256 = vmatpush2.msra.mxu0 0.0
  %257 = vmatprep.subr.mxu0 0.0
  %258 = vmatpush2.msra.mxu0 0.0
  %259 = vmatprep.subr.mxu0 0.0
  %260 = vmatpush2.msra.mxu0 0.0
  %261 = vmatprep.subr.mxu0 0.0
  %262 = vmatpush2.msra.mxu0 0.0
  %263 = vmatprep.subr.mxu0 0.0
  %264 = vmatpush2.msra.mxu0 0.0
  %265 = vmatprep.mubr.f32.mxu0 0.0
  %266 = vmatmul.mubr.f32.gmra.mxu0 %v199
  %v267 = vpop.f32.mrf.mxu0
  %v268 = vadd.f32 0.0, %v267
  %v269 = vpop.f32.mrf.mxu0
  %270 = vdwg.mxu0
  %v271 = vadd.f32 %v159, %v268
  %v272 = vxor.u32 %v271, 2147483648
  %v273 = vmul.f32 %v272, 1.442695
  %v274 = vpow.pop %v273
  %v275 = vadd.f32 %v274, 1.0
  %v276 = vrcp.pop %v275
  %v277 = vmul.f32 1.0, %v276
  %v278 = vtanh.pop %v271
  %v279 = vmul.f32 %v277, 0.0
  %281 = vrot.lane.b32.xlu0 %v278, 32
  %v282 = vpop.permute.xlu0 %281
  %v284 = vmul.f32 %v277, %v282
  %286 = vrot.lane.b32.xlu0 %v284, 32
  %v287 = vpop.permute.xlu0 %286
  %v289 = vadd.f32 %v279, %v287
  %v290 = vtanh.pop %v289
  %292 = vrot.lane.b32.xlu0 %v290, 32
  %v293 = vpop.permute.xlu0 %292
  %v295 = vmul.f32 %v277, %v293
  %297 = vrot.lane.b32.xlu0 %v295, 64
  %v298 = vpop.permute.xlu0 %297
  %300 = vst.msk [vmem:[#allocation2] sm:$0xff] %vm197, %v298
  %v301 = vsel %vm197, %v298, 0
  %303 = vmatprep.subr.mxu0 0.0
  %304 = vmatpush1.msra.mxu0 0.0
  %305 = vmatprep.subr.mxu0 0.0
  %306 = vmatpush1.msra.mxu0 0.0
  %307 = vmatprep.subr.mxu0 0.0
  %308 = vmatpush1.msra.mxu0 0.0
  %309 = vmatprep.subr.mxu0 0.0
  %310 = vmatpush1.msra.mxu0 0.0
  %311 = vmatprep.subr.mxu0 0.0
  %312 = vmatpush1.msra.mxu0 0.0
  %313 = vmatprep.subr.mxu0 0.0
  %314 = vmatpush1.msra.mxu0 0.0
  %315 = vmatprep.subr.mxu0 0.0
  %316 = vmatpush1.msra.mxu0 0.0
  %317 = vmatprep.subr.mxu0 0.0
  %318 = vmatpush1.msra.mxu0 0.0
  %319 = vmatprep.subr.mxu0 0.0
  %320 = vmatpush1.msra.mxu0 0.0
  %321 = vmatprep.subr.mxu0 0.0
  %322 = vmatpush1.msra.mxu0 0.0
  %323 = vmatprep.subr.mxu0 0.0
  %324 = vmatpush1.msra.mxu0 0.0
  %325 = vmatprep.subr.mxu0 0.0
  %326 = vmatpush1.msra.mxu0 0.0
  %327 = vmatprep.subr.mxu0 0.0
  %328 = vmatpush1.msra.mxu0 %v59
  %329 = vmatprep.subr.mxu0 0.0
  %330 = vmatpush1.msra.mxu0 %v58
  %331 = vmatprep.subr.mxu0 0.0
  %332 = vmatpush1.msra.mxu0 %v57
  %333 = vmatprep.subr.mxu0 0.0
  %334 = vmatpush1.msra.mxu0 %v56
  %335 = vmatprep.subr.mxu0 0.0
  %336 = vmatpush2.msra.mxu0 0.0
  %337 = vmatprep.subr.mxu0 0.0
  %338 = vmatpush2.msra.mxu0 0.0
  %339 = vmatprep.subr.mxu0 0.0
  %340 = vmatpush2.msra.mxu0 0.0
  %341 = vmatprep.subr.mxu0 0.0
  %342 = vmatpush2.msra.mxu0 0.0
  %343 = vmatprep.subr.mxu0 0.0
  %344 = vmatpush2.msra.mxu0 0.0
  %345 = vmatprep.subr.mxu0 0.0
  %346 = vmatpush2.msra.mxu0 0.0
  %347 = vmatprep.subr.mxu0 0.0
  %348 = vmatpush2.msra.mxu0 0.0
  %349 = vmatprep.subr.mxu0 0.0
  %350 = vmatpush2.msra.mxu0 0.0
  %351 = vmatprep.subr.mxu0 0.0
  %352 = vmatpush2.msra.mxu0 0.0
  %353 = vmatprep.subr.mxu0 0.0
  %354 = vmatpush2.msra.mxu0 0.0
  %355 = vmatprep.subr.mxu0 0.0
  %356 = vmatpush2.msra.mxu0 0.0
  %357 = vmatprep.subr.mxu0 0.0
  %358 = vmatpush2.msra.mxu0 0.0
  %359 = vmatprep.subr.mxu0 0.0
  %360 = vmatpush2.msra.mxu0 0.0
  %361 = vmatprep.subr.mxu0 0.0
  %362 = vmatpush2.msra.mxu0 0.0
  %363 = vmatprep.subr.mxu0 0.0
  %364 = vmatpush2.msra.mxu0 0.0
  %365 = vmatprep.subr.mxu0 0.0
  %366 = vmatpush2.msra.mxu0 0.0
  %367 = vmatprep.mubr.f32.mxu0 0.0
  %368 = vmatmul.mubr.f32.gmra.mxu0 %v301
  %v369 = vpop.f32.mrf.mxu0
  %v370 = vadd.f32 0.0, %v369
  %v371 = vpop.f32.mrf.mxu0
  %372 = vdwg.mxu0
  %v373 = vadd.f32 %v164, %v370
  %v374 = vxor.u32 %v373, 2147483648
  %v375 = vmul.f32 %v374, 1.442695
  %v376 = vpow.pop %v375
  %v377 = vadd.f32 %v376, 1.0
  %v378 = vrcp.pop %v377
  %v379 = vmul.f32 1.0, %v378
  %v380 = vtanh.pop %v373
  %v381 = vmul.f32 %v379, %v289
  %383 = vrot.lane.b32.xlu0 %v380, 32
  %v384 = vpop.permute.xlu0 %383
  %v386 = vmul.f32 %v379, %v384
  %388 = vrot.lane.b32.xlu0 %v386, 32
  %v389 = vpop.permute.xlu0 %388
  %v391 = vadd.f32 %v381, %v389
  %v392 = vtanh.pop %v391
  %394 = vrot.lane.b32.xlu0 %v392, 32
  %v395 = vpop.permute.xlu0 %394
  %v397 = vmul.f32 %v379, %v395
  %399 = vrot.lane.b32.xlu0 %v397, 64
  %v400 = vpop.permute.xlu0 %399
  %402 = vst.msk [vmem:[#allocation2 + $0x8] sm:$0xff] %vm197, %v400
  %v403 = vsel %vm197, %v400, 0
  %405 = vmatprep.subr.mxu0 0.0
  %406 = vmatpush1.msra.mxu0 0.0
  %407 = vmatprep.subr.mxu0 0.0
  %408 = vmatpush1.msra.mxu0 0.0
  %409 = vmatprep.subr.mxu0 0.0
  %410 = vmatpush1.msra.mxu0 0.0
  %411 = vmatprep.subr.mxu0 0.0
  %412 = vmatpush1.msra.mxu0 0.0
  %413 = vmatprep.subr.mxu0 0.0
  %414 = vmatpush1.msra.mxu0 0.0
  %415 = vmatprep.subr.mxu0 0.0
  %416 = vmatpush1.msra.mxu0 0.0
  %417 = vmatprep.subr.mxu0 0.0
  %418 = vmatpush1.msra.mxu0 0.0
  %419 = vmatprep.subr.mxu0 0.0
  %420 = vmatpush1.msra.mxu0 0.0
  %421 = vmatprep.subr.mxu0 0.0
  %422 = vmatpush1.msra.mxu0 0.0
  %423 = vmatprep.subr.mxu0 0.0
  %424 = vmatpush1.msra.mxu0 0.0
  %425 = vmatprep.subr.mxu0 0.0
  %426 = vmatpush1.msra.mxu0 0.0
  %427 = vmatprep.subr.mxu0 0.0
  %428 = vmatpush1.msra.mxu0 0.0
  %429 = vmatprep.subr.mxu0 0.0
  %430 = vmatpush1.msra.mxu0 %v59
  %431 = vmatprep.subr.mxu0 0.0
  %432 = vmatpush1.msra.mxu0 %v58
  %433 = vmatprep.subr.mxu0 0.0
  %434 = vmatpush1.msra.mxu0 %v57
  %435 = vmatprep.subr.mxu0 0.0
  %436 = vmatpush1.msra.mxu0 %v56
  %437 = vmatprep.subr.mxu0 0.0
  %438 = vmatpush2.msra.mxu0 0.0
  %439 = vmatprep.subr.mxu0 0.0
  %440 = vmatpush2.msra.mxu0 0.0
  %441 = vmatprep.subr.mxu0 0.0
  %442 = vmatpush2.msra.mxu0 0.0
  %443 = vmatprep.subr.mxu0 0.0
  %444 = vmatpush2.msra.mxu0 0.0
  %445 = vmatprep.subr.mxu0 0.0
  %446 = vmatpush2.msra.mxu0 0.0
  %447 = vmatprep.subr.mxu0 0.0
  %448 = vmatpush2.msra.mxu0 0.0
  %449 = vmatprep.subr.mxu0 0.0
  %450 = vmatpush2.msra.mxu0 0.0
  %451 = vmatprep.subr.mxu0 0.0
  %452 = vmatpush2.msra.mxu0 0.0
  %453 = vmatprep.subr.mxu0 0.0
  %454 = vmatpush2.msra.mxu0 0.0
  %455 = vmatprep.subr.mxu0 0.0
  %456 = vmatpush2.msra.mxu0 0.0
  %457 = vmatprep.subr.mxu0 0.0
  %458 = vmatpush2.msra.mxu0 0.0
  %459 = vmatprep.subr.mxu0 0.0
  %460 = vmatpush2.msra.mxu0 0.0
  %461 = vmatprep.subr.mxu0 0.0
  %462 = vmatpush2.msra.mxu0 0.0
  %463 = vmatprep.subr.mxu0 0.0
  %464 = vmatpush2.msra.mxu0 0.0
  %465 = vmatprep.subr.mxu0 0.0
  %466 = vmatpush2.msra.mxu0 0.0
  %467 = vmatprep.subr.mxu0 0.0
  %468 = vmatpush2.msra.mxu0 0.0
  %469 = vmatprep.mubr.f32.mxu0 0.0
  %470 = vmatmul.mubr.f32.gmra.mxu0 %v403
  %v471 = vpop.f32.mrf.mxu0
  %v472 = vadd.f32 0.0, %v471
  %v473 = vpop.f32.mrf.mxu0
  %474 = vdwg.mxu0
  %v475 = vadd.f32 %v169, %v472
  %v476 = vxor.u32 %v475, 2147483648
  %v477 = vmul.f32 %v476, 1.442695
  %v478 = vpow.pop %v477
  %v479 = vadd.f32 %v478, 1.0
  %v480 = vrcp.pop %v479
  %v481 = vmul.f32 1.0, %v480
  %v482 = vtanh.pop %v475
  %v483 = vmul.f32 %v481, %v391
  %485 = vrot.lane.b32.xlu0 %v482, 32
  %v486 = vpop.permute.xlu0 %485
  %v488 = vmul.f32 %v481, %v486
  %490 = vrot.lane.b32.xlu0 %v488, 32
  %v491 = vpop.permute.xlu0 %490
  %v493 = vadd.f32 %v483, %v491
  %v494 = vtanh.pop %v493
  %496 = vrot.lane.b32.xlu0 %v494, 32
  %v497 = vpop.permute.xlu0 %496
  %v499 = vmul.f32 %v481, %v497
  %501 = vrot.lane.b32.xlu0 %v499, 64
  %v502 = vpop.permute.xlu0 %501
  %504 = vst.msk [vmem:[#allocation2 + $0x10] sm:$0xff] %vm197, %v502
  %v505 = vsel %vm197, %v502, 0
  %507 = vmatprep.subr.mxu0 0.0
  %508 = vmatpush1.msra.mxu0 0.0
  %509 = vmatprep.subr.mxu0 0.0
  %510 = vmatpush1.msra.mxu0 0.0
  %511 = vmatprep.subr.mxu0 0.0
  %512 = vmatpush1.msra.mxu0 0.0
  %513 = vmatprep.subr.mxu0 0.0
  %514 = vmatpush1.msra.mxu0 0.0
  %515 = vmatprep.subr.mxu0 0.0
  %516 = vmatpush1.msra.mxu0 0.0
  %517 = vmatprep.subr.mxu0 0.0
  %518 = vmatpush1.msra.mxu0 0.0
  %519 = vmatprep.subr.mxu0 0.0
  %520 = vmatpush1.msra.mxu0 0.0
  %521 = vmatprep.subr.mxu0 0.0
  %522 = vmatpush1.msra.mxu0 0.0
  %523 = vmatprep.subr.mxu0 0.0
  %524 = vmatpush1.msra.mxu0 0.0
  %525 = vmatprep.subr.mxu0 0.0
  %526 = vmatpush1.msra.mxu0 0.0
  %527 = vmatprep.subr.mxu0 0.0
  %528 = vmatpush1.msra.mxu0 0.0
  %529 = vmatprep.subr.mxu0 0.0
  %530 = vmatpush1.msra.mxu0 0.0
  %531 = vmatprep.subr.mxu0 0.0
  %532 = vmatpush1.msra.mxu0 %v59
  %533 = vmatprep.subr.mxu0 0.0
  %534 = vmatpush1.msra.mxu0 %v58
  %535 = vmatprep.subr.mxu0 0.0
  %536 = vmatpush1.msra.mxu0 %v57
  %537 = vmatprep.subr.mxu0 0.0
  %538 = vmatpush1.msra.mxu0 %v56
  %539 = vmatprep.subr.mxu0 0.0
  %540 = vmatpush2.msra.mxu0 0.0
  %541 = vmatprep.subr.mxu0 0.0
  %542 = vmatpush2.msra.mxu0 0.0
  %543 = vmatprep.subr.mxu0 0.0
  %544 = vmatpush2.msra.mxu0 0.0
  %545 = vmatprep.subr.mxu0 0.0
  %546 = vmatpush2.msra.mxu0 0.0
  %547 = vmatprep.subr.mxu0 0.0
  %548 = vmatpush2.msra.mxu0 0.0
  %549 = vmatprep.subr.mxu0 0.0
  %550 = vmatpush2.msra.mxu0 0.0
  %551 = vmatprep.subr.mxu0 0.0
  %552 = vmatpush2.msra.mxu0 0.0
  %553 = vmatprep.subr.mxu0 0.0
  %554 = vmatpush2.msra.mxu0 0.0
  %555 = vmatprep.subr.mxu0 0.0
  %556 = vmatpush2.msra.mxu0 0.0
  %557 = vmatprep.subr.mxu0 0.0
  %558 = vmatpush2.msra.mxu0 0.0
  %559 = vmatprep.subr.mxu0 0.0
  %560 = vmatpush2.msra.mxu0 0.0
  %561 = vmatprep.subr.mxu0 0.0
  %562 = vmatpush2.msra.mxu0 0.0
  %563 = vmatprep.subr.mxu0 0.0
  %564 = vmatpush2.msra.mxu0 0.0
  %565 = vmatprep.subr.mxu0 0.0
  %566 = vmatpush2.msra.mxu0 0.0
  %567 = vmatprep.subr.mxu0 0.0
  %568 = vmatpush2.msra.mxu0 0.0
  %569 = vmatprep.subr.mxu0 0.0
  %570 = vmatpush2.msra.mxu0 0.0
  %571 = vmatprep.mubr.f32.mxu0 0.0
  %572 = vmatmul.mubr.f32.gmra.mxu0 %v505
  %v573 = vpop.f32.mrf.mxu0
  %v574 = vadd.f32 0.0, %v573
  %v575 = vpop.f32.mrf.mxu0
  %576 = vdwg.mxu0
  %v577 = vadd.f32 %v174, %v574
  %v578 = vxor.u32 %v577, 2147483648
  %v579 = vmul.f32 %v578, 1.442695
  %v580 = vpow.pop %v579
  %v581 = vadd.f32 %v580, 1.0
  %v582 = vrcp.pop %v581
  %v583 = vmul.f32 1.0, %v582
  %v584 = vtanh.pop %v577
  %v585 = vmul.f32 %v583, %v493
  %587 = vrot.lane.b32.xlu0 %v584, 32
  %v588 = vpop.permute.xlu0 %587
  %v590 = vmul.f32 %v583, %v588
  %592 = vrot.lane.b32.xlu0 %v590, 32
  %v593 = vpop.permute.xlu0 %592
  %v595 = vadd.f32 %v585, %v593
  %v596 = vtanh.pop %v595
  %598 = vrot.lane.b32.xlu0 %v596, 32
  %v599 = vpop.permute.xlu0 %598
  %v601 = vmul.f32 %v583, %v599
  %603 = vrot.lane.b32.xlu0 %v601, 64
  %v604 = vpop.permute.xlu0 %603
  %606 = vst.msk [vmem:[#allocation2 + $0x18] sm:$0xff] %vm197, %v604
  %v607 = vsel %vm197, %v604, 0
  %609 = vmatprep.subr.mxu0 0.0
  %610 = vmatpush1.msra.mxu0 0.0
  %611 = vmatprep.subr.mxu0 0.0
  %612 = vmatpush1.msra.mxu0 0.0
  %613 = vmatprep.subr.mxu0 0.0
  %614 = vmatpush1.msra.mxu0 0.0
  %615 = vmatprep.subr.mxu0 0.0
  %616 = vmatpush1.msra.mxu0 0.0
  %617 = vmatprep.subr.mxu0 0.0
  %618 = vmatpush1.msra.mxu0 0.0
  %619 = vmatprep.subr.mxu0 0.0
  %620 = vmatpush1.msra.mxu0 0.0
  %621 = vmatprep.subr.mxu0 0.0
  %622 = vmatpush1.msra.mxu0 0.0
  %623 = vmatprep.subr.mxu0 0.0
  %624 = vmatpush1.msra.mxu0 0.0
  %625 = vmatprep.subr.mxu0 0.0
  %626 = vmatpush1.msra.mxu0 0.0
  %627 = vmatprep.subr.mxu0 0.0
  %628 = vmatpush1.msra.mxu0 0.0
  %629 = vmatprep.subr.mxu0 0.0
  %630 = vmatpush1.msra.mxu0 0.0
  %631 = vmatprep.subr.mxu0 0.0
  %632 = vmatpush1.msra.mxu0 0.0
  %633 = vmatprep.subr.mxu0 0.0
  %634 = vmatpush1.msra.mxu0 %v59
  %635 = vmatprep.subr.mxu0 0.0
  %636 = vmatpush1.msra.mxu0 %v58
  %637 = vmatprep.subr.mxu0 0.0
  %638 = vmatpush1.msra.mxu0 %v57
  %639 = vmatprep.subr.mxu0 0.0
  %640 = vmatpush1.msra.mxu0 %v56
  %641 = vmatprep.subr.mxu0 0.0
  %642 = vmatpush2.msra.mxu0 0.0
  %643 = vmatprep.subr.mxu0 0.0
  %644 = vmatpush2.msra.mxu0 0.0
  %645 = vmatprep.subr.mxu0 0.0
  %646 = vmatpush2.msra.mxu0 0.0
  %647 = vmatprep.subr.mxu0 0.0
  %648 = vmatpush2.msra.mxu0 0.0
  %649 = vmatprep.subr.mxu0 0.0
  %650 = vmatpush2.msra.mxu0 0.0
  %651 = vmatprep.subr.mxu0 0.0
  %652 = vmatpush2.msra.mxu0 0.0
  %653 = vmatprep.subr.mxu0 0.0
  %654 = vmatpush2.msra.mxu0 0.0
  %655 = vmatprep.subr.mxu0 0.0
  %656 = vmatpush2.msra.mxu0 0.0
  %657 = vmatprep.subr.mxu0 0.0
  %658 = vmatpush2.msra.mxu0 0.0
  %659 = vmatprep.subr.mxu0 0.0
  %660 = vmatpush2.msra.mxu0 0.0
  %661 = vmatprep.subr.mxu0 0.0
  %662 = vmatpush2.msra.mxu0 0.0
  %663 = vmatprep.subr.mxu0 0.0
  %664 = vmatpush2.msra.mxu0 0.0
  %665 = vmatprep.subr.mxu0 0.0
  %666 = vmatpush2.msra.mxu0 0.0
  %667 = vmatprep.subr.mxu0 0.0
  %668 = vmatpush2.msra.mxu0 0.0
  %669 = vmatprep.subr.mxu0 0.0
  %670 = vmatpush2.msra.mxu0 0.0
  %671 = vmatprep.subr.mxu0 0.0
  %672 = vmatpush2.msra.mxu0 0.0
  %673 = vmatprep.mubr.f32.mxu0 0.0
  %674 = vmatmul.mubr.f32.gmra.mxu0 %v607
  %v675 = vpop.f32.mrf.mxu0
  %v676 = vadd.f32 0.0, %v675
  %v677 = vpop.f32.mrf.mxu0
  %678 = vdwg.mxu0
  %v679 = vadd.f32 %v179, %v676
  %v680 = vxor.u32 %v679, 2147483648
  %v681 = vmul.f32 %v680, 1.442695
  %v682 = vpow.pop %v681
  %v683 = vadd.f32 %v682, 1.0
  %v684 = vrcp.pop %v683
  %v685 = vmul.f32 1.0, %v684
  %v686 = vtanh.pop %v679
  %v687 = vmul.f32 %v685, %v595
  %689 = vrot.lane.b32.xlu0 %v686, 32
  %v690 = vpop.permute.xlu0 %689
  %v692 = vmul.f32 %v685, %v690
  %694 = vrot.lane.b32.xlu0 %v692, 32
  %v695 = vpop.permute.xlu0 %694
  %v697 = vadd.f32 %v687, %v695
  %v698 = vtanh.pop %v697
  %700 = vrot.lane.b32.xlu0 %v698, 32
  %v701 = vpop.permute.xlu0 %700
  %v703 = vmul.f32 %v685, %v701
  %705 = vrot.lane.b32.xlu0 %v703, 64
  %v706 = vpop.permute.xlu0 %705
  %708 = vst.msk [vmem:[#allocation2 + $0x20] sm:$0xff] %vm197, %v706
  %v709 = vsel %vm197, %v706, 0
  %711 = vmatprep.subr.mxu0 0.0
  %712 = vmatpush1.msra.mxu0 0.0
  %713 = vmatprep.subr.mxu0 0.0
  %714 = vmatpush1.msra.mxu0 0.0
  %715 = vmatprep.subr.mxu0 0.0
  %716 = vmatpush1.msra.mxu0 0.0
  %717 = vmatprep.subr.mxu0 0.0
  %718 = vmatpush1.msra.mxu0 0.0
  %719 = vmatprep.subr.mxu0 0.0
  %720 = vmatpush1.msra.mxu0 0.0
  %721 = vmatprep.subr.mxu0 0.0
  %722 = vmatpush1.msra.mxu0 0.0
  %723 = vmatprep.subr.mxu0 0.0
  %724 = vmatpush1.msra.mxu0 0.0
  %725 = vmatprep.subr.mxu0 0.0
  %726 = vmatpush1.msra.mxu0 0.0
  %727 = vmatprep.subr.mxu0 0.0
  %728 = vmatpush1.msra.mxu0 0.0
  %729 = vmatprep.subr.mxu0 0.0
  %730 = vmatpush1.msra.mxu0 0.0
  %731 = vmatprep.subr.mxu0 0.0
  %732 = vmatpush1.msra.mxu0 0.0
  %733 = vmatprep.subr.mxu0 0.0
  %734 = vmatpush1.msra.mxu0 0.0
  %735 = vmatprep.subr.mxu0 0.0
  %736 = vmatpush1.msra.mxu0 %v59
  %737 = vmatprep.subr.mxu0 0.0
  %738 = vmatpush1.msra.mxu0 %v58
  %739 = vmatprep.subr.mxu0 0.0
  %740 = vmatpush1.msra.mxu0 %v57
  %741 = vmatprep.subr.mxu0 0.0
  %742 = vmatpush1.msra.mxu0 %v56
  %743 = vmatprep.subr.mxu0 0.0
  %744 = vmatpush2.msra.mxu0 0.0
  %745 = vmatprep.subr.mxu0 0.0
  %746 = vmatpush2.msra.mxu0 0.0
  %747 = vmatprep.subr.mxu0 0.0
  %748 = vmatpush2.msra.mxu0 0.0
  %749 = vmatprep.subr.mxu0 0.0
  %750 = vmatpush2.msra.mxu0 0.0
  %751 = vmatprep.subr.mxu0 0.0
  %752 = vmatpush2.msra.mxu0 0.0
  %753 = vmatprep.subr.mxu0 0.0
  %754 = vmatpush2.msra.mxu0 0.0
  %755 = vmatprep.subr.mxu0 0.0
  %756 = vmatpush2.msra.mxu0 0.0
  %757 = vmatprep.subr.mxu0 0.0
  %758 = vmatpush2.msra.mxu0 0.0
  %759 = vmatprep.subr.mxu0 0.0
  %760 = vmatpush2.msra.mxu0 0.0
  %761 = vmatprep.subr.mxu0 0.0
  %762 = vmatpush2.msra.mxu0 0.0
  %763 = vmatprep.subr.mxu0 0.0
  %764 = vmatpush2.msra.mxu0 0.0
  %765 = vmatprep.subr.mxu0 0.0
  %766 = vmatpush2.msra.mxu0 0.0
  %767 = vmatprep.subr.mxu0 0.0
  %768 = vmatpush2.msra.mxu0 0.0
  %769 = vmatprep.subr.mxu0 0.0
  %770 = vmatpush2.msra.mxu0 0.0
  %771 = vmatprep.subr.mxu0 0.0
  %772 = vmatpush2.msra.mxu0 0.0
  %773 = vmatprep.subr.mxu0 0.0
  %774 = vmatpush2.msra.mxu0 0.0
  %775 = vmatprep.mubr.f32.mxu0 0.0
  %776 = vmatmul.mubr.f32.gmra.mxu0 %v709
  %v777 = vpop.f32.mrf.mxu0
  %v778 = vadd.f32 0.0, %v777
  %v779 = vpop.f32.mrf.mxu0
  %780 = vdwg.mxu0
  %v781 = vadd.f32 %v184, %v778
  %v782 = vxor.u32 %v781, 2147483648
  %v783 = vmul.f32 %v782, 1.442695
  %v784 = vpow.pop %v783
  %v785 = vadd.f32 %v784, 1.0
  %v786 = vrcp.pop %v785
  %v787 = vmul.f32 1.0, %v786
  %v788 = vtanh.pop %v781
  %v789 = vmul.f32 %v787, %v697
  %791 = vrot.lane.b32.xlu0 %v788, 32
  %v792 = vpop.permute.xlu0 %791
  %v794 = vmul.f32 %v787, %v792
  %796 = vrot.lane.b32.xlu0 %v794, 32
  %v797 = vpop.permute.xlu0 %796
  %v799 = vadd.f32 %v789, %v797
  %v800 = vtanh.pop %v799
  %802 = vrot.lane.b32.xlu0 %v800, 32
  %v803 = vpop.permute.xlu0 %802
  %v805 = vmul.f32 %v787, %v803
  %807 = vrot.lane.b32.xlu0 %v805, 64
  %v808 = vpop.permute.xlu0 %807
  %810 = vst.msk [vmem:[#allocation2 + $0x28] sm:$0xff] %vm197, %v808
  %v811 = vsel %vm197, %v808, 0
  %813 = vmatprep.subr.mxu0 0.0
  %814 = vmatpush1.msra.mxu0 0.0
  %815 = vmatprep.subr.mxu0 0.0
  %816 = vmatpush1.msra.mxu0 0.0
  %817 = vmatprep.subr.mxu0 0.0
  %818 = vmatpush1.msra.mxu0 0.0
  %819 = vmatprep.subr.mxu0 0.0
  %820 = vmatpush1.msra.mxu0 0.0
  %821 = vmatprep.subr.mxu0 0.0
  %822 = vmatpush1.msra.mxu0 0.0
  %823 = vmatprep.subr.mxu0 0.0
  %824 = vmatpush1.msra.mxu0 0.0
  %825 = vmatprep.subr.mxu0 0.0
  %826 = vmatpush1.msra.mxu0 0.0
  %827 = vmatprep.subr.mxu0 0.0
  %828 = vmatpush1.msra.mxu0 0.0
  %829 = vmatprep.subr.mxu0 0.0
  %830 = vmatpush1.msra.mxu0 0.0
  %831 = vmatprep.subr.mxu0 0.0
  %832 = vmatpush1.msra.mxu0 0.0
  %833 = vmatprep.subr.mxu0 0.0
  %834 = vmatpush1.msra.mxu0 0.0
  %835 = vmatprep.subr.mxu0 0.0
  %836 = vmatpush1.msra.mxu0 0.0
  %837 = vmatprep.subr.mxu0 0.0
  %838 = vmatpush1.msra.mxu0 %v59
  %839 = vmatprep.subr.mxu0 0.0
  %840 = vmatpush1.msra.mxu0 %v58
  %841 = vmatprep.subr.mxu0 0.0
  %842 = vmatpush1.msra.mxu0 %v57
  %843 = vmatprep.subr.mxu0 0.0
  %844 = vmatpush1.msra.mxu0 %v56
  %845 = vmatprep.subr.mxu0 0.0
  %846 = vmatpush2.msra.mxu0 0.0
  %847 = vmatprep.subr.mxu0 0.0
  %848 = vmatpush2.msra.mxu0 0.0
  %849 = vmatprep.subr.mxu0 0.0
  %850 = vmatpush2.msra.mxu0 0.0
  %851 = vmatprep.subr.mxu0 0.0
  %852 = vmatpush2.msra.mxu0 0.0
  %853 = vmatprep.subr.mxu0 0.0
  %854 = vmatpush2.msra.mxu0 0.0
  %855 = vmatprep.subr.mxu0 0.0
  %856 = vmatpush2.msra.mxu0 0.0
  %857 = vmatprep.subr.mxu0 0.0
  %858 = vmatpush2.msra.mxu0 0.0
  %859 = vmatprep.subr.mxu0 0.0
  %860 = vmatpush2.msra.mxu0 0.0
  %861 = vmatprep.subr.mxu0 0.0
  %862 = vmatpush2.msra.mxu0 0.0
  %863 = vmatprep.subr.mxu0 0.0
  %864 = vmatpush2.msra.mxu0 0.0
  %865 = vmatprep.subr.mxu0 0.0
  %866 = vmatpush2.msra.mxu0 0.0
  %867 = vmatprep.subr.mxu0 0.0
  %868 = vmatpush2.msra.mxu0 0.0
  %869 = vmatprep.subr.mxu0 0.0
  %870 = vmatpush2.msra.mxu0 0.0
  %871 = vmatprep.subr.mxu0 0.0
  %872 = vmatpush2.msra.mxu0 0.0
  %873 = vmatprep.subr.mxu0 0.0
  %874 = vmatpush2.msra.mxu0 0.0
  %875 = vmatprep.subr.mxu0 0.0
  %876 = vmatpush2.msra.mxu0 0.0
  %877 = vmatprep.mubr.f32.mxu0 0.0
  %878 = vmatmul.mubr.f32.gmra.mxu0 %v811
  %v879 = vpop.f32.mrf.mxu0
  %v880 = vadd.f32 0.0, %v879
  %v881 = vpop.f32.mrf.mxu0
  %882 = vdwg.mxu0
  %v883 = vadd.f32 %v189, %v880
  %v884 = vxor.u32 %v883, 2147483648
  %v885 = vmul.f32 %v884, 1.442695
  %v886 = vpow.pop %v885
  %v887 = vadd.f32 %v886, 1.0
  %v888 = vrcp.pop %v887
  %v889 = vmul.f32 1.0, %v888
  %v890 = vtanh.pop %v883
  %v891 = vmul.f32 %v889, %v799
  %893 = vrot.lane.b32.xlu0 %v890, 32
  %v894 = vpop.permute.xlu0 %893
  %v896 = vmul.f32 %v889, %v894
  %898 = vrot.lane.b32.xlu0 %v896, 32
  %v899 = vpop.permute.xlu0 %898
  %v901 = vadd.f32 %v891, %v899
  %v902 = vtanh.pop %v901
  %904 = vrot.lane.b32.xlu0 %v902, 32
  %v905 = vpop.permute.xlu0 %904
  %v907 = vmul.f32 %v889, %v905
  %909 = vrot.lane.b32.xlu0 %v907, 64
  %v910 = vpop.permute.xlu0 %909
  %912 = vst.msk [vmem:[#allocation2 + $0x30] sm:$0xff] %vm197, %v910
  %v913 = vsel %vm197, %v910, 0
  %915 = vmatprep.subr.mxu0 0.0
  %916 = vmatpush1.msra.mxu0 0.0
  %917 = vmatprep.subr.mxu0 0.0
  %918 = vmatpush1.msra.mxu0 0.0
  %919 = vmatprep.subr.mxu0 0.0
  %920 = vmatpush1.msra.mxu0 0.0
  %921 = vmatprep.subr.mxu0 0.0
  %922 = vmatpush1.msra.mxu0 0.0
  %923 = vmatprep.subr.mxu0 0.0
  %924 = vmatpush1.msra.mxu0 0.0
  %925 = vmatprep.subr.mxu0 0.0
  %926 = vmatpush1.msra.mxu0 0.0
  %927 = vmatprep.subr.mxu0 0.0
  %928 = vmatpush1.msra.mxu0 0.0
  %929 = vmatprep.subr.mxu0 0.0
  %930 = vmatpush1.msra.mxu0 0.0
  %931 = vmatprep.subr.mxu0 0.0
  %932 = vmatpush1.msra.mxu0 0.0
  %933 = vmatprep.subr.mxu0 0.0
  %934 = vmatpush1.msra.mxu0 0.0
  %935 = vmatprep.subr.mxu0 0.0
  %936 = vmatpush1.msra.mxu0 0.0
  %937 = vmatprep.subr.mxu0 0.0
  %938 = vmatpush1.msra.mxu0 0.0
  %939 = vmatprep.subr.mxu0 0.0
  %940 = vmatpush1.msra.mxu0 %v59
  %941 = vmatprep.subr.mxu0 0.0
  %942 = vmatpush1.msra.mxu0 %v58
  %943 = vmatprep.subr.mxu0 0.0
  %944 = vmatpush1.msra.mxu0 %v57
  %945 = vmatprep.subr.mxu0 0.0
  %946 = vmatpush1.msra.mxu0 %v56
  %947 = vmatprep.subr.mxu0 0.0
  %948 = vmatpush2.msra.mxu0 0.0
  %949 = vmatprep.subr.mxu0 0.0
  %950 = vmatpush2.msra.mxu0 0.0
  %951 = vmatprep.subr.mxu0 0.0
  %952 = vmatpush2.msra.mxu0 0.0
  %953 = vmatprep.subr.mxu0 0.0
  %954 = vmatpush2.msra.mxu0 0.0
  %955 = vmatprep.subr.mxu0 0.0
  %956 = vmatpush2.msra.mxu0 0.0
  %957 = vmatprep.subr.mxu0 0.0
  %958 = vmatpush2.msra.mxu0 0.0
  %959 = vmatprep.subr.mxu0 0.0
  %960 = vmatpush2.msra.mxu0 0.0
  %961 = vmatprep.subr.mxu0 0.0
  %962 = vmatpush2.msra.mxu0 0.0
  %963 = vmatprep.subr.mxu0 0.0
  %964 = vmatpush2.msra.mxu0 0.0
  %965 = vmatprep.subr.mxu0 0.0
  %966 = vmatpush2.msra.mxu0 0.0
  %967 = vmatprep.subr.mxu0 0.0
  %968 = vmatpush2.msra.mxu0 0.0
  %969 = vmatprep.subr.mxu0 0.0
  %970 = vmatpush2.msra.mxu0 0.0
  %971 = vmatprep.subr.mxu0 0.0
  %972 = vmatpush2.msra.mxu0 0.0
  %973 = vmatprep.subr.mxu0 0.0
  %974 = vmatpush2.msra.mxu0 0.0
  %975 = vmatprep.subr.mxu0 0.0
  %976 = vmatpush2.msra.mxu0 0.0
  %977 = vmatprep.subr.mxu0 0.0
  %978 = vmatpush2.msra.mxu0 0.0
  %979 = vmatprep.mubr.f32.mxu0 0.0
  %980 = vmatmul.mubr.f32.gmra.mxu0 %v913
  %v981 = vpop.f32.mrf.mxu0
  %v982 = vadd.f32 0.0, %v981
  %v983 = vpop.f32.mrf.mxu0
  %984 = vdwg.mxu0
  %v985 = vadd.f32 %v194, %v982
  %v986 = vxor.u32 %v985, 2147483648
  %v987 = vmul.f32 %v986, 1.442695
  %v988 = vpow.pop %v987
  %v989 = vadd.f32 %v988, 1.0
  %v990 = vrcp.pop %v989
  %v991 = vmul.f32 1.0, %v990
  %v992 = vtanh.pop %v985
  %v993 = vmul.f32 %v991, %v901
  %995 = vrot.lane.b32.xlu0 %v992, 32
  %v996 = vpop.permute.xlu0 %995
  %v998 = vmul.f32 %v991, %v996
  %1000 = vrot.lane.b32.xlu0 %v998, 32
  %v1001 = vpop.permute.xlu0 %1000
  %v1003 = vadd.f32 %v993, %v1001
  %v1004 = vtanh.pop %v1003
  %1006 = vrot.lane.b32.xlu0 %v1004, 32
  %v1007 = vpop.permute.xlu0 %1006
  %v1009 = vmul.f32 %v991, %v1007
  %1011 = vrot.lane.b32.xlu0 %v1009, 64
  %v1012 = vpop.permute.xlu0 %1011
  %1014 = vst.msk [vmem:[#allocation2 + $0x38] sm:$0xff] %vm197, %v1012
  %v1015 = vld [vmem:[#allocation2] sm:$0xff]
  %v1016 = vld [vmem:[#allocation2 + $0x8] sm:$0xff]
  %v1017 = vld [vmem:[#allocation2 + $0x10] sm:$0xff]
  %v1018 = vld [vmem:[#allocation2 + $0x18] sm:$0xff]
  %v1019 = vld [vmem:[#allocation2 + $0x20] sm:$0xff]
  %v1020 = vld [vmem:[#allocation2 + $0x28] sm:$0xff]
  %v1021 = vld [vmem:[#allocation2 + $0x30] sm:$0xff]
  %v1022 = vld [vmem:[#allocation2 + $0x38] sm:$0xff]
  %1023 = vrot.lane.b32.xlu0 %v40, 32
  %v1024 = vpop.permute.xlu0 %1023
  %1025 = vrot.lane.b32.xlu0 %v41, 32
  %v1026 = vpop.permute.xlu0 %1025
  %1027 = vrot.lane.b32.xlu0 %v42, 32
  %v1028 = vpop.permute.xlu0 %1027
  %1029 = vrot.lane.b32.xlu0 %v43, 32
  %v1030 = vpop.permute.xlu0 %1029
  %1031 = vrot.lane.b32.xlu0 %v44, 32
  %v1032 = vpop.permute.xlu0 %1031
  %1033 = vrot.lane.b32.xlu0 %v45, 32
  %v1034 = vpop.permute.xlu0 %1033
  %1035 = vrot.lane.b32.xlu0 %v46, 32
  %v1036 = vpop.permute.xlu0 %1035
  %1037 = vrot.lane.b32.xlu0 %v47, 32
  %v1038 = vpop.permute.xlu0 %1037
  %v1047 = vsel %vm197, %v1015, %v1024
  %v1048 = vsel %vm197, %v1016, %v1026
  %v1049 = vsel %vm197, %v1017, %v1028
  %v1050 = vsel %vm197, %v1018, %v1030
  %v1051 = vsel %vm197, %v1019, %v1032
  %v1052 = vsel %vm197, %v1020, %v1034
  %v1053 = vsel %vm197, %v1021, %v1036
  %v1054 = vsel %vm197, %v1022, %v1038
  %v1055 = vmax.f32 %v1047, 0.0
  %v1056 = vmax.f32 %v1048, 0.0
  %v1057 = vmax.f32 %v1049, 0.0
  %v1058 = vmax.f32 %v1050, 0.0
  %v1059 = vmax.f32 %v1051, 0.0
  %v1060 = vmax.f32 %v1052, 0.0
  %v1061 = vmax.f32 %v1053, 0.0
  %v1062 = vmax.f32 %v1054, 0.0
  %v1063 = vld [vmem:[%s4] sm:$0xf]
  %v1064 = vld [vmem:[%s4 + $0x4] sm:$0xf]
  %v1065 = vld [vmem:[%s4 + $0x8] sm:$0xf]
  %v1066 = vld [vmem:[%s4 + $0xc] sm:$0xf]
  %v1067 = vld [vmem:[%s4 + $0x10] sm:$0xf]
  %v1068 = vld [vmem:[%s4 + $0x14] sm:$0xf]
  %v1069 = vunpack.c.l.bf16 %v1063
  %v1070 = vunpack.c.l.bf16 %v1064
  %v1071 = vunpack.c.l.bf16 %v1065
  %v1072 = vunpack.c.l.bf16 %v1066
  %v1073 = vunpack.c.l.bf16 %v1067
  %v1074 = vunpack.c.l.bf16 %v1068
  %v1075 = vld [vmem:[%s5] sm:$0xf]
  %v1076 = vld [vmem:[%s5 + $0x4] sm:$0xf]
  %v1077 = vld [vmem:[%s5 + $0x8] sm:$0xf]
  %v1078 = vld [vmem:[%s5 + $0xc] sm:$0xf]
  %v1079 = vunpack.c.l.bf16 %v1075
  %v1080 = vunpack.c.l.bf16 %v1076
  %v1081 = vunpack.c.l.bf16 %v1077
  %v1082 = vunpack.c.l.bf16 %v1078
  %v1083 = vld [vmem:[%s6] sm:$0x1]
  %v1085 = vlaneseq
  %v1086 = vshrl.u32 %v1085, 7
  %v1087 = vsub.s32 0, %v1086
  %v1088 = vrot.slane %v1083, %v1087
  %vm1090 = vcmask 392192
  %v1092 = vsel %vm1090, %v1055, 0
  %v1095 = vsel %vm1090, %v1056, 0
  %v1098 = vsel %vm1090, %v1057, 0
  %v1101 = vsel %vm1090, %v1058, 0
  %v1104 = vsel %vm1090, %v1059, 0
  %v1107 = vsel %vm1090, %v1060, 0
  %v1110 = vsel %vm1090, %v1061, 0
  %v1113 = vsel %vm1090, %v1062, 0
  %1115 = vmatprep.subr.mxu0 0.0
  %1116 = vmatpush1.msra.mxu0 0.0
  %1117 = vmatprep.subr.mxu0 0.0
  %1118 = vmatpush1.msra.mxu0 0.0
  %1119 = vmatprep.subr.mxu0 0.0
  %1120 = vmatpush1.msra.mxu0 0.0
  %1121 = vmatprep.subr.mxu0 0.0
  %1122 = vmatpush1.msra.mxu0 0.0
  %1123 = vmatprep.subr.mxu0 0.0
  %1124 = vmatpush1.msra.mxu0 0.0
  %1125 = vmatprep.subr.mxu0 0.0
  %1126 = vmatpush1.msra.mxu0 0.0
  %1127 = vmatprep.subr.mxu0 0.0
  %1128 = vmatpush1.msra.mxu0 0.0
  %1129 = vmatprep.subr.mxu0 0.0
  %1130 = vmatpush1.msra.mxu0 0.0
  %1131 = vmatprep.subr.mxu0 0.0
  %1132 = vmatpush1.msra.mxu0 0.0
  %1133 = vmatprep.subr.mxu0 0.0
  %1134 = vmatpush1.msra.mxu0 0.0
  %1135 = vmatprep.subr.mxu0 0.0
  %1136 = vmatpush1.msra.mxu0 %v1074
  %1137 = vmatprep.subr.mxu0 0.0
  %1138 = vmatpush1.msra.mxu0 %v1073
  %1139 = vmatprep.subr.mxu0 0.0
  %1140 = vmatpush1.msra.mxu0 %v1072
  %1141 = vmatprep.subr.mxu0 0.0
  %1142 = vmatpush1.msra.mxu0 %v1071
  %1143 = vmatprep.subr.mxu0 0.0
  %1144 = vmatpush1.msra.mxu0 %v1070
  %1145 = vmatprep.subr.mxu0 0.0
  %1146 = vmatpush1.msra.mxu0 %v1069
  %1147 = vmatprep.subr.mxu0 0.0
  %1148 = vmatpush2.msra.mxu0 0.0
  %1149 = vmatprep.subr.mxu0 0.0
  %1150 = vmatpush2.msra.mxu0 0.0
  %1151 = vmatprep.subr.mxu0 0.0
  %1152 = vmatpush2.msra.mxu0 0.0
  %1153 = vmatprep.subr.mxu0 0.0
  %1154 = vmatpush2.msra.mxu0 0.0
  %1155 = vmatprep.subr.mxu0 0.0
  %1156 = vmatpush2.msra.mxu0 0.0
  %1157 = vmatprep.subr.mxu0 0.0
  %1158 = vmatpush2.msra.mxu0 0.0
  %1159 = vmatprep.subr.mxu0 0.0
  %1160 = vmatpush2.msra.mxu0 0.0
  %1161 = vmatprep.subr.mxu0 0.0
  %1162 = vmatpush2.msra.mxu0 0.0
  %1163 = vmatprep.subr.mxu0 0.0
  %1164 = vmatpush2.msra.mxu0 0.0
  %1165 = vmatprep.subr.mxu0 0.0
  %1166 = vmatpush2.msra.mxu0 0.0
  %1167 = vmatprep.subr.mxu0 0.0
  %1168 = vmatpush2.msra.mxu0 0.0
  %1169 = vmatprep.subr.mxu0 0.0
  %1170 = vmatpush2.msra.mxu0 0.0
  %1171 = vmatprep.subr.mxu0 0.0
  %1172 = vmatpush2.msra.mxu0 0.0
  %1173 = vmatprep.subr.mxu0 0.0
  %1174 = vmatpush2.msra.mxu0 0.0
  %1175 = vmatprep.subr.mxu0 0.0
  %1176 = vmatpush2.msra.mxu0 0.0
  %1177 = vmatprep.subr.mxu0 0.0
  %1178 = vmatpush2.msra.mxu0 0.0
  %1179 = vmatprep.mubr.f32.mxu0 0.0
  %1180 = vmatmul.mubr.f32.gmra.mxu0 %v1092
  %v1181 = vpop.f32.mrf.mxu0
  %v1182 = vadd.f32 %v1088, %v1181
  %v1183 = vpop.f32.mrf.mxu0
  %1184 = vmatprep.mubr.f32.mxu0 0.0
  %1185 = vmatmul.mubr.f32.gmra.mxu0 %v1095
  %v1186 = vpop.f32.mrf.mxu0
  %v1187 = vadd.f32 %v1088, %v1186
  %v1188 = vpop.f32.mrf.mxu0
  %1189 = vmatprep.mubr.f32.mxu0 0.0
  %1190 = vmatmul.mubr.f32.gmra.mxu0 %v1098
  %v1191 = vpop.f32.mrf.mxu0
  %v1192 = vadd.f32 %v1088, %v1191
  %v1193 = vpop.f32.mrf.mxu0
  %1194 = vmatprep.mubr.f32.mxu0 0.0
  %1195 = vmatmul.mubr.f32.gmra.mxu0 %v1101
  %v1196 = vpop.f32.mrf.mxu0
  %v1197 = vadd.f32 %v1088, %v1196
  %v1198 = vpop.f32.mrf.mxu0
  %1199 = vmatprep.mubr.f32.mxu0 0.0
  %1200 = vmatmul.mubr.f32.gmra.mxu0 %v1104
  %v1201 = vpop.f32.mrf.mxu0
  %v1202 = vadd.f32 %v1088, %v1201
  %v1203 = vpop.f32.mrf.mxu0
  %1204 = vmatprep.mubr.f32.mxu0 0.0
  %1205 = vmatmul.mubr.f32.gmra.mxu0 %v1107
  %v1206 = vpop.f32.mrf.mxu0
  %v1207 = vadd.f32 %v1088, %v1206
  %v1208 = vpop.f32.mrf.mxu0
  %1209 = vmatprep.mubr.f32.mxu0 0.0
  %1210 = vmatmul.mubr.f32.gmra.mxu0 %v1110
  %v1211 = vpop.f32.mrf.mxu0
  %v1212 = vadd.f32 %v1088, %v1211
  %v1213 = vpop.f32.mrf.mxu0
  %1214 = vmatprep.mubr.f32.mxu0 0.0
  %1215 = vmatmul.mubr.f32.gmra.mxu0 %v1113
  %v1216 = vpop.f32.mrf.mxu0
  %v1217 = vadd.f32 %v1088, %v1216
  %v1218 = vpop.f32.mrf.mxu0
  %1219 = vdwg.mxu0
  %1220 = vmatprep.subr.mxu0 0.0
  %1221 = vmatpush1.msra.mxu0 0.0
  %1222 = vmatprep.subr.mxu0 0.0
  %1223 = vmatpush1.msra.mxu0 0.0
  %1224 = vmatprep.subr.mxu0 0.0
  %1225 = vmatpush1.msra.mxu0 0.0
  %1226 = vmatprep.subr.mxu0 0.0
  %1227 = vmatpush1.msra.mxu0 0.0
  %1228 = vmatprep.subr.mxu0 0.0
  %1229 = vmatpush1.msra.mxu0 0.0
  %1230 = vmatprep.subr.mxu0 0.0
  %1231 = vmatpush1.msra.mxu0 0.0
  %1232 = vmatprep.subr.mxu0 0.0
  %1233 = vmatpush1.msra.mxu0 0.0
  %1234 = vmatprep.subr.mxu0 0.0
  %1235 = vmatpush1.msra.mxu0 0.0
  %1236 = vmatprep.subr.mxu0 0.0
  %1237 = vmatpush1.msra.mxu0 0.0
  %1238 = vmatprep.subr.mxu0 0.0
  %1239 = vmatpush1.msra.mxu0 0.0
  %1240 = vmatprep.subr.mxu0 0.0
  %1241 = vmatpush1.msra.mxu0 0.0
  %1242 = vmatprep.subr.mxu0 0.0
  %1243 = vmatpush1.msra.mxu0 0.0
  %1244 = vmatprep.subr.mxu0 0.0
  %1245 = vmatpush1.msra.mxu0 %v1082
  %1246 = vmatprep.subr.mxu0 0.0
  %1247 = vmatpush1.msra.mxu0 %v1081
  %1248 = vmatprep.subr.mxu0 0.0
  %1249 = vmatpush1.msra.mxu0 %v1080
  %1250 = vmatprep.subr.mxu0 0.0
  %1251 = vmatpush1.msra.mxu0 %v1079
  %1252 = vmatprep.subr.mxu0 0.0
  %1253 = vmatpush2.msra.mxu0 0.0
  %1254 = vmatprep.subr.mxu0 0.0
  %1255 = vmatpush2.msra.mxu0 0.0
  %1256 = vmatprep.subr.mxu0 0.0
  %1257 = vmatpush2.msra.mxu0 0.0
  %1258 = vmatprep.subr.mxu0 0.0
  %1259 = vmatpush2.msra.mxu0 0.0
  %1260 = vmatprep.subr.mxu0 0.0
  %1261 = vmatpush2.msra.mxu0 0.0
  %1262 = vmatprep.subr.mxu0 0.0
  %1263 = vmatpush2.msra.mxu0 0.0
  %1264 = vmatprep.subr.mxu0 0.0
  %1265 = vmatpush2.msra.mxu0 0.0
  %1266 = vmatprep.subr.mxu0 0.0
  %1267 = vmatpush2.msra.mxu0 0.0
  %1268 = vmatprep.subr.mxu0 0.0
  %1269 = vmatpush2.msra.mxu0 0.0
  %1270 = vmatprep.subr.mxu0 0.0
  %1271 = vmatpush2.msra.mxu0 0.0
  %1272 = vmatprep.subr.mxu0 0.0
  %1273 = vmatpush2.msra.mxu0 0.0
  %1274 = vmatprep.subr.mxu0 0.0
  %1275 = vmatpush2.msra.mxu0 0.0
  %1276 = vmatprep.subr.mxu0 0.0
  %1277 = vmatpush2.msra.mxu0 0.0
  %1278 = vmatprep.subr.mxu0 0.0
  %1279 = vmatpush2.msra.mxu0 0.0
  %1280 = vmatprep.subr.mxu0 0.0
  %1281 = vmatpush2.msra.mxu0 0.0
  %1282 = vmatprep.subr.mxu0 0.0
  %1283 = vmatpush2.msra.mxu0 0.0
  %1284 = vmatprep.mubr.f32.mxu0 0.0
  %1285 = vmatmul.mubr.f32.gmra.mxu0 %v199
  %v1286 = vpop.f32.mrf.mxu0
  %v1287 = vadd.f32 0.0, %v1286
  %v1288 = vpop.f32.mrf.mxu0
  %1289 = vdwg.mxu0
  %v1290 = vadd.f32 %v1182, %v1287
  %v1291 = vxor.u32 %v1290, 2147483648
  %v1292 = vmul.f32 %v1291, 1.442695
  %v1293 = vpow.pop %v1292
  %v1294 = vadd.f32 %v1293, 1.0
  %v1295 = vrcp.pop %v1294
  %v1296 = vmul.f32 1.0, %v1295
  %v1297 = vtanh.pop %v1290
  %v1298 = vmul.f32 %v1296, 0.0
  %1300 = vrot.lane.b32.xlu0 %v1297, 32
  %v1301 = vpop.permute.xlu0 %1300
  %v1303 = vmul.f32 %v1296, %v1301
  %1305 = vrot.lane.b32.xlu0 %v1303, 32
  %v1306 = vpop.permute.xlu0 %1305
  %v1308 = vadd.f32 %v1298, %v1306
  %v1309 = vtanh.pop %v1308
  %1311 = vrot.lane.b32.xlu0 %v1309, 32
  %v1312 = vpop.permute.xlu0 %1311
  %v1314 = vmul.f32 %v1296, %v1312
  %1316 = vrot.lane.b32.xlu0 %v1314, 64
  %v1317 = vpop.permute.xlu0 %1316
  %1319 = vst.msk [vmem:[#allocation2] sm:$0xff] %vm197, %v1317
  %v1320 = vsel %vm197, %v1317, 0
  %1322 = vmatprep.subr.mxu0 0.0
  %1323 = vmatpush1.msra.mxu0 0.0
  %1324 = vmatprep.subr.mxu0 0.0
  %1325 = vmatpush1.msra.mxu0 0.0
  %1326 = vmatprep.subr.mxu0 0.0
  %1327 = vmatpush1.msra.mxu0 0.0
  %1328 = vmatprep.subr.mxu0 0.0
  %1329 = vmatpush1.msra.mxu0 0.0
  %1330 = vmatprep.subr.mxu0 0.0
  %1331 = vmatpush1.msra.mxu0 0.0
  %1332 = vmatprep.subr.mxu0 0.0
  %1333 = vmatpush1.msra.mxu0 0.0
  %1334 = vmatprep.subr.mxu0 0.0
  %1335 = vmatpush1.msra.mxu0 0.0
  %1336 = vmatprep.subr.mxu0 0.0
  %1337 = vmatpush1.msra.mxu0 0.0
  %1338 = vmatprep.subr.mxu0 0.0
  %1339 = vmatpush1.msra.mxu0 0.0
  %1340 = vmatprep.subr.mxu0 0.0
  %1341 = vmatpush1.msra.mxu0 0.0
  %1342 = vmatprep.subr.mxu0 0.0
  %1343 = vmatpush1.msra.mxu0 0.0
  %1344 = vmatprep.subr.mxu0 0.0
  %1345 = vmatpush1.msra.mxu0 0.0
  %1346 = vmatprep.subr.mxu0 0.0
  %1347 = vmatpush1.msra.mxu0 %v1082
  %1348 = vmatprep.subr.mxu0 0.0
  %1349 = vmatpush1.msra.mxu0 %v1081
  %1350 = vmatprep.subr.mxu0 0.0
  %1351 = vmatpush1.msra.mxu0 %v1080
  %1352 = vmatprep.subr.mxu0 0.0
  %1353 = vmatpush1.msra.mxu0 %v1079
  %1354 = vmatprep.subr.mxu0 0.0
  %1355 = vmatpush2.msra.mxu0 0.0
  %1356 = vmatprep.subr.mxu0 0.0
  %1357 = vmatpush2.msra.mxu0 0.0
  %1358 = vmatprep.subr.mxu0 0.0
  %1359 = vmatpush2.msra.mxu0 0.0
  %1360 = vmatprep.subr.mxu0 0.0
  %1361 = vmatpush2.msra.mxu0 0.0
  %1362 = vmatprep.subr.mxu0 0.0
  %1363 = vmatpush2.msra.mxu0 0.0
  %1364 = vmatprep.subr.mxu0 0.0
  %1365 = vmatpush2.msra.mxu0 0.0
  %1366 = vmatprep.subr.mxu0 0.0
  %1367 = vmatpush2.msra.mxu0 0.0
  %1368 = vmatprep.subr.mxu0 0.0
  %1369 = vmatpush2.msra.mxu0 0.0
  %1370 = vmatprep.subr.mxu0 0.0
  %1371 = vmatpush2.msra.mxu0 0.0
  %1372 = vmatprep.subr.mxu0 0.0
  %1373 = vmatpush2.msra.mxu0 0.0
  %1374 = vmatprep.subr.mxu0 0.0
  %1375 = vmatpush2.msra.mxu0 0.0
  %1376 = vmatprep.subr.mxu0 0.0
  %1377 = vmatpush2.msra.mxu0 0.0
  %1378 = vmatprep.subr.mxu0 0.0
  %1379 = vmatpush2.msra.mxu0 0.0
  %1380 = vmatprep.subr.mxu0 0.0
  %1381 = vmatpush2.msra.mxu0 0.0
  %1382 = vmatprep.subr.mxu0 0.0
  %1383 = vmatpush2.msra.mxu0 0.0
  %1384 = vmatprep.subr.mxu0 0.0
  %1385 = vmatpush2.msra.mxu0 0.0
  %1386 = vmatprep.mubr.f32.mxu0 0.0
  %1387 = vmatmul.mubr.f32.gmra.mxu0 %v1320
  %v1388 = vpop.f32.mrf.mxu0
  %v1389 = vadd.f32 0.0, %v1388
  %v1390 = vpop.f32.mrf.mxu0
  %1391 = vdwg.mxu0
  %v1392 = vadd.f32 %v1187, %v1389
  %v1393 = vxor.u32 %v1392, 2147483648
  %v1394 = vmul.f32 %v1393, 1.442695
  %v1395 = vpow.pop %v1394
  %v1396 = vadd.f32 %v1395, 1.0
  %v1397 = vrcp.pop %v1396
  %v1398 = vmul.f32 1.0, %v1397
  %v1399 = vtanh.pop %v1392
  %v1400 = vmul.f32 %v1398, %v1308
  %1402 = vrot.lane.b32.xlu0 %v1399, 32
  %v1403 = vpop.permute.xlu0 %1402
  %v1405 = vmul.f32 %v1398, %v1403
  %1407 = vrot.lane.b32.xlu0 %v1405, 32
  %v1408 = vpop.permute.xlu0 %1407
  %v1410 = vadd.f32 %v1400, %v1408
  %v1411 = vtanh.pop %v1410
  %1413 = vrot.lane.b32.xlu0 %v1411, 32
  %v1414 = vpop.permute.xlu0 %1413
  %v1416 = vmul.f32 %v1398, %v1414
  %1418 = vrot.lane.b32.xlu0 %v1416, 64
  %v1419 = vpop.permute.xlu0 %1418
  %1421 = vst.msk [vmem:[#allocation2 + $0x8] sm:$0xff] %vm197, %v1419
  %v1422 = vsel %vm197, %v1419, 0
  %1424 = vmatprep.subr.mxu0 0.0
  %1425 = vmatpush1.msra.mxu0 0.0
  %1426 = vmatprep.subr.mxu0 0.0
  %1427 = vmatpush1.msra.mxu0 0.0
  %1428 = vmatprep.subr.mxu0 0.0
  %1429 = vmatpush1.msra.mxu0 0.0
  %1430 = vmatprep.subr.mxu0 0.0
  %1431 = vmatpush1.msra.mxu0 0.0
  %1432 = vmatprep.subr.mxu0 0.0
  %1433 = vmatpush1.msra.mxu0 0.0
  %1434 = vmatprep.subr.mxu0 0.0
  %1435 = vmatpush1.msra.mxu0 0.0
  %1436 = vmatprep.subr.mxu0 0.0
  %1437 = vmatpush1.msra.mxu0 0.0
  %1438 = vmatprep.subr.mxu0 0.0
  %1439 = vmatpush1.msra.mxu0 0.0
  %1440 = vmatprep.subr.mxu0 0.0
  %1441 = vmatpush1.msra.mxu0 0.0
  %1442 = vmatprep.subr.mxu0 0.0
  %1443 = vmatpush1.msra.mxu0 0.0
  %1444 = vmatprep.subr.mxu0 0.0
  %1445 = vmatpush1.msra.mxu0 0.0
  %1446 = vmatprep.subr.mxu0 0.0
  %1447 = vmatpush1.msra.mxu0 0.0
  %1448 = vmatprep.subr.mxu0 0.0
  %1449 = vmatpush1.msra.mxu0 %v1082
  %1450 = vmatprep.subr.mxu0 0.0
  %1451 = vmatpush1.msra.mxu0 %v1081
  %1452 = vmatprep.subr.mxu0 0.0
  %1453 = vmatpush1.msra.mxu0 %v1080
  %1454 = vmatprep.subr.mxu0 0.0
  %1455 = vmatpush1.msra.mxu0 %v1079
  %1456 = vmatprep.subr.mxu0 0.0
  %1457 = vmatpush2.msra.mxu0 0.0
  %1458 = vmatprep.subr.mxu0 0.0
  %1459 = vmatpush2.msra.mxu0 0.0
  %1460 = vmatprep.subr.mxu0 0.0
  %1461 = vmatpush2.msra.mxu0 0.0
  %1462 = vmatprep.subr.mxu0 0.0
  %1463 = vmatpush2.msra.mxu0 0.0
  %1464 = vmatprep.subr.mxu0 0.0
  %1465 = vmatpush2.msra.mxu0 0.0
  %1466 = vmatprep.subr.mxu0 0.0
  %1467 = vmatpush2.msra.mxu0 0.0
  %1468 = vmatprep.subr.mxu0 0.0
  %1469 = vmatpush2.msra.mxu0 0.0
  %1470 = vmatprep.subr.mxu0 0.0
  %1471 = vmatpush2.msra.mxu0 0.0
  %1472 = vmatprep.subr.mxu0 0.0
  %1473 = vmatpush2.msra.mxu0 0.0
  %1474 = vmatprep.subr.mxu0 0.0
  %1475 = vmatpush2.msra.mxu0 0.0
  %1476 = vmatprep.subr.mxu0 0.0
  %1477 = vmatpush2.msra.mxu0 0.0
  %1478 = vmatprep.subr.mxu0 0.0
  %1479 = vmatpush2.msra.mxu0 0.0
  %1480 = vmatprep.subr.mxu0 0.0
  %1481 = vmatpush2.msra.mxu0 0.0
  %1482 = vmatprep.subr.mxu0 0.0
  %1483 = vmatpush2.msra.mxu0 0.0
  %1484 = vmatprep.subr.mxu0 0.0
  %1485 = vmatpush2.msra.mxu0 0.0
  %1486 = vmatprep.subr.mxu0 0.0
  %1487 = vmatpush2.msra.mxu0 0.0
  %1488 = vmatprep.mubr.f32.mxu0 0.0
  %1489 = vmatmul.mubr.f32.gmra.mxu0 %v1422
  %v1490 = vpop.f32.mrf.mxu0
  %v1491 = vadd.f32 0.0, %v1490
  %v1492 = vpop.f32.mrf.mxu0
  %1493 = vdwg.mxu0
  %v1494 = vadd.f32 %v1192, %v1491
  %v1495 = vxor.u32 %v1494, 2147483648
  %v1496 = vmul.f32 %v1495, 1.442695
  %v1497 = vpow.pop %v1496
  %v1498 = vadd.f32 %v1497, 1.0
  %v1499 = vrcp.pop %v1498
  %v1500 = vmul.f32 1.0, %v1499
  %v1501 = vtanh.pop %v1494
  %v1502 = vmul.f32 %v1500, %v1410
  %1504 = vrot.lane.b32.xlu0 %v1501, 32
  %v1505 = vpop.permute.xlu0 %1504
  %v1507 = vmul.f32 %v1500, %v1505
  %1509 = vrot.lane.b32.xlu0 %v1507, 32
  %v1510 = vpop.permute.xlu0 %1509
  %v1512 = vadd.f32 %v1502, %v1510
  %v1513 = vtanh.pop %v1512
  %1515 = vrot.lane.b32.xlu0 %v1513, 32
  %v1516 = vpop.permute.xlu0 %1515
  %v1518 = vmul.f32 %v1500, %v1516
  %1520 = vrot.lane.b32.xlu0 %v1518, 64
  %v1521 = vpop.permute.xlu0 %1520
  %1523 = vst.msk [vmem:[#allocation2 + $0x10] sm:$0xff] %vm197, %v1521
  %v1524 = vsel %vm197, %v1521, 0
  %1526 = vmatprep.subr.mxu0 0.0
  %1527 = vmatpush1.msra.mxu0 0.0
  %1528 = vmatprep.subr.mxu0 0.0
  %1529 = vmatpush1.msra.mxu0 0.0
  %1530 = vmatprep.subr.mxu0 0.0
  %1531 = vmatpush1.msra.mxu0 0.0
  %1532 = vmatprep.subr.mxu0 0.0
  %1533 = vmatpush1.msra.mxu0 0.0
  %1534 = vmatprep.subr.mxu0 0.0
  %1535 = vmatpush1.msra.mxu0 0.0
  %1536 = vmatprep.subr.mxu0 0.0
  %1537 = vmatpush1.msra.mxu0 0.0
  %1538 = vmatprep.subr.mxu0 0.0
  %1539 = vmatpush1.msra.mxu0 0.0
  %1540 = vmatprep.subr.mxu0 0.0
  %1541 = vmatpush1.msra.mxu0 0.0
  %1542 = vmatprep.subr.mxu0 0.0
  %1543 = vmatpush1.msra.mxu0 0.0
  %1544 = vmatprep.subr.mxu0 0.0
  %1545 = vmatpush1.msra.mxu0 0.0
  %1546 = vmatprep.subr.mxu0 0.0
  %1547 = vmatpush1.msra.mxu0 0.0
  %1548 = vmatprep.subr.mxu0 0.0
  %1549 = vmatpush1.msra.mxu0 0.0
  %1550 = vmatprep.subr.mxu0 0.0
  %1551 = vmatpush1.msra.mxu0 %v1082
  %1552 = vmatprep.subr.mxu0 0.0
  %1553 = vmatpush1.msra.mxu0 %v1081
  %1554 = vmatprep.subr.mxu0 0.0
  %1555 = vmatpush1.msra.mxu0 %v1080
  %1556 = vmatprep.subr.mxu0 0.0
  %1557 = vmatpush1.msra.mxu0 %v1079
  %1558 = vmatprep.subr.mxu0 0.0
  %1559 = vmatpush2.msra.mxu0 0.0
  %1560 = vmatprep.subr.mxu0 0.0
  %1561 = vmatpush2.msra.mxu0 0.0
  %1562 = vmatprep.subr.mxu0 0.0
  %1563 = vmatpush2.msra.mxu0 0.0
  %1564 = vmatprep.subr.mxu0 0.0
  %1565 = vmatpush2.msra.mxu0 0.0
  %1566 = vmatprep.subr.mxu0 0.0
  %1567 = vmatpush2.msra.mxu0 0.0
  %1568 = vmatprep.subr.mxu0 0.0
  %1569 = vmatpush2.msra.mxu0 0.0
  %1570 = vmatprep.subr.mxu0 0.0
  %1571 = vmatpush2.msra.mxu0 0.0
  %1572 = vmatprep.subr.mxu0 0.0
  %1573 = vmatpush2.msra.mxu0 0.0
  %1574 = vmatprep.subr.mxu0 0.0
  %1575 = vmatpush2.msra.mxu0 0.0
  %1576 = vmatprep.subr.mxu0 0.0
  %1577 = vmatpush2.msra.mxu0 0.0
  %1578 = vmatprep.subr.mxu0 0.0
  %1579 = vmatpush2.msra.mxu0 0.0
  %1580 = vmatprep.subr.mxu0 0.0
  %1581 = vmatpush2.msra.mxu0 0.0
  %1582 = vmatprep.subr.mxu0 0.0
  %1583 = vmatpush2.msra.mxu0 0.0
  %1584 = vmatprep.subr.mxu0 0.0
  %1585 = vmatpush2.msra.mxu0 0.0
  %1586 = vmatprep.subr.mxu0 0.0
  %1587 = vmatpush2.msra.mxu0 0.0
  %1588 = vmatprep.subr.mxu0 0.0
  %1589 = vmatpush2.msra.mxu0 0.0
  %1590 = vmatprep.mubr.f32.mxu0 0.0
  %1591 = vmatmul.mubr.f32.gmra.mxu0 %v1524
  %v1592 = vpop.f32.mrf.mxu0
  %v1593 = vadd.f32 0.0, %v1592
  %v1594 = vpop.f32.mrf.mxu0
  %1595 = vdwg.mxu0
  %v1596 = vadd.f32 %v1197, %v1593
  %v1597 = vxor.u32 %v1596, 2147483648
  %v1598 = vmul.f32 %v1597, 1.442695
  %v1599 = vpow.pop %v1598
  %v1600 = vadd.f32 %v1599, 1.0
  %v1601 = vrcp.pop %v1600
  %v1602 = vmul.f32 1.0, %v1601
  %v1603 = vtanh.pop %v1596
  %v1604 = vmul.f32 %v1602, %v1512
  %1606 = vrot.lane.b32.xlu0 %v1603, 32
  %v1607 = vpop.permute.xlu0 %1606
  %v1609 = vmul.f32 %v1602, %v1607
  %1611 = vrot.lane.b32.xlu0 %v1609, 32
  %v1612 = vpop.permute.xlu0 %1611
  %v1614 = vadd.f32 %v1604, %v1612
  %v1615 = vtanh.pop %v1614
  %1617 = vrot.lane.b32.xlu0 %v1615, 32
  %v1618 = vpop.permute.xlu0 %1617
  %v1620 = vmul.f32 %v1602, %v1618
  %1622 = vrot.lane.b32.xlu0 %v1620, 64
  %v1623 = vpop.permute.xlu0 %1622
  %1625 = vst.msk [vmem:[#allocation2 + $0x18] sm:$0xff] %vm197, %v1623
  %v1626 = vsel %vm197, %v1623, 0
  %1628 = vmatprep.subr.mxu0 0.0
  %1629 = vmatpush1.msra.mxu0 0.0
  %1630 = vmatprep.subr.mxu0 0.0
  %1631 = vmatpush1.msra.mxu0 0.0
  %1632 = vmatprep.subr.mxu0 0.0
  %1633 = vmatpush1.msra.mxu0 0.0
  %1634 = vmatprep.subr.mxu0 0.0
  %1635 = vmatpush1.msra.mxu0 0.0
  %1636 = vmatprep.subr.mxu0 0.0
  %1637 = vmatpush1.msra.mxu0 0.0
  %1638 = vmatprep.subr.mxu0 0.0
  %1639 = vmatpush1.msra.mxu0 0.0
  %1640 = vmatprep.subr.mxu0 0.0
  %1641 = vmatpush1.msra.mxu0 0.0
  %1642 = vmatprep.subr.mxu0 0.0
  %1643 = vmatpush1.msra.mxu0 0.0
  %1644 = vmatprep.subr.mxu0 0.0
  %1645 = vmatpush1.msra.mxu0 0.0
  %1646 = vmatprep.subr.mxu0 0.0
  %1647 = vmatpush1.msra.mxu0 0.0
  %1648 = vmatprep.subr.mxu0 0.0
  %1649 = vmatpush1.msra.mxu0 0.0
  %1650 = vmatprep.subr.mxu0 0.0
  %1651 = vmatpush1.msra.mxu0 0.0
  %1652 = vmatprep.subr.mxu0 0.0
  %1653 = vmatpush1.msra.mxu0 %v1082
  %1654 = vmatprep.subr.mxu0 0.0
  %1655 = vmatpush1.msra.mxu0 %v1081
  %1656 = vmatprep.subr.mxu0 0.0
  %1657 = vmatpush1.msra.mxu0 %v1080
  %1658 = vmatprep.subr.mxu0 0.0
  %1659 = vmatpush1.msra.mxu0 %v1079
  %1660 = vmatprep.subr.mxu0 0.0
  %1661 = vmatpush2.msra.mxu0 0.0
  %1662 = vmatprep.subr.mxu0 0.0
  %1663 = vmatpush2.msra.mxu0 0.0
  %1664 = vmatprep.subr.mxu0 0.0
  %1665 = vmatpush2.msra.mxu0 0.0
  %1666 = vmatprep.subr.mxu0 0.0
  %1667 = vmatpush2.msra.mxu0 0.0
  %1668 = vmatprep.subr.mxu0 0.0
  %1669 = vmatpush2.msra.mxu0 0.0
  %1670 = vmatprep.subr.mxu0 0.0
  %1671 = vmatpush2.msra.mxu0 0.0
  %1672 = vmatprep.subr.mxu0 0.0
  %1673 = vmatpush2.msra.mxu0 0.0
  %1674 = vmatprep.subr.mxu0 0.0
  %1675 = vmatpush2.msra.mxu0 0.0
  %1676 = vmatprep.subr.mxu0 0.0
  %1677 = vmatpush2.msra.mxu0 0.0
  %1678 = vmatprep.subr.mxu0 0.0
  %1679 = vmatpush2.msra.mxu0 0.0
  %1680 = vmatprep.subr.mxu0 0.0
  %1681 = vmatpush2.msra.mxu0 0.0
  %1682 = vmatprep.subr.mxu0 0.0
  %1683 = vmatpush2.msra.mxu0 0.0
  %1684 = vmatprep.subr.mxu0 0.0
  %1685 = vmatpush2.msra.mxu0 0.0
  %1686 = vmatprep.subr.mxu0 0.0
  %1687 = vmatpush2.msra.mxu0 0.0
  %1688 = vmatprep.subr.mxu0 0.0
  %1689 = vmatpush2.msra.mxu0 0.0
  %1690 = vmatprep.subr.mxu0 0.0
  %1691 = vmatpush2.msra.mxu0 0.0
  %1692 = vmatprep.mubr.f32.mxu0 0.0
  %1693 = vmatmul.mubr.f32.gmra.mxu0 %v1626
  %v1694 = vpop.f32.mrf.mxu0
  %v1695 = vadd.f32 0.0, %v1694
  %v1696 = vpop.f32.mrf.mxu0
  %1697 = vdwg.mxu0
  %v1698 = vadd.f32 %v1202, %v1695
  %v1699 = vxor.u32 %v1698, 2147483648
  %v1700 = vmul.f32 %v1699, 1.442695
  %v1701 = vpow.pop %v1700
  %v1702 = vadd.f32 %v1701, 1.0
  %v1703 = vrcp.pop %v1702
  %v1704 = vmul.f32 1.0, %v1703
  %v1705 = vtanh.pop %v1698
  %v1706 = vmul.f32 %v1704, %v1614
  %1708 = vrot.lane.b32.xlu0 %v1705, 32
  %v1709 = vpop.permute.xlu0 %1708
  %v1711 = vmul.f32 %v1704, %v1709
  %1713 = vrot.lane.b32.xlu0 %v1711, 32
  %v1714 = vpop.permute.xlu0 %1713
  %v1716 = vadd.f32 %v1706, %v1714
  %v1717 = vtanh.pop %v1716
  %1719 = vrot.lane.b32.xlu0 %v1717, 32
  %v1720 = vpop.permute.xlu0 %1719
  %v1722 = vmul.f32 %v1704, %v1720
  %1724 = vrot.lane.b32.xlu0 %v1722, 64
  %v1725 = vpop.permute.xlu0 %1724
  %1727 = vst.msk [vmem:[#allocation2 + $0x20] sm:$0xff] %vm197, %v1725
  %v1728 = vsel %vm197, %v1725, 0
  %1730 = vmatprep.subr.mxu0 0.0
  %1731 = vmatpush1.msra.mxu0 0.0
  %1732 = vmatprep.subr.mxu0 0.0
  %1733 = vmatpush1.msra.mxu0 0.0
  %1734 = vmatprep.subr.mxu0 0.0
  %1735 = vmatpush1.msra.mxu0 0.0
  %1736 = vmatprep.subr.mxu0 0.0
  %1737 = vmatpush1.msra.mxu0 0.0
  %1738 = vmatprep.subr.mxu0 0.0
  %1739 = vmatpush1.msra.mxu0 0.0
  %1740 = vmatprep.subr.mxu0 0.0
  %1741 = vmatpush1.msra.mxu0 0.0
  %1742 = vmatprep.subr.mxu0 0.0
  %1743 = vmatpush1.msra.mxu0 0.0
  %1744 = vmatprep.subr.mxu0 0.0
  %1745 = vmatpush1.msra.mxu0 0.0
  %1746 = vmatprep.subr.mxu0 0.0
  %1747 = vmatpush1.msra.mxu0 0.0
  %1748 = vmatprep.subr.mxu0 0.0
  %1749 = vmatpush1.msra.mxu0 0.0
  %1750 = vmatprep.subr.mxu0 0.0
  %1751 = vmatpush1.msra.mxu0 0.0
  %1752 = vmatprep.subr.mxu0 0.0
  %1753 = vmatpush1.msra.mxu0 0.0
  %1754 = vmatprep.subr.mxu0 0.0
  %1755 = vmatpush1.msra.mxu0 %v1082
  %1756 = vmatprep.subr.mxu0 0.0
  %1757 = vmatpush1.msra.mxu0 %v1081
  %1758 = vmatprep.subr.mxu0 0.0
  %1759 = vmatpush1.msra.mxu0 %v1080
  %1760 = vmatprep.subr.mxu0 0.0
  %1761 = vmatpush1.msra.mxu0 %v1079
  %1762 = vmatprep.subr.mxu0 0.0
  %1763 = vmatpush2.msra.mxu0 0.0
  %1764 = vmatprep.subr.mxu0 0.0
  %1765 = vmatpush2.msra.mxu0 0.0
  %1766 = vmatprep.subr.mxu0 0.0
  %1767 = vmatpush2.msra.mxu0 0.0
  %1768 = vmatprep.subr.mxu0 0.0
  %1769 = vmatpush2.msra.mxu0 0.0
  %1770 = vmatprep.subr.mxu0 0.0
  %1771 = vmatpush2.msra.mxu0 0.0
  %1772 = vmatprep.subr.mxu0 0.0
  %1773 = vmatpush2.msra.mxu0 0.0
  %1774 = vmatprep.subr.mxu0 0.0
  %1775 = vmatpush2.msra.mxu0 0.0
  %1776 = vmatprep.subr.mxu0 0.0
  %1777 = vmatpush2.msra.mxu0 0.0
  %1778 = vmatprep.subr.mxu0 0.0
  %1779 = vmatpush2.msra.mxu0 0.0
  %1780 = vmatprep.subr.mxu0 0.0
  %1781 = vmatpush2.msra.mxu0 0.0
  %1782 = vmatprep.subr.mxu0 0.0
  %1783 = vmatpush2.msra.mxu0 0.0
  %1784 = vmatprep.subr.mxu0 0.0
  %1785 = vmatpush2.msra.mxu0 0.0
  %1786 = vmatprep.subr.mxu0 0.0
  %1787 = vmatpush2.msra.mxu0 0.0
  %1788 = vmatprep.subr.mxu0 0.0
  %1789 = vmatpush2.msra.mxu0 0.0
  %1790 = vmatprep.subr.mxu0 0.0
  %1791 = vmatpush2.msra.mxu0 0.0
  %1792 = vmatprep.subr.mxu0 0.0
  %1793 = vmatpush2.msra.mxu0 0.0
  %1794 = vmatprep.mubr.f32.mxu0 0.0
  %1795 = vmatmul.mubr.f32.gmra.mxu0 %v1728
  %v1796 = vpop.f32.mrf.mxu0
  %v1797 = vadd.f32 0.0, %v1796
  %v1798 = vpop.f32.mrf.mxu0
  %1799 = vdwg.mxu0
  %v1800 = vadd.f32 %v1207, %v1797
  %v1801 = vxor.u32 %v1800, 2147483648
  %v1802 = vmul.f32 %v1801, 1.442695
  %v1803 = vpow.pop %v1802
  %v1804 = vadd.f32 %v1803, 1.0
  %v1805 = vrcp.pop %v1804
  %v1806 = vmul.f32 1.0, %v1805
  %v1807 = vtanh.pop %v1800
  %v1808 = vmul.f32 %v1806, %v1716
  %1810 = vrot.lane.b32.xlu0 %v1807, 32
  %v1811 = vpop.permute.xlu0 %1810
  %v1813 = vmul.f32 %v1806, %v1811
  %1815 = vrot.lane.b32.xlu0 %v1813, 32
  %v1816 = vpop.permute.xlu0 %1815
  %v1818 = vadd.f32 %v1808, %v1816
  %v1819 = vtanh.pop %v1818
  %1821 = vrot.lane.b32.xlu0 %v1819, 32
  %v1822 = vpop.permute.xlu0 %1821
  %v1824 = vmul.f32 %v1806, %v1822
  %1826 = vrot.lane.b32.xlu0 %v1824, 64
  %v1827 = vpop.permute.xlu0 %1826
  %1829 = vst.msk [vmem:[#allocation2 + $0x28] sm:$0xff] %vm197, %v1827
  %v1830 = vsel %vm197, %v1827, 0
  %1832 = vmatprep.subr.mxu0 0.0
  %1833 = vmatpush1.msra.mxu0 0.0
  %1834 = vmatprep.subr.mxu0 0.0
  %1835 = vmatpush1.msra.mxu0 0.0
  %1836 = vmatprep.subr.mxu0 0.0
  %1837 = vmatpush1.msra.mxu0 0.0
  %1838 = vmatprep.subr.mxu0 0.0
  %1839 = vmatpush1.msra.mxu0 0.0
  %1840 = vmatprep.subr.mxu0 0.0
  %1841 = vmatpush1.msra.mxu0 0.0
  %1842 = vmatprep.subr.mxu0 0.0
  %1843 = vmatpush1.msra.mxu0 0.0
  %1844 = vmatprep.subr.mxu0 0.0
  %1845 = vmatpush1.msra.mxu0 0.0
  %1846 = vmatprep.subr.mxu0 0.0
  %1847 = vmatpush1.msra.mxu0 0.0
  %1848 = vmatprep.subr.mxu0 0.0
  %1849 = vmatpush1.msra.mxu0 0.0
  %1850 = vmatprep.subr.mxu0 0.0
  %1851 = vmatpush1.msra.mxu0 0.0
  %1852 = vmatprep.subr.mxu0 0.0
  %1853 = vmatpush1.msra.mxu0 0.0
  %1854 = vmatprep.subr.mxu0 0.0
  %1855 = vmatpush1.msra.mxu0 0.0
  %1856 = vmatprep.subr.mxu0 0.0
  %1857 = vmatpush1.msra.mxu0 %v1082
  %1858 = vmatprep.subr.mxu0 0.0
  %1859 = vmatpush1.msra.mxu0 %v1081
  %1860 = vmatprep.subr.mxu0 0.0
  %1861 = vmatpush1.msra.mxu0 %v1080
  %1862 = vmatprep.subr.mxu0 0.0
  %1863 = vmatpush1.msra.mxu0 %v1079
  %1864 = vmatprep.subr.mxu0 0.0
  %1865 = vmatpush2.msra.mxu0 0.0
  %1866 = vmatprep.subr.mxu0 0.0
  %1867 = vmatpush2.msra.mxu0 0.0
  %1868 = vmatprep.subr.mxu0 0.0
  %1869 = vmatpush2.msra.mxu0 0.0
  %1870 = vmatprep.subr.mxu0 0.0
  %1871 = vmatpush2.msra.mxu0 0.0
  %1872 = vmatprep.subr.mxu0 0.0
  %1873 = vmatpush2.msra.mxu0 0.0
  %1874 = vmatprep.subr.mxu0 0.0
  %1875 = vmatpush2.msra.mxu0 0.0
  %1876 = vmatprep.subr.mxu0 0.0
  %1877 = vmatpush2.msra.mxu0 0.0
  %1878 = vmatprep.subr.mxu0 0.0
  %1879 = vmatpush2.msra.mxu0 0.0
  %1880 = vmatprep.subr.mxu0 0.0
  %1881 = vmatpush2.msra.mxu0 0.0
  %1882 = vmatprep.subr.mxu0 0.0
  %1883 = vmatpush2.msra.mxu0 0.0
  %1884 = vmatprep.subr.mxu0 0.0
  %1885 = vmatpush2.msra.mxu0 0.0
  %1886 = vmatprep.subr.mxu0 0.0
  %1887 = vmatpush2.msra.mxu0 0.0
  %1888 = vmatprep.subr.mxu0 0.0
  %1889 = vmatpush2.msra.mxu0 0.0
  %1890 = vmatprep.subr.mxu0 0.0
  %1891 = vmatpush2.msra.mxu0 0.0
  %1892 = vmatprep.subr.mxu0 0.0
  %1893 = vmatpush2.msra.mxu0 0.0
  %1894 = vmatprep.subr.mxu0 0.0
  %1895 = vmatpush2.msra.mxu0 0.0
  %1896 = vmatprep.mubr.f32.mxu0 0.0
  %1897 = vmatmul.mubr.f32.gmra.mxu0 %v1830
  %v1898 = vpop.f32.mrf.mxu0
  %v1899 = vadd.f32 0.0, %v1898
  %v1900 = vpop.f32.mrf.mxu0
  %1901 = vdwg.mxu0
  %v1902 = vadd.f32 %v1212, %v1899
  %v1903 = vxor.u32 %v1902, 2147483648
  %v1904 = vmul.f32 %v1903, 1.442695
  %v1905 = vpow.pop %v1904
  %v1906 = vadd.f32 %v1905, 1.0
  %v1907 = vrcp.pop %v1906
  %v1908 = vmul.f32 1.0, %v1907
  %v1909 = vtanh.pop %v1902
  %v1910 = vmul.f32 %v1908, %v1818
  %1912 = vrot.lane.b32.xlu0 %v1909, 32
  %v1913 = vpop.permute.xlu0 %1912
  %v1915 = vmul.f32 %v1908, %v1913
  %1917 = vrot.lane.b32.xlu0 %v1915, 32
  %v1918 = vpop.permute.xlu0 %1917
  %v1920 = vadd.f32 %v1910, %v1918
  %v1921 = vtanh.pop %v1920
  %1923 = vrot.lane.b32.xlu0 %v1921, 32
  %v1924 = vpop.permute.xlu0 %1923
  %v1926 = vmul.f32 %v1908, %v1924
  %1928 = vrot.lane.b32.xlu0 %v1926, 64
  %v1929 = vpop.permute.xlu0 %1928
  %1931 = vst.msk [vmem:[#allocation2 + $0x30] sm:$0xff] %vm197, %v1929
  %v1932 = vsel %vm197, %v1929, 0
  %1934 = vmatprep.subr.mxu0 0.0
  %1935 = vmatpush1.msra.mxu0 0.0
  %1936 = vmatprep.subr.mxu0 0.0
  %1937 = vmatpush1.msra.mxu0 0.0
  %1938 = vmatprep.subr.mxu0 0.0
  %1939 = vmatpush1.msra.mxu0 0.0
  %1940 = vmatprep.subr.mxu0 0.0
  %1941 = vmatpush1.msra.mxu0 0.0
  %1942 = vmatprep.subr.mxu0 0.0
  %1943 = vmatpush1.msra.mxu0 0.0
  %1944 = vmatprep.subr.mxu0 0.0
  %1945 = vmatpush1.msra.mxu0 0.0
  %1946 = vmatprep.subr.mxu0 0.0
  %1947 = vmatpush1.msra.mxu0 0.0
  %1948 = vmatprep.subr.mxu0 0.0
  %1949 = vmatpush1.msra.mxu0 0.0
  %1950 = vmatprep.subr.mxu0 0.0
  %1951 = vmatpush1.msra.mxu0 0.0
  %1952 = vmatprep.subr.mxu0 0.0
  %1953 = vmatpush1.msra.mxu0 0.0
  %1954 = vmatprep.subr.mxu0 0.0
  %1955 = vmatpush1.msra.mxu0 0.0
  %1956 = vmatprep.subr.mxu0 0.0
  %1957 = vmatpush1.msra.mxu0 0.0
  %1958 = vmatprep.subr.mxu0 0.0
  %1959 = vmatpush1.msra.mxu0 %v1082
  %1960 = vmatprep.subr.mxu0 0.0
  %1961 = vmatpush1.msra.mxu0 %v1081
  %1962 = vmatprep.subr.mxu0 0.0
  %1963 = vmatpush1.msra.mxu0 %v1080
  %1964 = vmatprep.subr.mxu0 0.0
  %1965 = vmatpush1.msra.mxu0 %v1079
  %1966 = vmatprep.subr.mxu0 0.0
  %1967 = vmatpush2.msra.mxu0 0.0
  %1968 = vmatprep.subr.mxu0 0.0
  %1969 = vmatpush2.msra.mxu0 0.0
  %1970 = vmatprep.subr.mxu0 0.0
  %1971 = vmatpush2.msra.mxu0 0.0
  %1972 = vmatprep.subr.mxu0 0.0
  %1973 = vmatpush2.msra.mxu0 0.0
  %1974 = vmatprep.subr.mxu0 0.0
  %1975 = vmatpush2.msra.mxu0 0.0
  %1976 = vmatprep.subr.mxu0 0.0
  %1977 = vmatpush2.msra.mxu0 0.0
  %1978 = vmatprep.subr.mxu0 0.0
  %1979 = vmatpush2.msra.mxu0 0.0
  %1980 = vmatprep.subr.mxu0 0.0
  %1981 = vmatpush2.msra.mxu0 0.0
  %1982 = vmatprep.subr.mxu0 0.0
  %1983 = vmatpush2.msra.mxu0 0.0
  %1984 = vmatprep.subr.mxu0 0.0
  %1985 = vmatpush2.msra.mxu0 0.0
  %1986 = vmatprep.subr.mxu0 0.0
  %1987 = vmatpush2.msra.mxu0 0.0
  %1988 = vmatprep.subr.mxu0 0.0
  %1989 = vmatpush2.msra.mxu0 0.0
  %1990 = vmatprep.subr.mxu0 0.0
  %1991 = vmatpush2.msra.mxu0 0.0
  %1992 = vmatprep.subr.mxu0 0.0
  %1993 = vmatpush2.msra.mxu0 0.0
  %1994 = vmatprep.subr.mxu0 0.0
  %1995 = vmatpush2.msra.mxu0 0.0
  %1996 = vmatprep.subr.mxu0 0.0
  %1997 = vmatpush2.msra.mxu0 0.0
  %1998 = vmatprep.mubr.f32.mxu0 0.0
  %1999 = vmatmul.mubr.f32.gmra.mxu0 %v1932
  %v2000 = vpop.f32.mrf.mxu0
  %v2001 = vadd.f32 0.0, %v2000
  %v2002 = vpop.f32.mrf.mxu0
  %2003 = vdwg.mxu0
  %v2004 = vadd.f32 %v1217, %v2001
  %v2005 = vxor.u32 %v2004, 2147483648
  %v2006 = vmul.f32 %v2005, 1.442695
  %v2007 = vpow.pop %v2006
  %v2008 = vadd.f32 %v2007, 1.0
  %v2009 = vrcp.pop %v2008
  %v2010 = vmul.f32 1.0, %v2009
  %v2011 = vtanh.pop %v2004
  %v2012 = vmul.f32 %v2010, %v1920
  %2014 = vrot.lane.b32.xlu0 %v2011, 32
  %v2015 = vpop.permute.xlu0 %2014
  %v2017 = vmul.f32 %v2010, %v2015
  %2019 = vrot.lane.b32.xlu0 %v2017, 32
  %v2020 = vpop.permute.xlu0 %2019
  %v2022 = vadd.f32 %v2012, %v2020
  %v2023 = vtanh.pop %v2022
  %2025 = vrot.lane.b32.xlu0 %v2023, 32
  %v2026 = vpop.permute.xlu0 %2025
  %v2028 = vmul.f32 %v2010, %v2026
  %2030 = vrot.lane.b32.xlu0 %v2028, 64
  %v2031 = vpop.permute.xlu0 %2030
  %2033 = vst.msk [vmem:[#allocation2 + $0x38] sm:$0xff] %vm197, %v2031
  %v2034 = vld [vmem:[#allocation2] sm:$0xff]
  %v2035 = vld [vmem:[#allocation2 + $0x8] sm:$0xff]
  %v2036 = vld [vmem:[#allocation2 + $0x10] sm:$0xff]
  %v2037 = vld [vmem:[#allocation2 + $0x18] sm:$0xff]
  %v2038 = vld [vmem:[#allocation2 + $0x20] sm:$0xff]
  %v2039 = vld [vmem:[#allocation2 + $0x28] sm:$0xff]
  %v2040 = vld [vmem:[#allocation2 + $0x30] sm:$0xff]
  %v2041 = vld [vmem:[#allocation2 + $0x38] sm:$0xff]
  %2042 = vrot.lane.b32.xlu0 %v1055, 32
  %v2043 = vpop.permute.xlu0 %2042
  %2044 = vrot.lane.b32.xlu0 %v1056, 32
  %v2045 = vpop.permute.xlu0 %2044
  %2046 = vrot.lane.b32.xlu0 %v1057, 32
  %v2047 = vpop.permute.xlu0 %2046
  %2048 = vrot.lane.b32.xlu0 %v1058, 32
  %v2049 = vpop.permute.xlu0 %2048
  %2050 = vrot.lane.b32.xlu0 %v1059, 32
  %v2051 = vpop.permute.xlu0 %2050
  %2052 = vrot.lane.b32.xlu0 %v1060, 32
  %v2053 = vpop.permute.xlu0 %2052
  %2054 = vrot.lane.b32.xlu0 %v1061, 32
  %v2055 = vpop.permute.xlu0 %2054
  %2056 = vrot.lane.b32.xlu0 %v1062, 32
  %v2057 = vpop.permute.xlu0 %2056
  %v2066 = vsel %vm197, %v2034, %v2043
  %v2067 = vsel %vm197, %v2035, %v2045
  %v2068 = vsel %vm197, %v2036, %v2047
  %v2069 = vsel %vm197, %v2037, %v2049
  %v2070 = vsel %vm197, %v2038, %v2051
  %v2071 = vsel %vm197, %v2039, %v2053
  %v2072 = vsel %vm197, %v2040, %v2055
  %v2073 = vsel %vm197, %v2041, %v2057
  %v2074 = vmax.f32 %v2066, 0.0
  %v2075 = vmax.f32 %v2067, 0.0
  %v2076 = vmax.f32 %v2068, 0.0
  %v2077 = vmax.f32 %v2069, 0.0
  %v2078 = vmax.f32 %v2070, 0.0
  %v2079 = vmax.f32 %v2071, 0.0
  %v2080 = vmax.f32 %v2072, 0.0
  %v2081 = vmax.f32 %v2073, 0.0
  %v2082 = vld [vmem:[%s7] sm:$0xff]
  %v2083 = vld [vmem:[%s7 + $0x8] sm:$0xff]
  %v2084 = vld [vmem:[%s7 + $0x10] sm:$0xff]
  %v2085 = vld [vmem:[%s7 + $0x18] sm:$0xff]
  %v2086 = vld [vmem:[%s7 + $0x20] sm:$0xff]
  %v2087 = vld [vmem:[%s7 + $0x28] sm:$0xff]
  %v2088 = vld [vmem:[%s7 + $0x30] sm:$0xff]
  %v2089 = vld [vmem:[%s7 + $0x38] sm:$0xff]
  %v2090 = vld [vmem:[%s7 + $0x40] sm:$0xff]
  %v2091 = vld [vmem:[%s7 + $0x48] sm:$0xff]
  %v2092 = vld [vmem:[%s7 + $0x50] sm:$0xff]
  %v2093 = vld [vmem:[%s7 + $0x58] sm:$0xff]
  %v2094 = vld [vmem:[%s7 + $0x60] sm:$0xff]
  %v2095 = vld [vmem:[%s7 + $0x68] sm:$0xff]
  %v2096 = vld [vmem:[%s7 + $0x70] sm:$0xff]
  %v2097 = vld [vmem:[%s7 + $0x78] sm:$0xff]
  %v2098 = vld [vmem:[%s7 + $0x80] sm:$0xff]
  %v2099 = vld [vmem:[%s7 + $0x88] sm:$0xff]
  %v2100 = vld [vmem:[%s7 + $0x90] sm:$0xff]
  %v2101 = vld [vmem:[%s7 + $0x98] sm:$0xff]
  %v2102 = vunpack.c.l.bf16 %v2082
  %v2103 = vunpack.c.h.bf16 %v2082
  %v2104 = vunpack.c.l.bf16 %v2083
  %v2105 = vunpack.c.h.bf16 %v2083
  %v2106 = vunpack.c.l.bf16 %v2084
  %v2107 = vunpack.c.h.bf16 %v2084
  %v2108 = vunpack.c.l.bf16 %v2085
  %v2109 = vunpack.c.h.bf16 %v2085
  %v2110 = vunpack.c.l.bf16 %v2086
  %v2111 = vunpack.c.h.bf16 %v2086
  %v2112 = vunpack.c.l.bf16 %v2087
  %v2113 = vunpack.c.h.bf16 %v2087
  %v2114 = vunpack.c.l.bf16 %v2088
  %v2115 = vunpack.c.h.bf16 %v2088
  %v2116 = vunpack.c.l.bf16 %v2089
  %v2117 = vunpack.c.h.bf16 %v2089
  %v2118 = vunpack.c.l.bf16 %v2090
  %v2119 = vunpack.c.h.bf16 %v2090
  %v2120 = vunpack.c.l.bf16 %v2091
  %v2121 = vunpack.c.h.bf16 %v2091
  %v2122 = vunpack.c.l.bf16 %v2092
  %v2123 = vunpack.c.h.bf16 %v2092
  %v2124 = vunpack.c.l.bf16 %v2093
  %v2125 = vunpack.c.h.bf16 %v2093
  %v2126 = vunpack.c.l.bf16 %v2094
  %v2127 = vunpack.c.h.bf16 %v2094
  %v2128 = vunpack.c.l.bf16 %v2095
  %v2129 = vunpack.c.h.bf16 %v2095
  %v2130 = vunpack.c.l.bf16 %v2096
  %v2131 = vunpack.c.h.bf16 %v2096
  %v2132 = vunpack.c.l.bf16 %v2097
  %v2133 = vunpack.c.h.bf16 %v2097
  %v2134 = vunpack.c.l.bf16 %v2098
  %v2135 = vunpack.c.h.bf16 %v2098
  %v2136 = vunpack.c.l.bf16 %v2099
  %v2137 = vunpack.c.h.bf16 %v2099
  %v2138 = vunpack.c.l.bf16 %v2100
  %v2139 = vunpack.c.h.bf16 %v2100
  %v2140 = vunpack.c.l.bf16 %v2101
  %v2141 = vunpack.c.h.bf16 %v2101
  %v2142 = vld [vmem:[%s8] sm:$0xf]
  %v2144 = vlaneseq
  %v2145 = vshrl.u32 %v2144, 7
  %v2146 = vsub.s32 0, %v2145
  %v2147 = vrot.slane %v2142, %v2146
  %v2148 = vlaneseq
  %v2149 = vshrl.u32 %v2148, 7
  %v2150 = vsub.s32 1, %v2149
  %v2151 = vrot.slane %v2142, %v2150
  %v2152 = vlaneseq
  %v2153 = vshrl.u32 %v2152, 7
  %v2154 = vsub.s32 2, %v2153
  %v2155 = vrot.slane %v2142, %v2154
  %v2156 = vlaneseq
  %v2157 = vshrl.u32 %v2156, 7
  %v2158 = vsub.s32 3, %v2157
  %v2159 = vrot.slane %v2142, %v2158
  %vm2164 = vcmask 654336
  %v2166 = vsel %vm2164, %v2074, 0
  %v2169 = vsel %vm2164, %v2075, 0
  %v2172 = vsel %vm2164, %v2076, 0
  %v2175 = vsel %vm2164, %v2077, 0
  %v2178 = vsel %vm2164, %v2078, 0
  %v2181 = vsel %vm2164, %v2079, 0
  %v2184 = vsel %vm2164, %v2080, 0
  %v2187 = vsel %vm2164, %v2081, 0
  %2189 = vmatprep.subr.mxu0 0.0
  %2190 = vmatpush1.msra.mxu0 0.0
  %2191 = vmatprep.subr.mxu0 0.0
  %2192 = vmatpush1.msra.mxu0 0.0
  %2193 = vmatprep.subr.mxu0 0.0
  %2194 = vmatpush1.msra.mxu0 0.0
  %2195 = vmatprep.subr.mxu0 0.0
  %2196 = vmatpush1.msra.mxu0 0.0
  %2197 = vmatprep.subr.mxu0 0.0
  %2198 = vmatpush1.msra.mxu0 0.0
  %2199 = vmatprep.subr.mxu0 0.0
  %2200 = vmatpush1.msra.mxu0 0.0
  %2201 = vmatprep.subr.mxu0 %v2139
  %2202 = vmatpush1.msra.mxu0 %v2138
  %2203 = vmatprep.subr.mxu0 %v2135
  %2204 = vmatpush1.msra.mxu0 %v2134
  %2205 = vmatprep.subr.mxu0 %v2131
  %2206 = vmatpush1.msra.mxu0 %v2130
  %2207 = vmatprep.subr.mxu0 %v2127
  %2208 = vmatpush1.msra.mxu0 %v2126
  %2209 = vmatprep.subr.mxu0 %v2123
  %2210 = vmatpush1.msra.mxu0 %v2122
  %2211 = vmatprep.subr.mxu0 %v2119
  %2212 = vmatpush1.msra.mxu0 %v2118
  %2213 = vmatprep.subr.mxu0 %v2115
  %2214 = vmatpush1.msra.mxu0 %v2114
  %2215 = vmatprep.subr.mxu0 %v2111
  %2216 = vmatpush1.msra.mxu0 %v2110
  %2217 = vmatprep.subr.mxu0 %v2107
  %2218 = vmatpush1.msra.mxu0 %v2106
  %2219 = vmatprep.subr.mxu0 %v2103
  %2220 = vmatpush1.msra.mxu0 %v2102
  %2221 = vmatprep.subr.mxu0 0.0
  %2222 = vmatpush2.msra.mxu0 0.0
  %2223 = vmatprep.subr.mxu0 0.0
  %2224 = vmatpush2.msra.mxu0 0.0
  %2225 = vmatprep.subr.mxu0 0.0
  %2226 = vmatpush2.msra.mxu0 0.0
  %2227 = vmatprep.subr.mxu0 0.0
  %2228 = vmatpush2.msra.mxu0 0.0
  %2229 = vmatprep.subr.mxu0 0.0
  %2230 = vmatpush2.msra.mxu0 0.0
  %2231 = vmatprep.subr.mxu0 0.0
  %2232 = vmatpush2.msra.mxu0 0.0
  %2233 = vmatprep.subr.mxu0 0.0
  %2234 = vmatpush2.msra.mxu0 0.0
  %2235 = vmatprep.subr.mxu0 0.0
  %2236 = vmatpush2.msra.mxu0 0.0
  %2237 = vmatprep.subr.mxu0 0.0
  %2238 = vmatpush2.msra.mxu0 0.0
  %2239 = vmatprep.subr.mxu0 0.0
  %2240 = vmatpush2.msra.mxu0 0.0
  %2241 = vmatprep.subr.mxu0 0.0
  %2242 = vmatpush2.msra.mxu0 0.0
  %2243 = vmatprep.subr.mxu0 0.0
  %2244 = vmatpush2.msra.mxu0 0.0
  %2245 = vmatprep.subr.mxu0 0.0
  %2246 = vmatpush2.msra.mxu0 0.0
  %2247 = vmatprep.subr.mxu0 0.0
  %2248 = vmatpush2.msra.mxu0 0.0
  %2249 = vmatprep.subr.mxu0 0.0
  %2250 = vmatpush2.msra.mxu0 0.0
  %2251 = vmatprep.subr.mxu0 0.0
  %2252 = vmatpush2.msra.mxu0 0.0
  %2253 = vmatprep.mubr.f32.mxu0 0.0
  %2254 = vmatmul.mubr.f32.gmra.mxu0 %v2166
  %v2255 = vpop.f32.mrf.mxu0
  %v2256 = vadd.f32 %v2147, %v2255
  %v2257 = vpop.f32.mrf.mxu0
  %v2258 = vadd.f32 %v2151, %v2257
  %2259 = vmatprep.mubr.f32.mxu0 0.0
  %2260 = vmatmul.mubr.f32.gmra.mxu0 %v2169
  %v2261 = vpop.f32.mrf.mxu0
  %v2262 = vadd.f32 %v2147, %v2261
  %v2263 = vpop.f32.mrf.mxu0
  %v2264 = vadd.f32 %v2151, %v2263
  %2265 = vmatprep.mubr.f32.mxu0 0.0
  %2266 = vmatmul.mubr.f32.gmra.mxu0 %v2172
  %v2267 = vpop.f32.mrf.mxu0
  %v2268 = vadd.f32 %v2147, %v2267
  %v2269 = vpop.f32.mrf.mxu0
  %v2270 = vadd.f32 %v2151, %v2269
  %2271 = vmatprep.mubr.f32.mxu0 0.0
  %2272 = vmatmul.mubr.f32.gmra.mxu0 %v2175
  %v2273 = vpop.f32.mrf.mxu0
  %v2274 = vadd.f32 %v2147, %v2273
  %v2275 = vpop.f32.mrf.mxu0
  %v2276 = vadd.f32 %v2151, %v2275
  %2277 = vmatprep.mubr.f32.mxu0 0.0
  %2278 = vmatmul.mubr.f32.gmra.mxu0 %v2178
  %v2279 = vpop.f32.mrf.mxu0
  %v2280 = vadd.f32 %v2147, %v2279
  %v2281 = vpop.f32.mrf.mxu0
  %v2282 = vadd.f32 %v2151, %v2281
  %2283 = vmatprep.mubr.f32.mxu0 0.0
  %2284 = vmatmul.mubr.f32.gmra.mxu0 %v2181
  %v2285 = vpop.f32.mrf.mxu0
  %v2286 = vadd.f32 %v2147, %v2285
  %v2287 = vpop.f32.mrf.mxu0
  %v2288 = vadd.f32 %v2151, %v2287
  %2289 = vmatprep.mubr.f32.mxu0 0.0
  %2290 = vmatmul.mubr.f32.gmra.mxu0 %v2184
  %v2291 = vpop.f32.mrf.mxu0
  %v2292 = vadd.f32 %v2147, %v2291
  %v2293 = vpop.f32.mrf.mxu0
  %v2294 = vadd.f32 %v2151, %v2293
  %2295 = vmatprep.mubr.f32.mxu0 0.0
  %2296 = vmatmul.mubr.f32.gmra.mxu0 %v2187
  %v2297 = vpop.f32.mrf.mxu0
  %v2298 = vadd.f32 %v2147, %v2297
  %v2299 = vpop.f32.mrf.mxu0
  %v2300 = vadd.f32 %v2151, %v2299
  %2301 = vdwg.mxu0
  %2302 = vmatprep.subr.mxu0 0.0
  %2303 = vmatpush1.msra.mxu0 0.0
  %2304 = vmatprep.subr.mxu0 0.0
  %2305 = vmatpush1.msra.mxu0 0.0
  %2306 = vmatprep.subr.mxu0 0.0
  %2307 = vmatpush1.msra.mxu0 0.0
  %2308 = vmatprep.subr.mxu0 0.0
  %2309 = vmatpush1.msra.mxu0 0.0
  %2310 = vmatprep.subr.mxu0 0.0
  %2311 = vmatpush1.msra.mxu0 0.0
  %2312 = vmatprep.subr.mxu0 0.0
  %2313 = vmatpush1.msra.mxu0 0.0
  %2314 = vmatprep.subr.mxu0 %v2141
  %2315 = vmatpush1.msra.mxu0 %v2140
  %2316 = vmatprep.subr.mxu0 %v2137
  %2317 = vmatpush1.msra.mxu0 %v2136
  %2318 = vmatprep.subr.mxu0 %v2133
  %2319 = vmatpush1.msra.mxu0 %v2132
  %2320 = vmatprep.subr.mxu0 %v2129
  %2321 = vmatpush1.msra.mxu0 %v2128
  %2322 = vmatprep.subr.mxu0 %v2125
  %2323 = vmatpush1.msra.mxu0 %v2124
  %2324 = vmatprep.subr.mxu0 %v2121
  %2325 = vmatpush1.msra.mxu0 %v2120
  %2326 = vmatprep.subr.mxu0 %v2117
  %2327 = vmatpush1.msra.mxu0 %v2116
  %2328 = vmatprep.subr.mxu0 %v2113
  %2329 = vmatpush1.msra.mxu0 %v2112
  %2330 = vmatprep.subr.mxu0 %v2109
  %2331 = vmatpush1.msra.mxu0 %v2108
  %2332 = vmatprep.subr.mxu0 %v2105
  %2333 = vmatpush1.msra.mxu0 %v2104
  %2334 = vmatprep.subr.mxu0 0.0
  %2335 = vmatpush2.msra.mxu0 0.0
  %2336 = vmatprep.subr.mxu0 0.0
  %2337 = vmatpush2.msra.mxu0 0.0
  %2338 = vmatprep.subr.mxu0 0.0
  %2339 = vmatpush2.msra.mxu0 0.0
  %2340 = vmatprep.subr.mxu0 0.0
  %2341 = vmatpush2.msra.mxu0 0.0
  %2342 = vmatprep.subr.mxu0 0.0
  %2343 = vmatpush2.msra.mxu0 0.0
  %2344 = vmatprep.subr.mxu0 0.0
  %2345 = vmatpush2.msra.mxu0 0.0
  %2346 = vmatprep.subr.mxu0 0.0
  %2347 = vmatpush2.msra.mxu0 0.0
  %2348 = vmatprep.subr.mxu0 0.0
  %2349 = vmatpush2.msra.mxu0 0.0
  %2350 = vmatprep.subr.mxu0 0.0
  %2351 = vmatpush2.msra.mxu0 0.0
  %2352 = vmatprep.subr.mxu0 0.0
  %2353 = vmatpush2.msra.mxu0 0.0
  %2354 = vmatprep.subr.mxu0 0.0
  %2355 = vmatpush2.msra.mxu0 0.0
  %2356 = vmatprep.subr.mxu0 0.0
  %2357 = vmatpush2.msra.mxu0 0.0
  %2358 = vmatprep.subr.mxu0 0.0
  %2359 = vmatpush2.msra.mxu0 0.0
  %2360 = vmatprep.subr.mxu0 0.0
  %2361 = vmatpush2.msra.mxu0 0.0
  %2362 = vmatprep.subr.mxu0 0.0
  %2363 = vmatpush2.msra.mxu0 0.0
  %2364 = vmatprep.subr.mxu0 0.0
  %2365 = vmatpush2.msra.mxu0 0.0
  %2366 = vmatprep.mubr.f32.mxu0 0.0
  %2367 = vmatmul.mubr.f32.gmra.mxu0 %v2166
  %v2368 = vpop.f32.mrf.mxu0
  %v2369 = vadd.f32 %v2155, %v2368
  %v2370 = vpop.f32.mrf.mxu0
  %v2371 = vadd.f32 %v2159, %v2370
  %2372 = vmatprep.mubr.f32.mxu0 0.0
  %2373 = vmatmul.mubr.f32.gmra.mxu0 %v2169
  %v2374 = vpop.f32.mrf.mxu0
  %v2375 = vadd.f32 %v2155, %v2374
  %v2376 = vpop.f32.mrf.mxu0
  %v2377 = vadd.f32 %v2159, %v2376
  %2378 = vmatprep.mubr.f32.mxu0 0.0
  %2379 = vmatmul.mubr.f32.gmra.mxu0 %v2172
  %v2380 = vpop.f32.mrf.mxu0
  %v2381 = vadd.f32 %v2155, %v2380
  %v2382 = vpop.f32.mrf.mxu0
  %v2383 = vadd.f32 %v2159, %v2382
  %2384 = vmatprep.mubr.f32.mxu0 0.0
  %2385 = vmatmul.mubr.f32.gmra.mxu0 %v2175
  %v2386 = vpop.f32.mrf.mxu0
  %v2387 = vadd.f32 %v2155, %v2386
  %v2388 = vpop.f32.mrf.mxu0
  %v2389 = vadd.f32 %v2159, %v2388
  %2390 = vmatprep.mubr.f32.mxu0 0.0
  %2391 = vmatmul.mubr.f32.gmra.mxu0 %v2178
  %v2392 = vpop.f32.mrf.mxu0
  %v2393 = vadd.f32 %v2155, %v2392
  %v2394 = vpop.f32.mrf.mxu0
  %v2395 = vadd.f32 %v2159, %v2394
  %2396 = vmatprep.mubr.f32.mxu0 0.0
  %2397 = vmatmul.mubr.f32.gmra.mxu0 %v2181
  %v2398 = vpop.f32.mrf.mxu0
  %v2399 = vadd.f32 %v2155, %v2398
  %v2400 = vpop.f32.mrf.mxu0
  %v2401 = vadd.f32 %v2159, %v2400
  %2402 = vmatprep.mubr.f32.mxu0 0.0
  %2403 = vmatmul.mubr.f32.gmra.mxu0 %v2184
  %v2404 = vpop.f32.mrf.mxu0
  %v2405 = vadd.f32 %v2155, %v2404
  %v2406 = vpop.f32.mrf.mxu0
  %v2407 = vadd.f32 %v2159, %v2406
  %2408 = vmatprep.mubr.f32.mxu0 0.0
  %2409 = vmatmul.mubr.f32.gmra.mxu0 %v2187
  %v2410 = vpop.f32.mrf.mxu0
  %v2411 = vadd.f32 %v2155, %v2410
  %v2412 = vpop.f32.mrf.mxu0
  %v2413 = vadd.f32 %v2159, %v2412
  %2414 = vdwg.mxu0
  %v2415 = vmax.f32 %v2256, 0.0
  %v2416 = vmax.f32 %v2258, 0.0
  %v2417 = vmax.f32 %v2369, 0.0
  %v2418 = vmax.f32 %v2371, 0.0
  %v2419 = vmax.f32 %v2262, 0.0
  %v2420 = vmax.f32 %v2264, 0.0
  %v2421 = vmax.f32 %v2375, 0.0
  %v2422 = vmax.f32 %v2377, 0.0
  %v2423 = vmax.f32 %v2268, 0.0
  %v2424 = vmax.f32 %v2270, 0.0
  %v2425 = vmax.f32 %v2381, 0.0
  %v2426 = vmax.f32 %v2383, 0.0
  %v2427 = vmax.f32 %v2274, 0.0
  %v2428 = vmax.f32 %v2276, 0.0
  %v2429 = vmax.f32 %v2387, 0.0
  %v2430 = vmax.f32 %v2389, 0.0
  %v2431 = vmax.f32 %v2280, 0.0
  %v2432 = vmax.f32 %v2282, 0.0
  %v2433 = vmax.f32 %v2393, 0.0
  %v2434 = vmax.f32 %v2395, 0.0
  %v2435 = vmax.f32 %v2286, 0.0
  %v2436 = vmax.f32 %v2288, 0.0
  %v2437 = vmax.f32 %v2399, 0.0
  %v2438 = vmax.f32 %v2401, 0.0
  %v2439 = vmax.f32 %v2292, 0.0
  %v2440 = vmax.f32 %v2294, 0.0
  %v2441 = vmax.f32 %v2405, 0.0
  %v2442 = vmax.f32 %v2407, 0.0
  %v2443 = vmax.f32 %v2298, 0.0
  %v2444 = vmax.f32 %v2300, 0.0
  %v2445 = vmax.f32 %v2411, 0.0
  %v2446 = vmax.f32 %v2413, 0.0
  %v2447 = vld [vmem:[%s9] sm:$0xf]
  %v2448 = vunpack.c.l.bf16 %v2447
  %v2450 = vlaneseq
  %v2451 = vshrl.u32 %v2450, 7
  %v2452 = vsub.s32 0, %v2451
  %v2453 = vrot.slane %v2448, %v2452
  %v2454 = vlaneseq
  %v2455 = vshrl.u32 %v2454, 7
  %v2456 = vsub.s32 2, %v2455
  %v2457 = vrot.slane %v2448, %v2456
  %v2458 = vlaneseq
  %v2459 = vshrl.u32 %v2458, 7
  %v2460 = vsub.s32 4, %v2459
  %v2461 = vrot.slane %v2448, %v2460
  %v2462 = vlaneseq
  %v2463 = vshrl.u32 %v2462, 7
  %v2464 = vsub.s32 6, %v2463
  %v2465 = vrot.slane %v2448, %v2464
  %v2470 = vlaneseq
  %v2471 = vshrl.u32 %v2470, 7
  %v2472 = vsub.s32 0, %v2471
  %v2473 = vrot.slane %v2453, %v2472
  %v2474 = vlaneseq
  %v2475 = vshrl.u32 %v2474, 7
  %v2476 = vsub.s32 0, %v2475
  %v2477 = vrot.slane %v2457, %v2476
  %v2478 = vlaneseq
  %v2479 = vshrl.u32 %v2478, 7
  %v2480 = vsub.s32 0, %v2479
  %v2481 = vrot.slane %v2461, %v2480
  %v2482 = vlaneseq
  %v2483 = vshrl.u32 %v2482, 7
  %v2484 = vsub.s32 0, %v2483
  %v2485 = vrot.slane %v2465, %v2484
  %v2486 = vmul.f32 %v2415, %v2473
  %v2487 = vmul.f32 %v2416, %v2477
  %v2488 = vmul.f32 %v2417, %v2481
  %v2489 = vmul.f32 %v2418, %v2485
  %v2490 = vmul.f32 %v2419, %v2473
  %v2491 = vmul.f32 %v2420, %v2477
  %v2492 = vmul.f32 %v2421, %v2481
  %v2493 = vmul.f32 %v2422, %v2485
  %v2494 = vmul.f32 %v2423, %v2473
  %v2495 = vmul.f32 %v2424, %v2477
  %v2496 = vmul.f32 %v2425, %v2481
  %v2497 = vmul.f32 %v2426, %v2485
  %v2498 = vmul.f32 %v2427, %v2473
  %v2499 = vmul.f32 %v2428, %v2477
  %v2500 = vmul.f32 %v2429, %v2481
  %v2501 = vmul.f32 %v2430, %v2485
  %v2502 = vmul.f32 %v2431, %v2473
  %v2503 = vmul.f32 %v2432, %v2477
  %v2504 = vmul.f32 %v2433, %v2481
  %v2505 = vmul.f32 %v2434, %v2485
  %v2506 = vmul.f32 %v2435, %v2473
  %v2507 = vmul.f32 %v2436, %v2477
  %v2508 = vmul.f32 %v2437, %v2481
  %v2509 = vmul.f32 %v2438, %v2485
  %v2510 = vmul.f32 %v2439, %v2473
  %v2511 = vmul.f32 %v2440, %v2477
  %v2512 = vmul.f32 %v2441, %v2481
  %v2513 = vmul.f32 %v2442, %v2485
  %v2514 = vmul.f32 %v2443, %v2473
  %v2515 = vmul.f32 %v2444, %v2477
  %v2516 = vmul.f32 %v2445, %v2481
  %v2517 = vmul.f32 %v2446, %v2485
  %v2518 = vadd.f32 %v2486, %v2487
  %v2519 = vadd.f32 %v2518, %v2488
  %v2520 = vadd.f32 %v2519, %v2489
  %2521 = vadd.xlane.f32.xlu0 %v2520
  %v2522 = vpop.xlane.xlu0 %2521
  %v2523 = vadd.f32 %v2490, %v2491
  %v2524 = vadd.f32 %v2523, %v2492
  %v2525 = vadd.f32 %v2524, %v2493
  %2526 = vadd.xlane.f32.xlu0 %v2525
  %v2527 = vpop.xlane.xlu0 %2526
  %v2528 = vadd.f32 %v2494, %v2495
  %v2529 = vadd.f32 %v2528, %v2496
  %v2530 = vadd.f32 %v2529, %v2497
  %2531 = vadd.xlane.f32.xlu0 %v2530
  %v2532 = vpop.xlane.xlu0 %2531
  %v2533 = vadd.f32 %v2498, %v2499
  %v2534 = vadd.f32 %v2533, %v2500
  %v2535 = vadd.f32 %v2534, %v2501
  %2536 = vadd.xlane.f32.xlu0 %v2535
  %v2537 = vpop.xlane.xlu0 %2536
  %v2538 = vadd.f32 %v2502, %v2503
  %v2539 = vadd.f32 %v2538, %v2504
  %v2540 = vadd.f32 %v2539, %v2505
  %2541 = vadd.xlane.f32.xlu0 %v2540
  %v2542 = vpop.xlane.xlu0 %2541
  %v2543 = vadd.f32 %v2506, %v2507
  %v2544 = vadd.f32 %v2543, %v2508
  %v2545 = vadd.f32 %v2544, %v2509
  %2546 = vadd.xlane.f32.xlu0 %v2545
  %v2547 = vpop.xlane.xlu0 %2546
  %v2548 = vadd.f32 %v2510, %v2511
  %v2549 = vadd.f32 %v2548, %v2512
  %v2550 = vadd.f32 %v2549, %v2513
  %2551 = vadd.xlane.f32.xlu0 %v2550
  %v2552 = vpop.xlane.xlu0 %2551
  %v2553 = vadd.f32 %v2514, %v2515
  %v2554 = vadd.f32 %v2553, %v2516
  %v2555 = vadd.f32 %v2554, %v2517
  %2556 = vadd.xlane.f32.xlu0 %v2555
  %v2557 = vpop.xlane.xlu0 %2556
  %v2558 = vld [vmem:[#allocation3] sm:$0x1]
  %v2560 = vlaneseq
  %v2561 = vshrl.u32 %v2560, 7
  %v2562 = vsub.s32 0, %v2561
  %v2563 = vrot.slane %v2558, %v2562
  %v2565 = vadd.f32 %v2522, %v2563
  %v2566 = vadd.f32 %v2527, %v2563
  %v2567 = vadd.f32 %v2532, %v2563
  %v2568 = vadd.f32 %v2537, %v2563
  %v2569 = vadd.f32 %v2542, %v2563
  %v2570 = vadd.f32 %v2547, %v2563
  %v2571 = vadd.f32 %v2552, %v2563
  %v2572 = vadd.f32 %v2557, %v2563
  %2574 = vset.pattern.permute.xlu0 0
  %2575 = vperm.xlu0 %2574, %v2565
  %v2576 = vpop.permute.xlu0 %2575
  %2579 = vset.pattern.permute.xlu0 0
  %2580 = vperm.xlu0 %2579, %v2566
  %v2581 = vpop.permute.xlu0 %2580
  %2584 = vset.pattern.permute.xlu0 0
  %2585 = vperm.xlu0 %2584, %v2567
  %v2586 = vpop.permute.xlu0 %2585
  %2589 = vset.pattern.permute.xlu0 0
  %2590 = vperm.xlu0 %2589, %v2568
  %v2591 = vpop.permute.xlu0 %2590
  %2594 = vset.pattern.permute.xlu0 0
  %2595 = vperm.xlu0 %2594, %v2569
  %v2596 = vpop.permute.xlu0 %2595
  %2599 = vset.pattern.permute.xlu0 0
  %2600 = vperm.xlu0 %2599, %v2570
  %v2601 = vpop.permute.xlu0 %2600
  %2604 = vset.pattern.permute.xlu0 0
  %2605 = vperm.xlu0 %2604, %v2571
  %v2606 = vpop.permute.xlu0 %2605
  %2609 = vset.pattern.permute.xlu0 0
  %2610 = vperm.xlu0 %2609, %v2572
  %v2611 = vpop.permute.xlu0 %2610
  %2613 = vst [vmem:[%s11] sm:$0xff] %v2576
  %2614 = vst [vmem:[%s11 + $0x8] sm:$0xff] %v2581
  %2615 = vst [vmem:[%s11 + $0x10] sm:$0xff] %v2586
  %2616 = vst [vmem:[%s11 + $0x18] sm:$0xff] %v2591
  %2617 = vst [vmem:[%s11 + $0x20] sm:$0xff] %v2596
  %2618 = vst [vmem:[%s11 + $0x28] sm:$0xff] %v2601
  %2619 = vst [vmem:[%s11 + $0x30] sm:$0xff] %v2606
  %2620 = vst [vmem:[%s11 + $0x38] sm:$0xff] %v2611
  // Predicated region
  $region46: #{lstm_model_regression_v2.1} parent=0 // pred_check
    _
  $region47: #{lstm_model_regression_v2.1} parent=0 // pred_check_branch
    %2622 = sbr.rel (0) target = $region49
  $region48: #{lstm_model_regression_v2.1} parent=0 // pred_region
    _
  $region49: #{lstm_model_regression_v2.1} parent=0 // pred_fallthru
    _
  // Predicated region
  $region50: #{lstm_model_regression_v2.1} parent=0 // pred_check
    _
  $region51: #{lstm_model_regression_v2.1} parent=0 // pred_check_branch
    %2624 = sbr.rel (0) target = $region53
  $region52: #{lstm_model_regression_v2.1} parent=0 // pred_region
    _
  $region53: #{lstm_model_regression_v2.1} parent=0 // pred_fallthru
    _

</llo_original>
